<compile_context>
chip_gen: v7x
topology: tpu7x:2x2x1
jax: 0.10.0
libtpu: 0.0.40
codegen_flags: <defaults>
</compile_context>

<pallas_src>
import functools

import jax
import jax.numpy as jnp
from jax import lax
from jax.experimental import pallas as pl
from jax.experimental.pallas import tpu as pltpu


def _round_up(x, m):
    return (x + m - 1) // m * m


# ----------------------------------------------------------------------------
# Kernel 1: fused Mamba block (one grid step per batch element)
# ----------------------------------------------------------------------------
def _mamba_fused_kernel(x_ref, w_in_ref, b_in_ref, w_conv_ref, b_conv_ref,
                        w_x_ref, b_x_ref, w_dt_ref, b_dt_ref, a_ref, d_ref,
                        w_out_ref, b_out_ref, o_ref,
                        u_s, dt_s, b_s, c_s, y_s, h_s,
                        *, L, d_inner, dt_rank, d_state, K):
    f32 = jnp.float32
    bf16 = jnp.bfloat16

    x = x_ref[0]                                               # (L, d_model) bf16

    # ---- in_proj (MXU bf16 x bf16 -> f32) ----
    xz = jnp.dot(x, w_in_ref[...], preferred_element_type=f32) + b_in_ref[...]
    x_in = xz[:, :d_inner]                                     # (L, d_inner) f32
    z = xz[:, d_inner:]                                        # (L, d_inner) f32

    # ---- causal depthwise conv + SiLU (boundary handled in-kernel, in VMEM) ----
    xp = jnp.concatenate(
        [jnp.zeros((K - 1, d_inner), f32), x_in], axis=0)      # (L+K-1, d_inner)
    acc = b_conv_ref[...] + x_in * w_conv_ref[pl.ds(K - 1, 1), :]
    for k in range(K - 1):
        acc = acc + xp[k:k + L, :] * w_conv_ref[pl.ds(k, 1), :]
    u = acc * jax.nn.sigmoid(acc)                              # x_conv, (L, d_inner) f32

    # ---- x_proj (output zero-padded to a multiple of 128 lanes) ----
    xdbl = jnp.dot(u.astype(bf16), w_x_ref[...],
                   preferred_element_type=f32) + b_x_ref[...]  # (L, P)
    b_mat = xdbl[:, dt_rank:dt_rank + d_state]                 # (L, d_state)
    c_mat = xdbl[:, dt_rank + d_state:dt_rank + 2 * d_state]   # (L, d_state)

    # ---- dt_proj + softplus (w_dt rows >= dt_rank are zero, so no slicing) ----
    dt_full = jnp.dot(xdbl.astype(bf16), w_dt_ref[...],
                      preferred_element_type=f32) + b_dt_ref[...]
    delta = jnp.maximum(dt_full, 0.0) + jnp.log1p(jnp.exp(-jnp.abs(dt_full)))

    # ---- stash scan operands in VMEM scratch ----
    u_s[...] = u
    dt_s[...] = delta
    b_s[...] = b_mat[:, :, None]                               # (L, d_state, 1)
    c_s[...] = c_mat[:, :, None]                               # (L, d_state, 1)
    h_s[...] = jnp.zeros_like(h_s)

    a_mat = a_ref[...]                                         # (d_state, d_inner)

    def step(t, carry):
        dt_t = dt_s[pl.ds(t, 1), :]                            # (1, d_inner)
        u_t = u_s[pl.ds(t, 1), :]                              # (1, d_inner)
        da = jnp.exp(dt_t * a_mat)                             # (d_state, d_inner)
        dbu = (dt_t * u_t) * b_s[t]                            # (d_state, d_inner)
        h_new = da * h_s[...] + dbu
        h_s[...] = h_new
        y_s[pl.ds(t, 1), :] = jnp.sum(h_new * c_s[t], axis=0, keepdims=True)
        return carry

    unroll = True if L <= 64 else 8
    lax.fori_loop(0, L, step, 0, unroll=unroll)

    # ---- D skip + SiLU(z) gate (single fused VMEM pass) ----
    y = (y_s[...] + u * d_ref[...]) * (z * jax.nn.sigmoid(z))

    # ---- out_proj ----
    out = jnp.dot(y.astype(bf16), w_out_ref[...],
                  preferred_element_type=f32) + b_out_ref[...]
    o_ref[...] = out[None].astype(o_ref.dtype)


def mamba_block(emb, p, meta):
    B, L, d_model = emb.shape
    d_inner, d_state = meta["d_inner"], meta["d_state"]
    dt_rank, K = meta["dt_rank"], meta["d_conv"]

    kernel = functools.partial(_mamba_fused_kernel, L=L, d_inner=d_inner,
                               dt_rank=dt_rank, d_state=d_state, K=K)

    def full_spec(arr):
        return pl.BlockSpec(arr.shape, lambda b, _n=arr.ndim: (0,) * _n)

    in_specs = [
        pl.BlockSpec((1, L, d_model), lambda b: (b, 0, 0)),
        full_spec(p["in_proj_w"]), full_spec(p["in_proj_b"]),
        full_spec(p["conv_w"]), full_spec(p["conv_b"]),
        full_spec(p["x_proj_w"]), full_spec(p["x_proj_b"]),
        full_spec(p["dt_proj_w"]), full_spec(p["dt_proj_b"]),
        full_spec(p["A_T"]), full_spec(p["D"]),
        full_spec(p["out_proj_w"]), full_spec(p["out_proj_b"]),
    ]
    out_spec = pl.BlockSpec((1, L, d_model), lambda b: (b, 0, 0))

    scratch = [
        pltpu.VMEM((L, d_inner), jnp.float32),        # u  (x_conv)
        pltpu.VMEM((L, d_inner), jnp.float32),        # delta
        pltpu.VMEM((L, d_state, 1), jnp.float32),     # B_t column vectors
        pltpu.VMEM((L, d_state, 1), jnp.float32),     # C_t column vectors
        pltpu.VMEM((L, d_inner), jnp.float32),        # y
        pltpu.VMEM((d_state, d_inner), jnp.float32),  # h (SSM state)
    ]

    return pl.pallas_call(
        kernel,
        grid=(B,),
        in_specs=in_specs,
        out_specs=out_spec,
        out_shape=jax.ShapeDtypeStruct((B, L, d_model), jnp.bfloat16),
        scratch_shapes=scratch,
        compiler_params=pltpu.CompilerParams(
            dimension_semantics=("parallel",),
            vmem_limit_bytes=48 * 1024 * 1024),
    )(emb, p["in_proj_w"], p["in_proj_b"], p["conv_w"], p["conv_b"],
      p["x_proj_w"], p["x_proj_b"], p["dt_proj_w"], p["dt_proj_b"],
      p["A_T"], p["D"], p["out_proj_w"], p["out_proj_b"])


# ----------------------------------------------------------------------------
# Kernel 2: fused multi-head Expanding MLP (grid over (head, row-tile))
# ----------------------------------------------------------------------------
def _mlp_heads_kernel(*refs, n_inner, eps=1e-5):
    x_ref = refs[0]
    w0_ref, b0_ref = refs[1], refs[2]
    inner = refs[3:3 + 4 * n_inner]
    wf_ref, bf_ref = refs[3 + 4 * n_inner], refs[4 + 4 * n_inner]
    o_ref = refs[5 + 4 * n_inner]

    f32 = jnp.float32
    bf16 = jnp.bfloat16

    x = x_ref[...]                                             # (rows, d_model) bf16
    h = jnp.dot(x, w0_ref[0], preferred_element_type=f32) + b0_ref[0]
    h = jnp.maximum(h, 0.0)
    for i in range(n_inner):
        w_r, b_r, g_r, beta_r = inner[4 * i:4 * i + 4]
        h = jnp.dot(h.astype(bf16), w_r[0], preferred_element_type=f32) + b_r[0]
        h = jnp.maximum(h, 0.0)
        # LayerNorm as in-register epilogue of the matmul
        mu = jnp.mean(h, axis=-1, keepdims=True)
        hc = h - mu
        var = jnp.mean(hc * hc, axis=-1, keepdims=True)
        h = hc * lax.rsqrt(var + eps) * g_r[0] + beta_r[0]
    out = jnp.dot(h.astype(bf16), wf_ref[0], preferred_element_type=f32) + bf_ref[0]
    o_ref[...] = out[None].astype(o_ref.dtype)                 # lane-dense (128-wide)


def mlp_heads(x2d, hp, row_tile):
    n_pad, d_model = x2d.shape
    num_heads = hp["w0"].shape[0]
    v2p = hp["wf"].shape[-1]
    n_inner = len(hp["inner"])
    r_tiles = n_pad // row_tile

    kernel = functools.partial(_mlp_heads_kernel, n_inner=n_inner)

    def head_spec(arr):
        return pl.BlockSpec((1,) + arr.shape[1:],
                            lambda h, r, _n=arr.ndim: (h,) + (0,) * (_n - 1))

    in_specs = [pl.BlockSpec((row_tile, d_model), lambda h, r: (r, 0)),
                head_spec(hp["w0"]), head_spec(hp["b0"])]
    args = [x2d, hp["w0"], hp["b0"]]
    for (w_i, b_i, g_i, beta_i) in hp["inner"]:
        in_specs += [head_spec(w_i), head_spec(b_i), head_spec(g_i), head_spec(beta_i)]
        args += [w_i, b_i, g_i, beta_i]
    in_specs += [head_spec(hp["wf"]), head_spec(hp["bf"])]
    args += [hp["wf"], hp["bf"]]

    out_spec = pl.BlockSpec((1, row_tile, v2p), lambda h, r: (h, r, 0))

    return pl.pallas_call(
        kernel,
        grid=(num_heads, r_tiles),
        in_specs=in_specs,
        out_specs=out_spec,
        out_shape=jax.ShapeDtypeStruct((num_heads, n_pad, v2p), jnp.float32),
        compiler_params=pltpu.CompilerParams(
            dimension_semantics=("parallel", "parallel"),
            vmem_limit_bytes=48 * 1024 * 1024),
    )(*args)


# ----------------------------------------------------------------------------
# Parameter init (deterministic, synthetic; pre-packed & pre-padded for kernels)
# ----------------------------------------------------------------------------
def init_params(key, *, num_heads, model_dim, d_state, d_conv, expand,
                vocab, mlp_hidden, mlp_layers):
    d_model = model_dim * num_heads
    d_inner = expand * d_model
    dt_rank = -(-d_model // 16)                 # ceil(d_model/16), mamba default
    v2 = vocab + 2
    xproj_out = dt_rank + 2 * d_state
    xproj_pad = _round_up(xproj_out, 128)       # lane-dense x_proj output
    v2_pad = _round_up(v2, 128)                 # lane-dense logits slab

    bf16 = jnp.bfloat16
    keys = iter(jax.random.split(key, 256))

    def w(shape, scale, dtype=jnp.float32):
        return (jax.random.normal(next(keys), shape, jnp.float32) * scale).astype(dtype)

    params = {}
    # stacked per-head embedding tables (gathered in the JAX wrapper)
    params["emb"] = w((num_heads, v2, model_dim), 0.02)

    # x_proj: columns [0:dt_rank]=dt_low, [dt_rank:+d_state]=B, next d_state=C,
    # remaining columns zero padding; dt_proj consumes the padded output directly
    # (rows >= dt_rank are zero) so no in-kernel slicing is needed for dt.
    x_proj_w = jnp.zeros((d_inner, xproj_pad), jnp.float32)
    x_proj_w = x_proj_w.at[:, :xproj_out].set(
        jax.random.normal(next(keys), (d_inner, xproj_out), jnp.float32) * d_inner ** -0.5)
    dt_proj_w = jnp.zeros((xproj_pad, d_inner), jnp.float32)
    dt_proj_w = dt_proj_w.at[:dt_rank, :].set(
        jax.random.normal(next(keys), (dt_rank, d_inner), jnp.float32) * dt_rank ** -0.5)

    params["mamba"] = {
        "in_proj_w": w((d_model, 2 * d_inner), d_model ** -0.5, bf16),
        "in_proj_b": jnp.zeros((1, 2 * d_inner), jnp.float32),   # mamba default: no bias
        "conv_w": w((d_conv, d_inner), d_conv ** -0.5),
        "conv_b": w((1, d_inner), 0.02),
        "x_proj_w": x_proj_w.astype(bf16),
        "x_proj_b": jnp.zeros((1, xproj_pad), jnp.float32),
        "dt_proj_w": dt_proj_w.astype(bf16),
        "dt_proj_b": w((1, d_inner), 0.02),
        # A[d, n] = -(n + 1)  (S4D-real init); stored transposed (d_state, d_inner)
        "A_T": -jnp.broadcast_to(
            jnp.arange(1, d_state + 1, dtype=jnp.float32)[:, None],
            (d_state, d_inner)),
        "D": jnp.ones((1, d_inner), jnp.float32),
        "out_proj_w": w((d_inner, d_model), d_inner ** -0.5, bf16),
        "out_proj_b": jnp.zeros((1, d_model), jnp.float32),
    }

    # Expanding MLP heads, stacked over a leading head axis.
    H = num_heads

    def stack_w(shape, scale, dtype):
        return (jax.random.normal(next(keys), (H,) + shape, jnp.float32) * scale).astype(dtype)

    heads = {
        "w0": stack_w((d_model, mlp_hidden), d_model ** -0.5, bf16),
        "b0": jnp.zeros((H, 1, mlp_hidden), jnp.float32),
        "inner": [],
    }
    dim = mlp_hidden
    for _ in range(mlp_layers - 2):
        nxt = dim * 2
        heads["inner"].append((
            stack_w((dim, nxt), dim ** -0.5, bf16),    # Linear weight
            jnp.zeros((H, 1, nxt), jnp.float32),       # Linear bias
            jnp.ones((H, 1, nxt), jnp.float32),        # LayerNorm gamma
            jnp.zeros((H, 1, nxt), jnp.float32),       # LayerNorm beta
        ))
        dim = nxt
    wf = jnp.zeros((H, dim, v2_pad), jnp.float32)
    wf = wf.at[:, :, :v2].set(
        jax.random.normal(next(keys), (H, dim, v2), jnp.float32) * dim ** -0.5)
    heads["wf"] = wf.astype(bf16)
    heads["bf"] = jnp.zeros((H, 1, v2_pad), jnp.float32)
    params["heads"] = heads

    meta = dict(d_model=d_model, d_inner=d_inner, dt_rank=dt_rank,
                d_state=d_state, d_conv=d_conv, v2=v2, v2_pad=v2_pad,
                xproj_pad=xproj_pad)
    return params, meta


# ----------------------------------------------------------------------------
# Forward pass
# ----------------------------------------------------------------------------
def chaos_hydra_forward(tokens, params, meta):
    B, L, H = tokens.shape
    d_model, v2 = meta["d_model"], meta["v2"]

    # --- per-head embedding gather + concat (plain-JAX glue) ---
    emb_tab = params["emb"]                                     # (H, v2, model_dim)
    embs = [jnp.take(emb_tab[h], tokens[:, :, h], axis=0) for h in range(H)]
    emb = jnp.concatenate(embs, axis=-1).astype(jnp.bfloat16)   # (B, L, d_model)

    # --- fused Mamba block, gridded over batch ---
    mamba_out = mamba_block(emb, params["mamba"], meta)         # (B, L, d_model) bf16

    # --- fused multi-head MLP, gridded over (head, row-tile) ---
    N = B * L
    row_tile = min(512, _round_up(N, 8))
    n_pad = _round_up(N, row_tile)
    x2d = mamba_out.reshape(N, d_model)
    if n_pad != N:
        x2d = jnp.pad(x2d, ((0, n_pad - N), (0, 0)))
    logits_pad = mlp_heads(x2d, params["heads"], row_tile)      # (H, n_pad, v2_pad) f32

    # --- slice padding off + reshape/transpose once (JAX glue) ---
    logits = logits_pad[:, :N, :v2].reshape(H, B, L, v2)
    pred_logits = jnp.transpose(logits, (1, 3, 2, 0))           # (B, v2, L, H)
    return {"pred_logits": pred_logits}


# ----------------------------------------------------------------------------
if __name__ == "__main__":
    # Small, self-consistent shapes.
    batch, seq_len = 2, 8
    num_heads = 2
    model_dim = 16          # per-head embedding dim; mamba d_model = 32
    ssm_state_dim = 8
    conv_width = 4
    expansion = 2
    vocabulary_size = 10    # logits dim = vocab + 2 = 12
    mlp_hidden_dim = 16
    mlp_num_layers = 4

    key = jax.random.PRNGKey(0)
    k_param, k_tok = jax.random.split(key)
    params, meta = init_params(
        k_param, num_heads=num_heads, model_dim=model_dim,
        d_state=ssm_state_dim, d_conv=conv_width, expand=expansion,
        vocab=vocabulary_size, mlp_hidden=mlp_hidden_dim,
        mlp_layers=mlp_num_layers)

    tokens = jax.random.randint(
        k_tok, (batch, seq_len, num_heads), 0, vocabulary_size + 2, dtype=jnp.int32)

    fwd = jax.jit(lambda toks, prm: chaos_hydra_forward(toks, prm, meta))
    out = fwd(tokens, params)
    pred = jax.block_until_ready(out["pred_logits"])

    expected = (batch, vocabulary_size + 2, seq_len, num_heads)
    assert pred.shape == expected, (pred.shape, expected)
    assert bool(jnp.all(jnp.isfinite(pred)))
    print("KERNEL_OK")
</pallas_src>

<mosaic_0001>
module attributes {stable_mosaic.version = 11 : i64} {
  func.func @_mlp_heads_kernel(%arg0: i32, %arg1: i32, %arg2: memref<16x32xbf16, #tpu.memory_space<vmem>>, %arg3: memref<1x32x16xbf16, #tpu.memory_space<vmem>>, %arg4: memref<1x1x16xf32, #tpu.memory_space<vmem>>, %arg5: memref<1x16x32xbf16, #tpu.memory_space<vmem>>, %arg6: memref<1x1x32xf32, #tpu.memory_space<vmem>>, %arg7: memref<1x1x32xf32, #tpu.memory_space<vmem>>, %arg8: memref<1x1x32xf32, #tpu.memory_space<vmem>>, %arg9: memref<1x32x64xbf16, #tpu.memory_space<vmem>>, %arg10: memref<1x1x64xf32, #tpu.memory_space<vmem>>, %arg11: memref<1x1x64xf32, #tpu.memory_space<vmem>>, %arg12: memref<1x1x64xf32, #tpu.memory_space<vmem>>, %arg13: memref<1x64x128xbf16, #tpu.memory_space<vmem>>, %arg14: memref<1x1x128xf32, #tpu.memory_space<vmem>>, %arg15: memref<1x16x128xf32, #tpu.memory_space<vmem>>) attributes {dimension_semantics = [#tpu.dimension_semantics<parallel>, #tpu.dimension_semantics<parallel>], iteration_bounds = array<i64: 2, 1>, scalar_prefetch = 0 : i64, scratch_operands = 0 : i64, tpu.core_type = #tpu.core_type<tc>, window_params = [{transform_indices = @transform_0, window_bounds = array<i64: 16, 32>}, {transform_indices = @transform_1, window_bounds = array<i64: 1, 32, 16>}, {transform_indices = @transform_2, window_bounds = array<i64: 1, 1, 16>}, {transform_indices = @transform_3, window_bounds = array<i64: 1, 16, 32>}, {transform_indices = @transform_4, window_bounds = array<i64: 1, 1, 32>}, {transform_indices = @transform_5, window_bounds = array<i64: 1, 1, 32>}, {transform_indices = @transform_6, window_bounds = array<i64: 1, 1, 32>}, {transform_indices = @transform_7, window_bounds = array<i64: 1, 32, 64>}, {transform_indices = @transform_8, window_bounds = array<i64: 1, 1, 64>}, {transform_indices = @transform_9, window_bounds = array<i64: 1, 1, 64>}, {transform_indices = @transform_10, window_bounds = array<i64: 1, 1, 64>}, {transform_indices = @transform_11, window_bounds = array<i64: 1, 64, 128>}, {transform_indices = @transform_12, window_bounds = array<i64: 1, 1, 128>}, {transform_indices = @transform_13, window_bounds = array<i64: 1, 16, 128>}]} {
    %c0 = arith.constant 0 : index
    %c0_0 = arith.constant 0 : index
    %0 = vector.load %arg2[%c0, %c0_0] : memref<16x32xbf16, #tpu.memory_space<vmem>>, vector<16x32xbf16>
    %c0_1 = arith.constant 0 : index
    %c0_2 = arith.constant 0 : index
    %c0_3 = arith.constant 0 : index
    %1 = vector.load %arg3[%c0_1, %c0_2, %c0_3] : memref<1x32x16xbf16, #tpu.memory_space<vmem>>, vector<1x32x16xbf16>
    %2 = vector.shape_cast %1 : vector<1x32x16xbf16> to vector<32x16xbf16>
    %cst = arith.constant dense<0.000000e+00> : vector<16x16xf32>
    %3 = tpu.matmul %0, %2, %cst {dimension_numbers = #tpu.dot_dimension_numbers<[1], [0], [0], [1], [0, 0, 1, 1], [], []>} : vector<16x32xbf16>, vector<32x16xbf16>, vector<16x16xf32> -> vector<16x16xf32>
    %c0_4 = arith.constant 0 : index
    %c0_5 = arith.constant 0 : index
    %c0_6 = arith.constant 0 : index
    %4 = vector.load %arg4[%c0_4, %c0_5, %c0_6] : memref<1x1x16xf32, #tpu.memory_space<vmem>>, vector<1x1x16xf32>
    %5 = vector.shape_cast %4 : vector<1x1x16xf32> to vector<1x16xf32>
    %6 = vector.broadcast %5 : vector<1x16xf32> to vector<16x16xf32>
    %7 = arith.addf %3, %6 : vector<16x16xf32>
    %cst_7 = arith.constant 0.000000e+00 : f32
    %8 = vector.broadcast %cst_7 : f32 to vector<16x16xf32>
    %9 = arith.maximumf %7, %8 : vector<16x16xf32>
    %10 = arith.truncf %9 : vector<16x16xf32> to vector<16x16xbf16>
    %c0_8 = arith.constant 0 : index
    %c0_9 = arith.constant 0 : index
    %c0_10 = arith.constant 0 : index
    %11 = vector.load %arg5[%c0_8, %c0_9, %c0_10] : memref<1x16x32xbf16, #tpu.memory_space<vmem>>, vector<1x16x32xbf16>
    %12 = vector.shape_cast %11 : vector<1x16x32xbf16> to vector<16x32xbf16>
    %cst_11 = arith.constant dense<0.000000e+00> : vector<16x32xf32>
    %13 = tpu.matmul %10, %12, %cst_11 {dimension_numbers = #tpu.dot_dimension_numbers<[1], [0], [0], [1], [0, 0, 1, 1], [], []>} : vector<16x16xbf16>, vector<16x32xbf16>, vector<16x32xf32> -> vector<16x32xf32>
    %c0_12 = arith.constant 0 : index
    %c0_13 = arith.constant 0 : index
    %c0_14 = arith.constant 0 : index
    %14 = vector.load %arg6[%c0_12, %c0_13, %c0_14] : memref<1x1x32xf32, #tpu.memory_space<vmem>>, vector<1x1x32xf32>
    %15 = vector.shape_cast %14 : vector<1x1x32xf32> to vector<1x32xf32>
    %16 = vector.broadcast %15 : vector<1x32xf32> to vector<16x32xf32>
    %17 = arith.addf %13, %16 : vector<16x32xf32>
    %cst_15 = arith.constant 0.000000e+00 : f32
    %18 = vector.broadcast %cst_15 : f32 to vector<16x32xf32>
    %19 = arith.maximumf %17, %18 : vector<16x32xf32>
    %cst_16 = arith.constant dense<0.000000e+00> : vector<16xf32>
    %20 = vector.multi_reduction <add>, %19, %cst_16 [1] : vector<16x32xf32> to vector<16xf32>
    %21 = vector.shape_cast %20 : vector<16xf32> to vector<16x1xf32>
    %cst_17 = arith.constant 3.200000e+01 : f32
    %22 = vector.broadcast %cst_17 : f32 to vector<16x1xf32>
    %23 = arith.divf %21, %22 : vector<16x1xf32>
    %24 = vector.broadcast %23 : vector<16x1xf32> to vector<16x32xf32>
    %25 = arith.subf %19, %24 : vector<16x32xf32>
    %26 = arith.mulf %25, %25 : vector<16x32xf32>
    %cst_18 = arith.constant dense<0.000000e+00> : vector<16xf32>
    %27 = vector.multi_reduction <add>, %26, %cst_18 [1] : vector<16x32xf32> to vector<16xf32>
    %28 = vector.shape_cast %27 : vector<16xf32> to vector<16x1xf32>
    %cst_19 = arith.constant 3.200000e+01 : f32
    %29 = vector.broadcast %cst_19 : f32 to vector<16x1xf32>
    %30 = arith.divf %28, %29 : vector<16x1xf32>
    %cst_20 = arith.constant 9.99999974E-6 : f32
    %31 = vector.broadcast %cst_20 : f32 to vector<16x1xf32>
    %32 = arith.addf %30, %31 : vector<16x1xf32>
    %33 = math.rsqrt %32 : vector<16x1xf32>
    %34 = vector.broadcast %33 : vector<16x1xf32> to vector<16x32xf32>
    %35 = arith.mulf %25, %34 : vector<16x32xf32>
    %c0_21 = arith.constant 0 : index
    %c0_22 = arith.constant 0 : index
    %c0_23 = arith.constant 0 : index
    %36 = vector.load %arg7[%c0_21, %c0_22, %c0_23] : memref<1x1x32xf32, #tpu.memory_space<vmem>>, vector<1x1x32xf32>
    %37 = vector.shape_cast %36 : vector<1x1x32xf32> to vector<1x32xf32>
    %38 = vector.broadcast %37 : vector<1x32xf32> to vector<16x32xf32>
    %39 = arith.mulf %35, %38 : vector<16x32xf32>
    %c0_24 = arith.constant 0 : index
    %c0_25 = arith.constant 0 : index
    %c0_26 = arith.constant 0 : index
    %40 = vector.load %arg8[%c0_24, %c0_25, %c0_26] : memref<1x1x32xf32, #tpu.memory_space<vmem>>, vector<1x1x32xf32>
    %41 = vector.shape_cast %40 : vector<1x1x32xf32> to vector<1x32xf32>
    %42 = vector.broadcast %41 : vector<1x32xf32> to vector<16x32xf32>
    %43 = arith.addf %39, %42 : vector<16x32xf32>
    %44 = arith.truncf %43 : vector<16x32xf32> to vector<16x32xbf16>
    %c0_27 = arith.constant 0 : index
    %c0_28 = arith.constant 0 : index
    %c0_29 = arith.constant 0 : index
    %45 = vector.load %arg9[%c0_27, %c0_28, %c0_29] : memref<1x32x64xbf16, #tpu.memory_space<vmem>>, vector<1x32x64xbf16>
    %46 = vector.shape_cast %45 : vector<1x32x64xbf16> to vector<32x64xbf16>
    %cst_30 = arith.constant dense<0.000000e+00> : vector<16x64xf32>
    %47 = tpu.matmul %44, %46, %cst_30 {dimension_numbers = #tpu.dot_dimension_numbers<[1], [0], [0], [1], [0, 0, 1, 1], [], []>} : vector<16x32xbf16>, vector<32x64xbf16>, vector<16x64xf32> -> vector<16x64xf32>
    %c0_31 = arith.constant 0 : index
    %c0_32 = arith.constant 0 : index
    %c0_33 = arith.constant 0 : index
    %48 = vector.load %arg10[%c0_31, %c0_32, %c0_33] : memref<1x1x64xf32, #tpu.memory_space<vmem>>, vector<1x1x64xf32>
    %49 = vector.shape_cast %48 : vector<1x1x64xf32> to vector<1x64xf32>
    %50 = vector.broadcast %49 : vector<1x64xf32> to vector<16x64xf32>
    %51 = arith.addf %47, %50 : vector<16x64xf32>
    %cst_34 = arith.constant 0.000000e+00 : f32
    %52 = vector.broadcast %cst_34 : f32 to vector<16x64xf32>
    %53 = arith.maximumf %51, %52 : vector<16x64xf32>
    %cst_35 = arith.constant dense<0.000000e+00> : vector<16xf32>
    %54 = vector.multi_reduction <add>, %53, %cst_35 [1] : vector<16x64xf32> to vector<16xf32>
    %55 = vector.shape_cast %54 : vector<16xf32> to vector<16x1xf32>
    %cst_36 = arith.constant 6.400000e+01 : f32
    %56 = vector.broadcast %cst_36 : f32 to vector<16x1xf32>
    %57 = arith.divf %55, %56 : vector<16x1xf32>
    %58 = vector.broadcast %57 : vector<16x1xf32> to vector<16x64xf32>
    %59 = arith.subf %53, %58 : vector<16x64xf32>
    %60 = arith.mulf %59, %59 : vector<16x64xf32>
    %cst_37 = arith.constant dense<0.000000e+00> : vector<16xf32>
    %61 = vector.multi_reduction <add>, %60, %cst_37 [1] : vector<16x64xf32> to vector<16xf32>
    %62 = vector.shape_cast %61 : vector<16xf32> to vector<16x1xf32>
    %cst_38 = arith.constant 6.400000e+01 : f32
    %63 = vector.broadcast %cst_38 : f32 to vector<16x1xf32>
    %64 = arith.divf %62, %63 : vector<16x1xf32>
    %cst_39 = arith.constant 9.99999974E-6 : f32
    %65 = vector.broadcast %cst_39 : f32 to vector<16x1xf32>
    %66 = arith.addf %64, %65 : vector<16x1xf32>
    %67 = math.rsqrt %66 : vector<16x1xf32>
    %68 = vector.broadcast %67 : vector<16x1xf32> to vector<16x64xf32>
    %69 = arith.mulf %59, %68 : vector<16x64xf32>
    %c0_40 = arith.constant 0 : index
    %c0_41 = arith.constant 0 : index
    %c0_42 = arith.constant 0 : index
    %70 = vector.load %arg11[%c0_40, %c0_41, %c0_42] : memref<1x1x64xf32, #tpu.memory_space<vmem>>, vector<1x1x64xf32>
    %71 = vector.shape_cast %70 : vector<1x1x64xf32> to vector<1x64xf32>
    %72 = vector.broadcast %71 : vector<1x64xf32> to vector<16x64xf32>
    %73 = arith.mulf %69, %72 : vector<16x64xf32>
    %c0_43 = arith.constant 0 : index
    %c0_44 = arith.constant 0 : index
    %c0_45 = arith.constant 0 : index
    %74 = vector.load %arg12[%c0_43, %c0_44, %c0_45] : memref<1x1x64xf32, #tpu.memory_space<vmem>>, vector<1x1x64xf32>
    %75 = vector.shape_cast %74 : vector<1x1x64xf32> to vector<1x64xf32>
    %76 = vector.broadcast %75 : vector<1x64xf32> to vector<16x64xf32>
    %77 = arith.addf %73, %76 : vector<16x64xf32>
    %78 = arith.truncf %77 : vector<16x64xf32> to vector<16x64xbf16>
    %c0_46 = arith.constant 0 : index
    %c0_47 = arith.constant 0 : index
    %c0_48 = arith.constant 0 : index
    %79 = vector.load %arg13[%c0_46, %c0_47, %c0_48] : memref<1x64x128xbf16, #tpu.memory_space<vmem>>, vector<1x64x128xbf16>
    %80 = vector.shape_cast %79 : vector<1x64x128xbf16> to vector<64x128xbf16>
    %cst_49 = arith.constant dense<0.000000e+00> : vector<16x128xf32>
    %81 = tpu.matmul %78, %80, %cst_49 {dimension_numbers = #tpu.dot_dimension_numbers<[1], [0], [0], [1], [0, 0, 1, 1], [], []>} : vector<16x64xbf16>, vector<64x128xbf16>, vector<16x128xf32> -> vector<16x128xf32>
    %c0_50 = arith.constant 0 : index
    %c0_51 = arith.constant 0 : index
    %c0_52 = arith.constant 0 : index
    %82 = vector.load %arg14[%c0_50, %c0_51, %c0_52] : memref<1x1x128xf32, #tpu.memory_space<vmem>>, vector<1x1x128xf32>
    %83 = vector.shape_cast %82 : vector<1x1x128xf32> to vector<1x128xf32>
    %84 = vector.broadcast %83 : vector<1x128xf32> to vector<16x128xf32>
    %85 = arith.addf %81, %84 : vector<16x128xf32>
    %86 = vector.shape_cast %85 : vector<16x128xf32> to vector<1x16x128xf32>
    %c0_53 = arith.constant 0 : index
    %c0_54 = arith.constant 0 : index
    %c0_55 = arith.constant 0 : index
    %87 = vector.load %arg15[%c0_53, %c0_54, %c0_55] : memref<1x16x128xf32, #tpu.memory_space<vmem>>, vector<1x16x128xf32>
    tpu.vector_store %arg15[%c0_53, %c0_54, %c0_55], %86 {strides = array<i32>} : memref<1x16x128xf32, #tpu.memory_space<vmem>>, vector<1x16x128xf32>,
    return
  }
  func.func @transform_0(%arg0: i32, %arg1: i32) -> (i32, i32) {
    %c0_i32 = arith.constant 0 : i32
    %c0_i32_0 = arith.constant 0 : i32
    return %arg1, %c0_i32 : i32, i32
  }
  func.func @transform_1(%arg0: i32, %arg1: i32) -> (i32, i32, i32) {
    %c0_i32 = arith.constant 0 : i32
    %c0_i32_0 = arith.constant 0 : i32
    %c0_i32_1 = arith.constant 0 : i32
    return %arg0, %c0_i32, %c0_i32_0 : i32, i32, i32
  }
  func.func @transform_2(%arg0: i32, %arg1: i32) -> (i32, i32, i32) {
    %c0_i32 = arith.constant 0 : i32
    %c0_i32_0 = arith.constant 0 : i32
    %c0_i32_1 = arith.constant 0 : i32
    return %arg0, %c0_i32, %c0_i32_0 : i32, i32, i32
  }
  func.func @transform_3(%arg0: i32, %arg1: i32) -> (i32, i32, i32) {
    %c0_i32 = arith.constant 0 : i32
    %c0_i32_0 = arith.constant 0 : i32
    %c0_i32_1 = arith.constant 0 : i32
    return %arg0, %c0_i32, %c0_i32_0 : i32, i32, i32
  }
  func.func @transform_4(%arg0: i32, %arg1: i32) -> (i32, i32, i32) {
    %c0_i32 = arith.constant 0 : i32
    %c0_i32_0 = arith.constant 0 : i32
    %c0_i32_1 = arith.constant 0 : i32
    return %arg0, %c0_i32, %c0_i32_0 : i32, i32, i32
  }
  func.func @transform_5(%arg0: i32, %arg1: i32) -> (i32, i32, i32) {
    %c0_i32 = arith.constant 0 : i32
    %c0_i32_0 = arith.constant 0 : i32
    %c0_i32_1 = arith.constant 0 : i32
    return %arg0, %c0_i32, %c0_i32_0 : i32, i32, i32
  }
  func.func @transform_6(%arg0: i32, %arg1: i32) -> (i32, i32, i32) {
    %c0_i32 = arith.constant 0 : i32
    %c0_i32_0 = arith.constant 0 : i32
    %c0_i32_1 = arith.constant 0 : i32
    return %arg0, %c0_i32, %c0_i32_0 : i32, i32, i32
  }
  func.func @transform_7(%arg0: i32, %arg1: i32) -> (i32, i32, i32) {
    %c0_i32 = arith.constant 0 : i32
    %c0_i32_0 = arith.constant 0 : i32
    %c0_i32_1 = arith.constant 0 : i32
    return %arg0, %c0_i32, %c0_i32_0 : i32, i32, i32
  }
  func.func @transform_8(%arg0: i32, %arg1: i32) -> (i32, i32, i32) {
    %c0_i32 = arith.constant 0 : i32
    %c0_i32_0 = arith.constant 0 : i32
    %c0_i32_1 = arith.constant 0 : i32
    return %arg0, %c0_i32, %c0_i32_0 : i32, i32, i32
  }
  func.func @transform_9(%arg0: i32, %arg1: i32) -> (i32, i32, i32) {
    %c0_i32 = arith.constant 0 : i32
    %c0_i32_0 = arith.constant 0 : i32
    %c0_i32_1 = arith.constant 0 : i32
    return %arg0, %c0_i32, %c0_i32_0 : i32, i32, i32
  }
  func.func @transform_10(%arg0: i32, %arg1: i32) -> (i32, i32, i32) {
    %c0_i32 = arith.constant 0 : i32
    %c0_i32_0 = arith.constant 0 : i32
    %c0_i32_1 = arith.constant 0 : i32
    return %arg0, %c0_i32, %c0_i32_0 : i32, i32, i32
  }
  func.func @transform_11(%arg0: i32, %arg1: i32) -> (i32, i32, i32) {
    %c0_i32 = arith.constant 0 : i32
    %c0_i32_0 = arith.constant 0 : i32
    %c0_i32_1 = arith.constant 0 : i32
    return %arg0, %c0_i32, %c0_i32_0 : i32, i32, i32
  }
  func.func @transform_12(%arg0: i32, %arg1: i32) -> (i32, i32, i32) {
    %c0_i32 = arith.constant 0 : i32
    %c0_i32_0 = arith.constant 0 : i32
    %c0_i32_1 = arith.constant 0 : i32
    return %arg0, %c0_i32, %c0_i32_0 : i32, i32, i32
  }
  func.func @transform_13(%arg0: i32, %arg1: i32) -> (i32, i32, i32) {
    %c0_i32 = arith.constant 0 : i32
    %c0_i32_0 = arith.constant 0 : i32
    return %arg0, %arg1, %c0_i32 : i32, i32, i32
  }
}

module attributes {stable_mosaic.version = 11 : i64} {
  func.func @_mamba_fused_kernel(%arg0: i32, %arg1: memref<1x8x32xbf16, #tpu.memory_space<vmem>>, %arg2: memref<32x128xbf16, #tpu.memory_space<vmem>>, %arg3: memref<1x128xf32, #tpu.memory_space<vmem>>, %arg4: memref<4x64xf32, #tpu.memory_space<vmem>>, %arg5: memref<1x64xf32, #tpu.memory_space<vmem>>, %arg6: memref<64x128xbf16, #tpu.memory_space<vmem>>, %arg7: memref<1x128xf32, #tpu.memory_space<vmem>>, %arg8: memref<128x64xbf16, #tpu.memory_space<vmem>>, %arg9: memref<1x64xf32, #tpu.memory_space<vmem>>, %arg10: memref<8x64xf32, #tpu.memory_space<vmem>>, %arg11: memref<1x64xf32, #tpu.memory_space<vmem>>, %arg12: memref<64x32xbf16, #tpu.memory_space<vmem>>, %arg13: memref<1x32xf32, #tpu.memory_space<vmem>>, %arg14: memref<1x8x32xbf16, #tpu.memory_space<vmem>>, %arg15: memref<8x64xf32, #tpu.memory_space<vmem>>, %arg16: memref<8x64xf32, #tpu.memory_space<vmem>>, %arg17: memref<8x8x1xf32, #tpu.memory_space<vmem>>, %arg18: memref<8x8x1xf32, #tpu.memory_space<vmem>>, %arg19: memref<8x64xf32, #tpu.memory_space<vmem>>, %arg20: memref<8x64xf32, #tpu.memory_space<vmem>>) attributes {dimension_semantics = [#tpu.dimension_semantics<parallel>], iteration_bounds = array<i64: 2>, scalar_prefetch = 0 : i64, scratch_operands = 6 : i64, tpu.core_type = #tpu.core_type<tc>, window_params = [{transform_indices = @transform_0, window_bounds = array<i64: 1, 8, 32>}, {pipeline_mode = #tpu.pipeline_mode<synchronous>, transform_indices = @transform_1, window_bounds = array<i64: 32, 128>}, {pipeline_mode = #tpu.pipeline_mode<synchronous>, transform_indices = @transform_2, window_bounds = array<i64: 1, 128>}, {pipeline_mode = #tpu.pipeline_mode<synchronous>, transform_indices = @transform_3, window_bounds = array<i64: 4, 64>}, {pipeline_mode = #tpu.pipeline_mode<synchronous>, transform_indices = @transform_4, window_bounds = array<i64: 1, 64>}, {pipeline_mode = #tpu.pipeline_mode<synchronous>, transform_indices = @transform_5, window_bounds = array<i64: 64, 128>}, {pipeline_mode = #tpu.pipeline_mode<synchronous>, transform_indices = @transform_6, window_bounds = array<i64: 1, 128>}, {pipeline_mode = #tpu.pipeline_mode<synchronous>, transform_indices = @transform_7, window_bounds = array<i64: 128, 64>}, {pipeline_mode = #tpu.pipeline_mode<synchronous>, transform_indices = @transform_8, window_bounds = array<i64: 1, 64>}, {pipeline_mode = #tpu.pipeline_mode<synchronous>, transform_indices = @transform_9, window_bounds = array<i64: 8, 64>}, {pipeline_mode = #tpu.pipeline_mode<synchronous>, transform_indices = @transform_10, window_bounds = array<i64: 1, 64>}, {pipeline_mode = #tpu.pipeline_mode<synchronous>, transform_indices = @transform_11, window_bounds = array<i64: 64, 32>}, {pipeline_mode = #tpu.pipeline_mode<synchronous>, transform_indices = @transform_12, window_bounds = array<i64: 1, 32>}, {transform_indices = @transform_13, window_bounds = array<i64: 1, 8, 32>}]} {
    %c0 = arith.constant 0 : index
    %c0_0 = arith.constant 0 : index
    %c0_1 = arith.constant 0 : index
    %0 = vector.load %arg1[%c0, %c0_0, %c0_1] : memref<1x8x32xbf16, #tpu.memory_space<vmem>>, vector<1x8x32xbf16>
    %1 = vector.shape_cast %0 : vector<1x8x32xbf16> to vector<8x32xbf16>
    %c0_2 = arith.constant 0 : index
    %c0_3 = arith.constant 0 : index
    %2 = vector.load %arg2[%c0_2, %c0_3] : memref<32x128xbf16, #tpu.memory_space<vmem>>, vector<32x128xbf16>
    %cst = arith.constant dense<0.000000e+00> : vector<8x128xf32>
    %3 = tpu.matmul %1, %2, %cst {dimension_numbers = #tpu.dot_dimension_numbers<[1], [0], [0], [1], [0, 0, 1, 1], [], []>} : vector<8x32xbf16>, vector<32x128xbf16>, vector<8x128xf32> -> vector<8x128xf32>
    %c0_4 = arith.constant 0 : index
    %c0_5 = arith.constant 0 : index
    %4 = vector.load %arg3[%c0_4, %c0_5] : memref<1x128xf32, #tpu.memory_space<vmem>>, vector<1x128xf32>
    %5 = vector.broadcast %4 : vector<1x128xf32> to vector<8x128xf32>
    %6 = arith.addf %3, %5 : vector<8x128xf32>
    %7 = vector.extract_strided_slice %6 {offsets = [0, 0], sizes = [8, 64], strides = [1, 1]} : vector<8x128xf32> to vector<8x64xf32>
    %8 = vector.extract_strided_slice %6 {offsets = [0, 64], sizes = [8, 64], strides = [1, 1]} : vector<8x128xf32> to vector<8x64xf32>
    %cst_6 = arith.constant 0.000000e+00 : f32
    %9 = vector.broadcast %cst_6 : f32 to vector<3x64xf32>
    %10 = tpu.concatenate %9, %7 in 0 : vector<3x64xf32>, vector<8x64xf32> -> vector<11x64xf32>
    %c0_7 = arith.constant 0 : index
    %c0_8 = arith.constant 0 : index
    %11 = vector.load %arg5[%c0_7, %c0_8] : memref<1x64xf32, #tpu.memory_space<vmem>>, vector<1x64xf32>
    %c3 = arith.constant 3 : index
    %c0_9 = arith.constant 0 : index
    %12 = vector.load %arg4[%c3, %c0_9] : memref<4x64xf32, #tpu.memory_space<vmem>>, vector<1x64xf32>
    %13 = vector.broadcast %12 : vector<1x64xf32> to vector<8x64xf32>
    %14 = arith.mulf %7, %13 : vector<8x64xf32>
    %15 = vector.broadcast %11 : vector<1x64xf32> to vector<8x64xf32>
    %16 = arith.addf %15, %14 : vector<8x64xf32>
    %17 = vector.extract_strided_slice %10 {offsets = [0, 0], sizes = [8, 64], strides = [1, 1]} : vector<11x64xf32> to vector<8x64xf32>
    %c0_10 = arith.constant 0 : index
    %c0_11 = arith.constant 0 : index
    %18 = vector.load %arg4[%c0_10, %c0_11] : memref<4x64xf32, #tpu.memory_space<vmem>>, vector<1x64xf32>
    %19 = vector.broadcast %18 : vector<1x64xf32> to vector<8x64xf32>
    %20 = arith.mulf %17, %19 : vector<8x64xf32>
    %21 = arith.addf %16, %20 : vector<8x64xf32>
    %22 = vector.extract_strided_slice %10 {offsets = [1, 0], sizes = [8, 64], strides = [1, 1]} : vector<11x64xf32> to vector<8x64xf32>
    %c1 = arith.constant 1 : index
    %c0_12 = arith.constant 0 : index
    %23 = vector.load %arg4[%c1, %c0_12] : memref<4x64xf32, #tpu.memory_space<vmem>>, vector<1x64xf32>
    %24 = vector.broadcast %23 : vector<1x64xf32> to vector<8x64xf32>
    %25 = arith.mulf %22, %24 : vector<8x64xf32>
    %26 = arith.addf %21, %25 : vector<8x64xf32>
    %27 = vector.extract_strided_slice %10 {offsets = [2, 0], sizes = [8, 64], strides = [1, 1]} : vector<11x64xf32> to vector<8x64xf32>
    %c2 = arith.constant 2 : index
    %c0_13 = arith.constant 0 : index
    %28 = vector.load %arg4[%c2, %c0_13] : memref<4x64xf32, #tpu.memory_space<vmem>>, vector<1x64xf32>
    %29 = vector.broadcast %28 : vector<1x64xf32> to vector<8x64xf32>
    %30 = arith.mulf %27, %29 : vector<8x64xf32>
    %31 = arith.addf %26, %30 : vector<8x64xf32>
    %32 = arith.negf %31 : vector<8x64xf32>
    %33 = math.exp %32 : vector<8x64xf32>
    %cst_14 = arith.constant 1.000000e+00 : f32
    %34 = vector.broadcast %cst_14 : f32 to vector<8x64xf32>
    %35 = arith.addf %34, %33 : vector<8x64xf32>
    %36 = arith.divf %34, %35 : vector<8x64xf32>
    %37 = arith.mulf %31, %36 : vector<8x64xf32>
    %38 = arith.truncf %37 : vector<8x64xf32> to vector<8x64xbf16>
    %c0_15 = arith.constant 0 : index
    %c0_16 = arith.constant 0 : index
    %39 = vector.load %arg6[%c0_15, %c0_16] : memref<64x128xbf16, #tpu.memory_space<vmem>>, vector<64x128xbf16>
    %cst_17 = arith.constant dense<0.000000e+00> : vector<8x128xf32>
    %40 = tpu.matmul %38, %39, %cst_17 {dimension_numbers = #tpu.dot_dimension_numbers<[1], [0], [0], [1], [0, 0, 1, 1], [], []>} : vector<8x64xbf16>, vector<64x128xbf16>, vector<8x128xf32> -> vector<8x128xf32>
    %c0_18 = arith.constant 0 : index
    %c0_19 = arith.constant 0 : index
    %41 = vector.load %arg7[%c0_18, %c0_19] : memref<1x128xf32, #tpu.memory_space<vmem>>, vector<1x128xf32>
    %42 = vector.broadcast %41 : vector<1x128xf32> to vector<8x128xf32>
    %43 = arith.addf %40, %42 : vector<8x128xf32>
    %44 = vector.extract_strided_slice %43 {offsets = [0, 2], sizes = [8, 8], strides = [1, 1]} : vector<8x128xf32> to vector<8x8xf32>
    %45 = vector.extract_strided_slice %43 {offsets = [0, 10], sizes = [8, 8], strides = [1, 1]} : vector<8x128xf32> to vector<8x8xf32>
    %46 = arith.truncf %43 : vector<8x128xf32> to vector<8x128xbf16>
    %c0_20 = arith.constant 0 : index
    %c0_21 = arith.constant 0 : index
    %47 = vector.load %arg8[%c0_20, %c0_21] : memref<128x64xbf16, #tpu.memory_space<vmem>>, vector<128x64xbf16>
    %cst_22 = arith.constant dense<0.000000e+00> : vector<8x64xf32>
    %48 = tpu.matmul %46, %47, %cst_22 {dimension_numbers = #tpu.dot_dimension_numbers<[1], [0], [0], [1], [0, 0, 1, 1], [], []>} : vector<8x128xbf16>, vector<128x64xbf16>, vector<8x64xf32> -> vector<8x64xf32>
    %c0_23 = arith.constant 0 : index
    %c0_24 = arith.constant 0 : index
    %49 = vector.load %arg9[%c0_23, %c0_24] : memref<1x64xf32, #tpu.memory_space<vmem>>, vector<1x64xf32>
    %50 = vector.broadcast %49 : vector<1x64xf32> to vector<8x64xf32>
    %51 = arith.addf %48, %50 : vector<8x64xf32>
    %cst_25 = arith.constant 0.000000e+00 : f32
    %52 = vector.broadcast %cst_25 : f32 to vector<8x64xf32>
    %53 = arith.maximumf %51, %52 : vector<8x64xf32>
    %54 = math.absf %51 : vector<8x64xf32>
    %cst_26 = arith.constant 0.000000e+00 : f32
    %55 = vector.broadcast %cst_26 : f32 to vector<8x64xf32>
    %56 = arith.subf %55, %54 : vector<8x64xf32>
    %57 = math.exp %56 : vector<8x64xf32>
    %58 = math.log1p %57 : vector<8x64xf32>
    %59 = arith.addf %53, %58 : vector<8x64xf32>
    %c0_27 = arith.constant 0 : index
    %c0_28 = arith.constant 0 : index
    %60 = vector.load %arg15[%c0_27, %c0_28] : memref<8x64xf32, #tpu.memory_space<vmem>>, vector<8x64xf32>
    tpu.vector_store %arg15[%c0_27, %c0_28], %37 {strides = array<i32>} : memref<8x64xf32, #tpu.memory_space<vmem>>, vector<8x64xf32>,
    %c0_29 = arith.constant 0 : index
    %c0_30 = arith.constant 0 : index
    %61 = vector.load %arg16[%c0_29, %c0_30] : memref<8x64xf32, #tpu.memory_space<vmem>>, vector<8x64xf32>
    tpu.vector_store %arg16[%c0_29, %c0_30], %59 {strides = array<i32>} : memref<8x64xf32, #tpu.memory_space<vmem>>, vector<8x64xf32>,
    %62 = vector.shape_cast %44 : vector<8x8xf32> to vector<8x8x1xf32>
    %c0_31 = arith.constant 0 : index
    %c0_32 = arith.constant 0 : index
    %c0_33 = arith.constant 0 : index
    %63 = vector.load %arg17[%c0_31, %c0_32, %c0_33] : memref<8x8x1xf32, #tpu.memory_space<vmem>>, vector<8x8x1xf32>
    tpu.vector_store %arg17[%c0_31, %c0_32, %c0_33], %62 {strides = array<i32>} : memref<8x8x1xf32, #tpu.memory_space<vmem>>, vector<8x8x1xf32>,
    %64 = vector.shape_cast %45 : vector<8x8xf32> to vector<8x8x1xf32>
    %c0_34 = arith.constant 0 : index
    %c0_35 = arith.constant 0 : index
    %c0_36 = arith.constant 0 : index
    %65 = vector.load %arg18[%c0_34, %c0_35, %c0_36] : memref<8x8x1xf32, #tpu.memory_space<vmem>>, vector<8x8x1xf32>
    tpu.vector_store %arg18[%c0_34, %c0_35, %c0_36], %64 {strides = array<i32>} : memref<8x8x1xf32, #tpu.memory_space<vmem>>, vector<8x8x1xf32>,
    %cst_37 = arith.constant 0.000000e+00 : f32
    %66 = vector.broadcast %cst_37 : f32 to vector<8x64xf32>
    %c0_38 = arith.constant 0 : index
    %c0_39 = arith.constant 0 : index
    %67 = vector.load %arg20[%c0_38, %c0_39] : memref<8x64xf32, #tpu.memory_space<vmem>>, vector<8x64xf32>
    tpu.vector_store %arg20[%c0_38, %c0_39], %66 {strides = array<i32>} : memref<8x64xf32, #tpu.memory_space<vmem>>, vector<8x64xf32>,
    %c0_40 = arith.constant 0 : index
    %c0_41 = arith.constant 0 : index
    %68 = vector.load %arg10[%c0_40, %c0_41] : memref<8x64xf32, #tpu.memory_space<vmem>>, vector<8x64xf32>
    %c0_i32 = arith.constant 0 : i32
    %69 = arith.index_cast %c0_i32 : i32 to index
    %c0_42 = arith.constant 0 : index
    %70 = vector.load %arg16[%69, %c0_42] : memref<8x64xf32, #tpu.memory_space<vmem>>, vector<1x64xf32>
    %71 = arith.index_cast %c0_i32 : i32 to index
    %c0_43 = arith.constant 0 : index
    %72 = vector.load %arg15[%71, %c0_43] : memref<8x64xf32, #tpu.memory_space<vmem>>, vector<1x64xf32>
    %73 = vector.broadcast %70 : vector<1x64xf32> to vector<8x64xf32>
    %74 = arith.mulf %73, %68 : vector<8x64xf32>
    %75 = math.exp %74 : vector<8x64xf32>
    %76 = arith.mulf %70, %72 : vector<1x64xf32>
    %77 = arith.index_cast %c0_i32 : i32 to index
    %c0_44 = arith.constant 0 : index
    %c0_45 = arith.constant 0 : index
    %78 = vector.load %arg17[%77, %c0_44, %c0_45] : memref<8x8x1xf32, #tpu.memory_space<vmem>>, vector<1x8x1xf32>
    %79 = vector.shape_cast %78 : vector<1x8x1xf32> to vector<8x1xf32>
    %80 = vector.broadcast %76 : vector<1x64xf32> to vector<8x64xf32>
    %81 = vector.broadcast %79 : vector<8x1xf32> to vector<8x64xf32>
    %82 = arith.mulf %80, %81 : vector<8x64xf32>
    %c0_46 = arith.constant 0 : index
    %c0_47 = arith.constant 0 : index
    %83 = vector.load %arg20[%c0_46, %c0_47] : memref<8x64xf32, #tpu.memory_space<vmem>>, vector<8x64xf32>
    %84 = arith.mulf %75, %83 : vector<8x64xf32>
    %85 = arith.addf %84, %82 : vector<8x64xf32>
    %c0_48 = arith.constant 0 : index
    %c0_49 = arith.constant 0 : index
    %86 = vector.load %arg20[%c0_48, %c0_49] : memref<8x64xf32, #tpu.memory_space<vmem>>, vector<8x64xf32>
    tpu.vector_store %arg20[%c0_48, %c0_49], %85 {strides = array<i32>} : memref<8x64xf32, #tpu.memory_space<vmem>>, vector<8x64xf32>,
    %87 = arith.index_cast %c0_i32 : i32 to index
    %c0_50 = arith.constant 0 : index
    %c0_51 = arith.constant 0 : index
    %88 = vector.load %arg18[%87, %c0_50, %c0_51] : memref<8x8x1xf32, #tpu.memory_space<vmem>>, vector<1x8x1xf32>
    %89 = vector.shape_cast %88 : vector<1x8x1xf32> to vector<8x1xf32>
    %90 = vector.broadcast %89 : vector<8x1xf32> to vector<8x64xf32>
    %91 = arith.mulf %85, %90 : vector<8x64xf32>
    %cst_52 = arith.constant dense<0.000000e+00> : vector<64xf32>
    %92 = vector.multi_reduction <add>, %91, %cst_52 [0] : vector<8x64xf32> to vector<64xf32>
    %93 = vector.shape_cast %92 : vector<64xf32> to vector<1x64xf32>
    %94 = arith.index_cast %c0_i32 : i32 to index
    %c0_53 = arith.constant 0 : index
    %95 = vector.load %arg19[%94, %c0_53] : memref<8x64xf32, #tpu.memory_space<vmem>>, vector<1x64xf32>
    tpu.vector_store %arg19[%94, %c0_53], %93 {strides = array<i32>} : memref<8x64xf32, #tpu.memory_space<vmem>>, vector<1x64xf32>,
    %c1_i32 = arith.constant 1 : i32
    %96 = arith.index_cast %c1_i32 : i32 to index
    %c0_54 = arith.constant 0 : index
    %97 = vector.load %arg16[%96, %c0_54] : memref<8x64xf32, #tpu.memory_space<vmem>>, vector<1x64xf32>
    %98 = arith.index_cast %c1_i32 : i32 to index
    %c0_55 = arith.constant 0 : index
    %99 = vector.load %arg15[%98, %c0_55] : memref<8x64xf32, #tpu.memory_space<vmem>>, vector<1x64xf32>
    %100 = vector.broadcast %97 : vector<1x64xf32> to vector<8x64xf32>
    %101 = arith.mulf %100, %68 : vector<8x64xf32>
    %102 = math.exp %101 : vector<8x64xf32>
    %103 = arith.mulf %97, %99 : vector<1x64xf32>
    %104 = arith.index_cast %c1_i32 : i32 to index
    %c0_56 = arith.constant 0 : index
    %c0_57 = arith.constant 0 : index
    %105 = vector.load %arg17[%104, %c0_56, %c0_57] : memref<8x8x1xf32, #tpu.memory_space<vmem>>, vector<1x8x1xf32>
    %106 = vector.shape_cast %105 : vector<1x8x1xf32> to vector<8x1xf32>
    %107 = vector.broadcast %103 : vector<1x64xf32> to vector<8x64xf32>
    %108 = vector.broadcast %106 : vector<8x1xf32> to vector<8x64xf32>
    %109 = arith.mulf %107, %108 : vector<8x64xf32>
    %c0_58 = arith.constant 0 : index
    %c0_59 = arith.constant 0 : index
    %110 = vector.load %arg20[%c0_58, %c0_59] : memref<8x64xf32, #tpu.memory_space<vmem>>, vector<8x64xf32>
    %111 = arith.mulf %102, %110 : vector<8x64xf32>
    %112 = arith.addf %111, %109 : vector<8x64xf32>
    %c0_60 = arith.constant 0 : index
    %c0_61 = arith.constant 0 : index
    %113 = vector.load %arg20[%c0_60, %c0_61] : memref<8x64xf32, #tpu.memory_space<vmem>>, vector<8x64xf32>
    tpu.vector_store %arg20[%c0_60, %c0_61], %112 {strides = array<i32>} : memref<8x64xf32, #tpu.memory_space<vmem>>, vector<8x64xf32>,
    %114 = arith.index_cast %c1_i32 : i32 to index
    %c0_62 = arith.constant 0 : index
    %c0_63 = arith.constant 0 : index
    %115 = vector.load %arg18[%114, %c0_62, %c0_63] : memref<8x8x1xf32, #tpu.memory_space<vmem>>, vector<1x8x1xf32>
    %116 = vector.shape_cast %115 : vector<1x8x1xf32> to vector<8x1xf32>
    %117 = vector.broadcast %116 : vector<8x1xf32> to vector<8x64xf32>
    %118 = arith.mulf %112, %117 : vector<8x64xf32>
    %cst_64 = arith.constant dense<0.000000e+00> : vector<64xf32>
    %119 = vector.multi_reduction <add>, %118, %cst_64 [0] : vector<8x64xf32> to vector<64xf32>
    %120 = vector.shape_cast %119 : vector<64xf32> to vector<1x64xf32>
    %121 = arith.index_cast %c1_i32 : i32 to index
    %c0_65 = arith.constant 0 : index
    %122 = vector.load %arg19[%121, %c0_65] : memref<8x64xf32, #tpu.memory_space<vmem>>, vector<1x64xf32>
    tpu.vector_store %arg19[%121, %c0_65], %120 {strides = array<i32>} : memref<8x64xf32, #tpu.memory_space<vmem>>, vector<1x64xf32>,
    %c2_i32 = arith.constant 2 : i32
    %123 = arith.index_cast %c2_i32 : i32 to index
    %c0_66 = arith.constant 0 : index
    %124 = vector.load %arg16[%123, %c0_66] : memref<8x64xf32, #tpu.memory_space<vmem>>, vector<1x64xf32>
    %125 = arith.index_cast %c2_i32 : i32 to index
    %c0_67 = arith.constant 0 : index
    %126 = vector.load %arg15[%125, %c0_67] : memref<8x64xf32, #tpu.memory_space<vmem>>, vector<1x64xf32>
    %127 = vector.broadcast %124 : vector<1x64xf32> to vector<8x64xf32>
    %128 = arith.mulf %127, %68 : vector<8x64xf32>
    %129 = math.exp %128 : vector<8x64xf32>
    %130 = arith.mulf %124, %126 : vector<1x64xf32>
    %131 = arith.index_cast %c2_i32 : i32 to index
    %c0_68 = arith.constant 0 : index
    %c0_69 = arith.constant 0 : index
    %132 = vector.load %arg17[%131, %c0_68, %c0_69] : memref<8x8x1xf32, #tpu.memory_space<vmem>>, vector<1x8x1xf32>
    %133 = vector.shape_cast %132 : vector<1x8x1xf32> to vector<8x1xf32>
    %134 = vector.broadcast %130 : vector<1x64xf32> to vector<8x64xf32>
    %135 = vector.broadcast %133 : vector<8x1xf32> to vector<8x64xf32>
    %136 = arith.mulf %134, %135 : vector<8x64xf32>
    %c0_70 = arith.constant 0 : index
    %c0_71 = arith.constant 0 : index
    %137 = vector.load %arg20[%c0_70, %c0_71] : memref<8x64xf32, #tpu.memory_space<vmem>>, vector<8x64xf32>
    %138 = arith.mulf %129, %137 : vector<8x64xf32>
    %139 = arith.addf %138, %136 : vector<8x64xf32>
    %c0_72 = arith.constant 0 : index
    %c0_73 = arith.constant 0 : index
    %140 = vector.load %arg20[%c0_72, %c0_73] : memref<8x64xf32, #tpu.memory_space<vmem>>, vector<8x64xf32>
    tpu.vector_store %arg20[%c0_72, %c0_73], %139 {strides = array<i32>} : memref<8x64xf32, #tpu.memory_space<vmem>>, vector<8x64xf32>,
    %141 = arith.index_cast %c2_i32 : i32 to index
    %c0_74 = arith.constant 0 : index
    %c0_75 = arith.constant 0 : index
    %142 = vector.load %arg18[%141, %c0_74, %c0_75] : memref<8x8x1xf32, #tpu.memory_space<vmem>>, vector<1x8x1xf32>
    %143 = vector.shape_cast %142 : vector<1x8x1xf32> to vector<8x1xf32>
    %144 = vector.broadcast %143 : vector<8x1xf32> to vector<8x64xf32>
    %145 = arith.mulf %139, %144 : vector<8x64xf32>
    %cst_76 = arith.constant dense<0.000000e+00> : vector<64xf32>
    %146 = vector.multi_reduction <add>, %145, %cst_76 [0] : vector<8x64xf32> to vector<64xf32>
    %147 = vector.shape_cast %146 : vector<64xf32> to vector<1x64xf32>
    %148 = arith.index_cast %c2_i32 : i32 to index
    %c0_77 = arith.constant 0 : index
    %149 = vector.load %arg19[%148, %c0_77] : memref<8x64xf32, #tpu.memory_space<vmem>>, vector<1x64xf32>
    tpu.vector_store %arg19[%148, %c0_77], %147 {strides = array<i32>} : memref<8x64xf32, #tpu.memory_space<vmem>>, vector<1x64xf32>,
    %c3_i32 = arith.constant 3 : i32
    %150 = arith.index_cast %c3_i32 : i32 to index
    %c0_78 = arith.constant 0 : index
    %151 = vector.load %arg16[%150, %c0_78] : memref<8x64xf32, #tpu.memory_space<vmem>>, vector<1x64xf32>
    %152 = arith.index_cast %c3_i32 : i32 to index
    %c0_79 = arith.constant 0 : index
    %153 = vector.load %arg15[%152, %c0_79] : memref<8x64xf32, #tpu.memory_space<vmem>>, vector<1x64xf32>
    %154 = vector.broadcast %151 : vector<1x64xf32> to vector<8x64xf32>
    %155 = arith.mulf %154, %68 : vector<8x64xf32>
    %156 = math.exp %155 : vector<8x64xf32>
    %157 = arith.mulf %151, %153 : vector<1x64xf32>
    %158 = arith.index_cast %c3_i32 : i32 to index
    %c0_80 = arith.constant 0 : index
    %c0_81 = arith.constant 0 : index
    %159 = vector.load %arg17[%158, %c0_80, %c0_81] : memref<8x8x1xf32, #tpu.memory_space<vmem>>, vector<1x8x1xf32>
    %160 = vector.shape_cast %159 : vector<1x8x1xf32> to vector<8x1xf32>
    %161 = vector.broadcast %157 : vector<1x64xf32> to vector<8x64xf32>
    %162 = vector.broadcast %160 : vector<8x1xf32> to vector<8x64xf32>
    %163 = arith.mulf %161, %162 : vector<8x64xf32>
    %c0_82 = arith.constant 0 : index
    %c0_83 = arith.constant 0 : index
    %164 = vector.load %arg20[%c0_82, %c0_83] : memref<8x64xf32, #tpu.memory_space<vmem>>, vector<8x64xf32>
    %165 = arith.mulf %156, %164 : vector<8x64xf32>
    %166 = arith.addf %165, %163 : vector<8x64xf32>
    %c0_84 = arith.constant 0 : index
    %c0_85 = arith.constant 0 : index
    %167 = vector.load %arg20[%c0_84, %c0_85] : memref<8x64xf32, #tpu.memory_space<vmem>>, vector<8x64xf32>
    tpu.vector_store %arg20[%c0_84, %c0_85], %166 {strides = array<i32>} : memref<8x64xf32, #tpu.memory_space<vmem>>, vector<8x64xf32>,
    %168 = arith.index_cast %c3_i32 : i32 to index
    %c0_86 = arith.constant 0 : index
    %c0_87 = arith.constant 0 : index
    %169 = vector.load %arg18[%168, %c0_86, %c0_87] : memref<8x8x1xf32, #tpu.memory_space<vmem>>, vector<1x8x1xf32>
    %170 = vector.shape_cast %169 : vector<1x8x1xf32> to vector<8x1xf32>
    %171 = vector.broadcast %170 : vector<8x1xf32> to vector<8x64xf32>
    %172 = arith.mulf %166, %171 : vector<8x64xf32>
    %cst_88 = arith.constant dense<0.000000e+00> : vector<64xf32>
    %173 = vector.multi_reduction <add>, %172, %cst_88 [0] : vector<8x64xf32> to vector<64xf32>
    %174 = vector.shape_cast %173 : vector<64xf32> to vector<1x64xf32>
    %175 = arith.index_cast %c3_i32 : i32 to index
    %c0_89 = arith.constant 0 : index
    %176 = vector.load %arg19[%175, %c0_89] : memref<8x64xf32, #tpu.memory_space<vmem>>, vector<1x64xf32>
    tpu.vector_store %arg19[%175, %c0_89], %174 {strides = array<i32>} : memref<8x64xf32, #tpu.memory_space<vmem>>, vector<1x64xf32>,
    %c4_i32 = arith.constant 4 : i32
    %177 = arith.index_cast %c4_i32 : i32 to index
    %c0_90 = arith.constant 0 : index
    %178 = vector.load %arg16[%177, %c0_90] : memref<8x64xf32, #tpu.memory_space<vmem>>, vector<1x64xf32>
    %179 = arith.index_cast %c4_i32 : i32 to index
    %c0_91 = arith.constant 0 : index
    %180 = vector.load %arg15[%179, %c0_91] : memref<8x64xf32, #tpu.memory_space<vmem>>, vector<1x64xf32>
    %181 = vector.broadcast %178 : vector<1x64xf32> to vector<8x64xf32>
    %182 = arith.mulf %181, %68 : vector<8x64xf32>
    %183 = math.exp %182 : vector<8x64xf32>
    %184 = arith.mulf %178, %180 : vector<1x64xf32>
    %185 = arith.index_cast %c4_i32 : i32 to index
    %c0_92 = arith.constant 0 : index
    %c0_93 = arith.constant 0 : index
    %186 = vector.load %arg17[%185, %c0_92, %c0_93] : memref<8x8x1xf32, #tpu.memory_space<vmem>>, vector<1x8x1xf32>
    %187 = vector.shape_cast %186 : vector<1x8x1xf32> to vector<8x1xf32>
    %188 = vector.broadcast %184 : vector<1x64xf32> to vector<8x64xf32>
    %189 = vector.broadcast %187 : vector<8x1xf32> to vector<8x64xf32>
    %190 = arith.mulf %188, %189 : vector<8x64xf32>
    %c0_94 = arith.constant 0 : index
    %c0_95 = arith.constant 0 : index
    %191 = vector.load %arg20[%c0_94, %c0_95] : memref<8x64xf32, #tpu.memory_space<vmem>>, vector<8x64xf32>
    %192 = arith.mulf %183, %191 : vector<8x64xf32>
    %193 = arith.addf %192, %190 : vector<8x64xf32>
    %c0_96 = arith.constant 0 : index
    %c0_97 = arith.constant 0 : index
    %194 = vector.load %arg20[%c0_96, %c0_97] : memref<8x64xf32, #tpu.memory_space<vmem>>, vector<8x64xf32>
    tpu.vector_store %arg20[%c0_96, %c0_97], %193 {strides = array<i32>} : memref<8x64xf32, #tpu.memory_space<vmem>>, vector<8x64xf32>,
    %195 = arith.index_cast %c4_i32 : i32 to index
    %c0_98 = arith.constant 0 : index
    %c0_99 = arith.constant 0 : index
    %196 = vector.load %arg18[%195, %c0_98, %c0_99] : memref<8x8x1xf32, #tpu.memory_space<vmem>>, vector<1x8x1xf32>
    %197 = vector.shape_cast %196 : vector<1x8x1xf32> to vector<8x1xf32>
    %198 = vector.broadcast %197 : vector<8x1xf32> to vector<8x64xf32>
    %199 = arith.mulf %193, %198 : vector<8x64xf32>
    %cst_100 = arith.constant dense<0.000000e+00> : vector<64xf32>
    %200 = vector.multi_reduction <add>, %199, %cst_100 [0] : vector<8x64xf32> to vector<64xf32>
    %201 = vector.shape_cast %200 : vector<64xf32> to vector<1x64xf32>
    %202 = arith.index_cast %c4_i32 : i32 to index
    %c0_101 = arith.constant 0 : index
    %203 = vector.load %arg19[%202, %c0_101] : memref<8x64xf32, #tpu.memory_space<vmem>>, vector<1x64xf32>
    tpu.vector_store %arg19[%202, %c0_101], %201 {strides = array<i32>} : memref<8x64xf32, #tpu.memory_space<vmem>>, vector<1x64xf32>,
    %c5_i32 = arith.constant 5 : i32
    %204 = arith.index_cast %c5_i32 : i32 to index
    %c0_102 = arith.constant 0 : index
    %205 = vector.load %arg16[%204, %c0_102] : memref<8x64xf32, #tpu.memory_space<vmem>>, vector<1x64xf32>
    %206 = arith.index_cast %c5_i32 : i32 to index
    %c0_103 = arith.constant 0 : index
    %207 = vector.load %arg15[%206, %c0_103] : memref<8x64xf32, #tpu.memory_space<vmem>>, vector<1x64xf32>
    %208 = vector.broadcast %205 : vector<1x64xf32> to vector<8x64xf32>
    %209 = arith.mulf %208, %68 : vector<8x64xf32>
    %210 = math.exp %209 : vector<8x64xf32>
    %211 = arith.mulf %205, %207 : vector<1x64xf32>
    %212 = arith.index_cast %c5_i32 : i32 to index
    %c0_104 = arith.constant 0 : index
    %c0_105 = arith.constant 0 : index
    %213 = vector.load %arg17[%212, %c0_104, %c0_105] : memref<8x8x1xf32, #tpu.memory_space<vmem>>, vector<1x8x1xf32>
    %214 = vector.shape_cast %213 : vector<1x8x1xf32> to vector<8x1xf32>
    %215 = vector.broadcast %211 : vector<1x64xf32> to vector<8x64xf32>
    %216 = vector.broadcast %214 : vector<8x1xf32> to vector<8x64xf32>
    %217 = arith.mulf %215, %216 : vector<8x64xf32>
    %c0_106 = arith.constant 0 : index
    %c0_107 = arith.constant 0 : index
    %218 = vector.load %arg20[%c0_106, %c0_107] : memref<8x64xf32, #tpu.memory_space<vmem>>, vector<8x64xf32>
    %219 = arith.mulf %210, %218 : vector<8x64xf32>
    %220 = arith.addf %219, %217 : vector<8x64xf32>
    %c0_108 = arith.constant 0 : index
    %c0_109 = arith.constant 0 : index
    %221 = vector.load %arg20[%c0_108, %c0_109] : memref<8x64xf32, #tpu.memory_space<vmem>>, vector<8x64xf32>
    tpu.vector_store %arg20[%c0_108, %c0_109], %220 {strides = array<i32>} : memref<8x64xf32, #tpu.memory_space<vmem>>, vector<8x64xf32>,
    %222 = arith.index_cast %c5_i32 : i32 to index
    %c0_110 = arith.constant 0 : index
    %c0_111 = arith.constant 0 : index
    %223 = vector.load %arg18[%222, %c0_110, %c0_111] : memref<8x8x1xf32, #tpu.memory_space<vmem>>, vector<1x8x1xf32>
    %224 = vector.shape_cast %223 : vector<1x8x1xf32> to vector<8x1xf32>
    %225 = vector.broadcast %224 : vector<8x1xf32> to vector<8x64xf32>
    %226 = arith.mulf %220, %225 : vector<8x64xf32>
    %cst_112 = arith.constant dense<0.000000e+00> : vector<64xf32>
    %227 = vector.multi_reduction <add>, %226, %cst_112 [0] : vector<8x64xf32> to vector<64xf32>
    %228 = vector.shape_cast %227 : vector<64xf32> to vector<1x64xf32>
    %229 = arith.index_cast %c5_i32 : i32 to index
    %c0_113 = arith.constant 0 : index
    %230 = vector.load %arg19[%229, %c0_113] : memref<8x64xf32, #tpu.memory_space<vmem>>, vector<1x64xf32>
    tpu.vector_store %arg19[%229, %c0_113], %228 {strides = array<i32>} : memref<8x64xf32, #tpu.memory_space<vmem>>, vector<1x64xf32>,
    %c6_i32 = arith.constant 6 : i32
    %231 = arith.index_cast %c6_i32 : i32 to index
    %c0_114 = arith.constant 0 : index
    %232 = vector.load %arg16[%231, %c0_114] : memref<8x64xf32, #tpu.memory_space<vmem>>, vector<1x64xf32>
    %233 = arith.index_cast %c6_i32 : i32 to index
    %c0_115 = arith.constant 0 : index
    %234 = vector.load %arg15[%233, %c0_115] : memref<8x64xf32, #tpu.memory_space<vmem>>, vector<1x64xf32>
    %235 = vector.broadcast %232 : vector<1x64xf32> to vector<8x64xf32>
    %236 = arith.mulf %235, %68 : vector<8x64xf32>
    %237 = math.exp %236 : vector<8x64xf32>
    %238 = arith.mulf %232, %234 : vector<1x64xf32>
    %239 = arith.index_cast %c6_i32 : i32 to index
    %c0_116 = arith.constant 0 : index
    %c0_117 = arith.constant 0 : index
    %240 = vector.load %arg17[%239, %c0_116, %c0_117] : memref<8x8x1xf32, #tpu.memory_space<vmem>>, vector<1x8x1xf32>
    %241 = vector.shape_cast %240 : vector<1x8x1xf32> to vector<8x1xf32>
    %242 = vector.broadcast %238 : vector<1x64xf32> to vector<8x64xf32>
    %243 = vector.broadcast %241 : vector<8x1xf32> to vector<8x64xf32>
    %244 = arith.mulf %242, %243 : vector<8x64xf32>
    %c0_118 = arith.constant 0 : index
    %c0_119 = arith.constant 0 : index
    %245 = vector.load %arg20[%c0_118, %c0_119] : memref<8x64xf32, #tpu.memory_space<vmem>>, vector<8x64xf32>
    %246 = arith.mulf %237, %245 : vector<8x64xf32>
    %247 = arith.addf %246, %244 : vector<8x64xf32>
    %c0_120 = arith.constant 0 : index
    %c0_121 = arith.constant 0 : index
    %248 = vector.load %arg20[%c0_120, %c0_121] : memref<8x64xf32, #tpu.memory_space<vmem>>, vector<8x64xf32>
    tpu.vector_store %arg20[%c0_120, %c0_121], %247 {strides = array<i32>} : memref<8x64xf32, #tpu.memory_space<vmem>>, vector<8x64xf32>,
    %249 = arith.index_cast %c6_i32 : i32 to index
    %c0_122 = arith.constant 0 : index
    %c0_123 = arith.constant 0 : index
    %250 = vector.load %arg18[%249, %c0_122, %c0_123] : memref<8x8x1xf32, #tpu.memory_space<vmem>>, vector<1x8x1xf32>
    %251 = vector.shape_cast %250 : vector<1x8x1xf32> to vector<8x1xf32>
    %252 = vector.broadcast %251 : vector<8x1xf32> to vector<8x64xf32>
    %253 = arith.mulf %247, %252 : vector<8x64xf32>
    %cst_124 = arith.constant dense<0.000000e+00> : vector<64xf32>
    %254 = vector.multi_reduction <add>, %253, %cst_124 [0] : vector<8x64xf32> to vector<64xf32>
    %255 = vector.shape_cast %254 : vector<64xf32> to vector<1x64xf32>
    %256 = arith.index_cast %c6_i32 : i32 to index
    %c0_125 = arith.constant 0 : index
    %257 = vector.load %arg19[%256, %c0_125] : memref<8x64xf32, #tpu.memory_space<vmem>>, vector<1x64xf32>
    tpu.vector_store %arg19[%256, %c0_125], %255 {strides = array<i32>} : memref<8x64xf32, #tpu.memory_space<vmem>>, vector<1x64xf32>,
    %c7_i32 = arith.constant 7 : i32
    %258 = arith.index_cast %c7_i32 : i32 to index
    %c0_126 = arith.constant 0 : index
    %259 = vector.load %arg16[%258, %c0_126] : memref<8x64xf32, #tpu.memory_space<vmem>>, vector<1x64xf32>
    %260 = arith.index_cast %c7_i32 : i32 to index
    %c0_127 = arith.constant 0 : index
    %261 = vector.load %arg15[%260, %c0_127] : memref<8x64xf32, #tpu.memory_space<vmem>>, vector<1x64xf32>
    %262 = vector.broadcast %259 : vector<1x64xf32> to vector<8x64xf32>
    %263 = arith.mulf %262, %68 : vector<8x64xf32>
    %264 = math.exp %263 : vector<8x64xf32>
    %265 = arith.mulf %259, %261 : vector<1x64xf32>
    %266 = arith.index_cast %c7_i32 : i32 to index
    %c0_128 = arith.constant 0 : index
    %c0_129 = arith.constant 0 : index
    %267 = vector.load %arg17[%266, %c0_128, %c0_129] : memref<8x8x1xf32, #tpu.memory_space<vmem>>, vector<1x8x1xf32>
    %268 = vector.shape_cast %267 : vector<1x8x1xf32> to vector<8x1xf32>
    %269 = vector.broadcast %265 : vector<1x64xf32> to vector<8x64xf32>
    %270 = vector.broadcast %268 : vector<8x1xf32> to vector<8x64xf32>
    %271 = arith.mulf %269, %270 : vector<8x64xf32>
    %c0_130 = arith.constant 0 : index
    %c0_131 = arith.constant 0 : index
    %272 = vector.load %arg20[%c0_130, %c0_131] : memref<8x64xf32, #tpu.memory_space<vmem>>, vector<8x64xf32>
    %273 = arith.mulf %264, %272 : vector<8x64xf32>
    %274 = arith.addf %273, %271 : vector<8x64xf32>
    %c0_132 = arith.constant 0 : index
    %c0_133 = arith.constant 0 : index
    %275 = vector.load %arg20[%c0_132, %c0_133] : memref<8x64xf32, #tpu.memory_space<vmem>>, vector<8x64xf32>
    tpu.vector_store %arg20[%c0_132, %c0_133], %274 {strides = array<i32>} : memref<8x64xf32, #tpu.memory_space<vmem>>, vector<8x64xf32>,
    %276 = arith.index_cast %c7_i32 : i32 to index
    %c0_134 = arith.constant 0 : index
    %c0_135 = arith.constant 0 : index
    %277 = vector.load %arg18[%276, %c0_134, %c0_135] : memref<8x8x1xf32, #tpu.memory_space<vmem>>, vector<1x8x1xf32>
    %278 = vector.shape_cast %277 : vector<1x8x1xf32> to vector<8x1xf32>
    %279 = vector.broadcast %278 : vector<8x1xf32> to vector<8x64xf32>
    %280 = arith.mulf %274, %279 : vector<8x64xf32>
    %cst_136 = arith.constant dense<0.000000e+00> : vector<64xf32>
    %281 = vector.multi_reduction <add>, %280, %cst_136 [0] : vector<8x64xf32> to vector<64xf32>
    %282 = vector.shape_cast %281 : vector<64xf32> to vector<1x64xf32>
    %283 = arith.index_cast %c7_i32 : i32 to index
    %c0_137 = arith.constant 0 : index
    %284 = vector.load %arg19[%283, %c0_137] : memref<8x64xf32, #tpu.memory_space<vmem>>, vector<1x64xf32>
    tpu.vector_store %arg19[%283, %c0_137], %282 {strides = array<i32>} : memref<8x64xf32, #tpu.memory_space<vmem>>, vector<1x64xf32>,
    %c8_i32 = arith.constant 8 : i32
    %c0_138 = arith.constant 0 : index
    %c0_139 = arith.constant 0 : index
    %285 = vector.load %arg19[%c0_138, %c0_139] : memref<8x64xf32, #tpu.memory_space<vmem>>, vector<8x64xf32>
    %c0_140 = arith.constant 0 : index
    %c0_141 = arith.constant 0 : index
    %286 = vector.load %arg11[%c0_140, %c0_141] : memref<1x64xf32, #tpu.memory_space<vmem>>, vector<1x64xf32>
    %287 = vector.broadcast %286 : vector<1x64xf32> to vector<8x64xf32>
    %288 = arith.mulf %37, %287 : vector<8x64xf32>
    %289 = arith.addf %285, %288 : vector<8x64xf32>
    %290 = arith.negf %8 : vector<8x64xf32>
    %291 = math.exp %290 : vector<8x64xf32>
    %cst_142 = arith.constant 1.000000e+00 : f32
    %292 = vector.broadcast %cst_142 : f32 to vector<8x64xf32>
    %293 = arith.addf %292, %291 : vector<8x64xf32>
    %294 = arith.divf %292, %293 : vector<8x64xf32>
    %295 = arith.mulf %8, %294 : vector<8x64xf32>
    %296 = arith.mulf %289, %295 : vector<8x64xf32>
    %297 = arith.truncf %296 : vector<8x64xf32> to vector<8x64xbf16>
    %c0_143 = arith.constant 0 : index
    %c0_144 = arith.constant 0 : index
    %298 = vector.load %arg12[%c0_143, %c0_144] : memref<64x32xbf16, #tpu.memory_space<vmem>>, vector<64x32xbf16>
    %cst_145 = arith.constant dense<0.000000e+00> : vector<8x32xf32>
    %299 = tpu.matmul %297, %298, %cst_145 {dimension_numbers = #tpu.dot_dimension_numbers<[1], [0], [0], [1], [0, 0, 1, 1], [], []>} : vector<8x64xbf16>, vector<64x32xbf16>, vector<8x32xf32> -> vector<8x32xf32>
    %c0_146 = arith.constant 0 : index
    %c0_147 = arith.constant 0 : index
    %300 = vector.load %arg13[%c0_146, %c0_147] : memref<1x32xf32, #tpu.memory_space<vmem>>, vector<1x32xf32>
    %301 = vector.broadcast %300 : vector<1x32xf32> to vector<8x32xf32>
    %302 = arith.addf %299, %301 : vector<8x32xf32>
    %303 = vector.shape_cast %302 : vector<8x32xf32> to vector<1x8x32xf32>
    %304 = arith.truncf %303 : vector<1x8x32xf32> to vector<1x8x32xbf16>
    %c0_148 = arith.constant 0 : index
    %c0_149 = arith.constant 0 : index
    %c0_150 = arith.constant 0 : index
    %305 = vector.load %arg14[%c0_148, %c0_149, %c0_150] : memref<1x8x32xbf16, #tpu.memory_space<vmem>>, vector<1x8x32xbf16>
    tpu.vector_store %arg14[%c0_148, %c0_149, %c0_150], %304 {strides = array<i32>} : memref<1x8x32xbf16, #tpu.memory_space<vmem>>, vector<1x8x32xbf16>,
    return
  }
  func.func @transform_0(%arg0: i32) -> (i32, i32, i32) {
    %c0_i32 = arith.constant 0 : i32
    %c0_i32_0 = arith.constant 0 : i32
    %c0_i32_1 = arith.constant 0 : i32
    return %arg0, %c0_i32, %c0_i32_0 : i32, i32, i32
  }
  func.func @transform_1(%arg0: i32) -> (i32, i32) {
    %c0_i32 = arith.constant 0 : i32
    %c0_i32_0 = arith.constant 0 : i32
    %c0_i32_1 = arith.constant 0 : i32
    return %c0_i32, %c0_i32_0 : i32, i32
  }
  func.func @transform_2(%arg0: i32) -> (i32, i32) {
    %c0_i32 = arith.constant 0 : i32
    %c0_i32_0 = arith.constant 0 : i32
    %c0_i32_1 = arith.constant 0 : i32
    return %c0_i32, %c0_i32_0 : i32, i32
  }
  func.func @transform_3(%arg0: i32) -> (i32, i32) {
    %c0_i32 = arith.constant 0 : i32
    %c0_i32_0 = arith.constant 0 : i32
    %c0_i32_1 = arith.constant 0 : i32
    return %c0_i32, %c0_i32_0 : i32, i32
  }
  func.func @transform_4(%arg0: i32) -> (i32, i32) {
    %c0_i32 = arith.constant 0 : i32
    %c0_i32_0 = arith.constant 0 : i32
    %c0_i32_1 = arith.constant 0 : i32
    return %c0_i32, %c0_i32_0 : i32, i32
  }
  func.func @transform_5(%arg0: i32) -> (i32, i32) {
    %c0_i32 = arith.constant 0 : i32
    %c0_i32_0 = arith.constant 0 : i32
    %c0_i32_1 = arith.constant 0 : i32
    return %c0_i32, %c0_i32_0 : i32, i32
  }
  func.func @transform_6(%arg0: i32) -> (i32, i32) {
    %c0_i32 = arith.constant 0 : i32
    %c0_i32_0 = arith.constant 0 : i32
    %c0_i32_1 = arith.constant 0 : i32
    return %c0_i32, %c0_i32_0 : i32, i32
  }
  func.func @transform_7(%arg0: i32) -> (i32, i32) {
    %c0_i32 = arith.constant 0 : i32
    %c0_i32_0 = arith.constant 0 : i32
    %c0_i32_1 = arith.constant 0 : i32
    return %c0_i32, %c0_i32_0 : i32, i32
  }
  func.func @transform_8(%arg0: i32) -> (i32, i32) {
    %c0_i32 = arith.constant 0 : i32
    %c0_i32_0 = arith.constant 0 : i32
    %c0_i32_1 = arith.constant 0 : i32
    return %c0_i32, %c0_i32_0 : i32, i32
  }
  func.func @transform_9(%arg0: i32) -> (i32, i32) {
    %c0_i32 = arith.constant 0 : i32
    %c0_i32_0 = arith.constant 0 : i32
    %c0_i32_1 = arith.constant 0 : i32
    return %c0_i32, %c0_i32_0 : i32, i32
  }
  func.func @transform_10(%arg0: i32) -> (i32, i32) {
    %c0_i32 = arith.constant 0 : i32
    %c0_i32_0 = arith.constant 0 : i32
    %c0_i32_1 = arith.constant 0 : i32
    return %c0_i32, %c0_i32_0 : i32, i32
  }
  func.func @transform_11(%arg0: i32) -> (i32, i32) {
    %c0_i32 = arith.constant 0 : i32
    %c0_i32_0 = arith.constant 0 : i32
    %c0_i32_1 = arith.constant 0 : i32
    return %c0_i32, %c0_i32_0 : i32, i32
  }
  func.func @transform_12(%arg0: i32) -> (i32, i32) {
    %c0_i32 = arith.constant 0 : i32
    %c0_i32_0 = arith.constant 0 : i32
    %c0_i32_1 = arith.constant 0 : i32
    return %c0_i32, %c0_i32_0 : i32, i32
  }
  func.func @transform_13(%arg0: i32) -> (i32, i32, i32) {
    %c0_i32 = arith.constant 0 : i32
    %c0_i32_0 = arith.constant 0 : i32
    %c0_i32_1 = arith.constant 0 : i32
    return %arg0, %c0_i32, %c0_i32_0 : i32, i32, i32
  }
}

</mosaic_0001>

<llo_original>
// kernel: _lambda_.3
$region0: #{_lambda_.3}
  #allocation0 [shape = 'u32[]', space=smem, size = 0x4, offset = 0x4, fixed_abs, tag = 'smem constant byte address 0x4 - core index']
  #allocation1 [shape = 'u32[144,128]{1,0:T(1,128)}', space=vmem, size = 0x12000, scoped, tag = 'internal scratch']
  %s0 = inlined_call_operand.vmem [shape: bf16[16,32], index: 0, kind: input, shape index: {}]
  %s1 = inlined_call_operand.vmem [shape: bf16[2,32,16], index: 1, kind: input, shape index: {}]
  %s2 = inlined_call_operand.vmem [shape: f32[2,1,16], index: 2, kind: input, shape index: {}]
  %s3 = inlined_call_operand.vmem [shape: bf16[2,16,32], index: 3, kind: input, shape index: {}]
  %s4 = inlined_call_operand.vmem [shape: f32[2,1,32], index: 4, kind: input, shape index: {}]
  %s5 = inlined_call_operand.vmem [shape: f32[2,1,32], index: 5, kind: input, shape index: {}]
  %s6 = inlined_call_operand.vmem [shape: f32[2,1,32], index: 6, kind: input, shape index: {}]
  %s7 = inlined_call_operand.vmem [shape: bf16[2,32,64], index: 7, kind: input, shape index: {}]
  %s8 = inlined_call_operand.vmem [shape: f32[2,1,64], index: 8, kind: input, shape index: {}]
  %s9 = inlined_call_operand.vmem [shape: f32[2,1,64], index: 9, kind: input, shape index: {}]
  %s10 = inlined_call_operand.vmem [shape: f32[2,1,64], index: 10, kind: input, shape index: {}]
  %s11 = inlined_call_operand.vmem [shape: bf16[2,64,128], index: 11, kind: input, shape index: {}]
  %s12 = inlined_call_operand.vmem [shape: f32[2,1,128], index: 12, kind: input, shape index: {}]
  %s13 = inlined_call_operand.vmem [shape: f32[2,16,128], index: 13, kind: output, shape index: {}]
  %s14 = sld [smem:[#allocation0]]
  $region85: #{_lambda_.3} parent=0
    _
  %s16 = ssub.s32 1, %s14
  %s17 = scalar_select 0, %s16, %s14
  loop: start=0, step=1, limit=4
  $region2: #{_lambda_.3} parent=0 // loop_pre_header
    _
  $region3: #{_lambda_.3} parent=0 // loop_header
    %s19 = sphi 0, %s23
    %p20 = scmp.ge.s32.totalorder %s19, 4
    %s26 = sphi 0, %s38
    %s27 = sphi 0, %s34
    %s28 = sphi 0, %s26
    %s29 = sphi 0, %s27
    %s30 = sphi 0, %s28
    %s31 = sphi 0, %s29
    %s41 = sphi 0, %s43
    %s44 = sphi 0, %s41
    %s45 = sphi 0, %s44
    %s61 = sphi 0, %s45
    %s67 = sphi 0, %s69
    %s70 = sphi 0, %s67
    %s71 = sphi 0, %s70
    %s87 = sphi 0, %s71
    %s93 = sphi 0, %s95
    %s96 = sphi 0, %s93
    %s97 = sphi 0, %s96
    %s113 = sphi 0, %s97
    %s119 = sphi 0, %s121
    %s122 = sphi 0, %s119
    %s123 = sphi 0, %s122
    %s139 = sphi 0, %s123
    %s145 = sphi 0, %s147
    %s148 = sphi 0, %s145
    %s149 = sphi 0, %s148
    %s165 = sphi 0, %s149
    %s171 = sphi 0, %s173
    %s174 = sphi 0, %s171
    %s175 = sphi 0, %s174
    %s191 = sphi 0, %s175
    %s197 = sphi 0, %s199
    %s200 = sphi 0, %s197
    %s201 = sphi 0, %s200
    %s217 = sphi 0, %s201
    %s223 = sphi 0, %s225
    %s226 = sphi 0, %s223
    %s227 = sphi 0, %s226
    %s243 = sphi 0, %s227
    %s249 = sphi 0, %s251
    %s252 = sphi 0, %s249
    %s253 = sphi 0, %s252
    %s269 = sphi 0, %s253
    %s275 = sphi 0, %s277
    %s278 = sphi 0, %s275
    %s279 = sphi 0, %s278
    %s295 = sphi 0, %s279
    %s301 = sphi 0, %s303
    %s304 = sphi 0, %s301
    %s305 = sphi 0, %s304
    %s321 = sphi 0, %s305
    %s327 = sphi 0, %s329
    %s330 = sphi 0, %s327
    %s331 = sphi 0, %s330
    %s347 = sphi 0, %s331
    %s353 = sphi 0, %s355
    %s356 = sphi 0, %s353
    %s357 = sphi 0, %s356
    %s373 = sphi 0, %s357
    %s381 = sphi 0, %s383
    %s384 = sphi 0, %s381
    %s385 = sphi 0, %s384
    %s401 = sphi 0, %s385
  $region4: #{_lambda_.3} parent=0 // loop_header_branch
    %22 = sbr.rel (%p20) target = $region8
  $region5: #{_lambda_.3} parent=0 // loop_body
    %s24 = ssub.s32 %s19, 1
    %s25 = ssub.s32 %s19, 2
    %s32 = sadd.s32 1, %s27
    %p33 = scmp.ge.s32.totalorder %s32, 1
    %s34 = scalar_select %p33, 0, %s32
    %s35 = sadd.s32 1, %s26
    %s36 = scalar_select %p33, %s35, %s26
    %p37 = scmp.ge.s32.totalorder %s36, 2
    %s38 = scalar_select %p37, 0, %s36
    %s39 = ssub.s32 %s27, %s34
    %p40 = scmp.eq.s32.totalorder %s39, 0
    %s42 = sadd.s32 %s41, 1
    %s43 = scalar_select %p40, %s41, %s42
    %p46 = pneg %p40
    %p47 = scmp.eq.s32.totalorder %s19, 1
    %p48 = por %p46, %p47
    %p49 = scmp.ne.s32.totalorder %s41, %s44
    %p50 = scmp.eq.s32.totalorder %s19, 0
    %p51 = por %p49, %p50
    %p52 = scmp.ne.s32.totalorder %s41, %s44
    %p53 = scmp.eq.s32.totalorder %s24, 1
    %p54 = por %p52, %p53
    %p55 = scmp.ne.s32.totalorder %s44, %s45
    %p56 = scmp.eq.s32.totalorder %s24, 0
    %p57 = por %p55, %p56
    %p58 = scmp.ne.s32.totalorder %s44, %s45
    %p59 = scmp.eq.s32.totalorder %s25, 1
    %p60 = por %p58, %p59
    %p62 = scmp.ne.s32.totalorder %s45, %s61
    %p63 = scmp.eq.s32.totalorder %s25, 0
    %p64 = por %p62, %p63
    %s65 = ssub.s32 %s26, %s38
    %p66 = scmp.eq.s32.totalorder %s65, 0
    %s68 = sadd.s32 %s67, 1
    %s69 = scalar_select %p66, %s67, %s68
    %p72 = pneg %p66
    %p73 = scmp.eq.s32.totalorder %s19, 1
    %p74 = por %p72, %p73
    %p75 = scmp.ne.s32.totalorder %s67, %s70
    %p76 = scmp.eq.s32.totalorder %s19, 0
    %p77 = por %p75, %p76
    %p78 = scmp.ne.s32.totalorder %s67, %s70
    %p79 = scmp.eq.s32.totalorder %s24, 1
    %p80 = por %p78, %p79
    %p81 = scmp.ne.s32.totalorder %s70, %s71
    %p82 = scmp.eq.s32.totalorder %s24, 0
    %p83 = por %p81, %p82
    %p84 = scmp.ne.s32.totalorder %s70, %s71
    %p85 = scmp.eq.s32.totalorder %s25, 1
    %p86 = por %p84, %p85
    %p88 = scmp.ne.s32.totalorder %s71, %s87
    %p89 = scmp.eq.s32.totalorder %s25, 0
    %p90 = por %p88, %p89
    %s91 = ssub.s32 %s26, %s38
    %p92 = scmp.eq.s32.totalorder %s91, 0
    %s94 = sadd.s32 %s93, 1
    %s95 = scalar_select %p92, %s93, %s94
    %p98 = pneg %p92
    %p99 = scmp.eq.s32.totalorder %s19, 1
    %p100 = por %p98, %p99
    %p101 = scmp.ne.s32.totalorder %s93, %s96
    %p102 = scmp.eq.s32.totalorder %s19, 0
    %p103 = por %p101, %p102
    %p104 = scmp.ne.s32.totalorder %s93, %s96
    %p105 = scmp.eq.s32.totalorder %s24, 1
    %p106 = por %p104, %p105
    %p107 = scmp.ne.s32.totalorder %s96, %s97
    %p108 = scmp.eq.s32.totalorder %s24, 0
    %p109 = por %p107, %p108
    %p110 = scmp.ne.s32.totalorder %s96, %s97
    %p111 = scmp.eq.s32.totalorder %s25, 1
    %p112 = por %p110, %p111
    %p114 = scmp.ne.s32.totalorder %s97, %s113
    %p115 = scmp.eq.s32.totalorder %s25, 0
    %p116 = por %p114, %p115
    %s117 = ssub.s32 %s26, %s38
    %p118 = scmp.eq.s32.totalorder %s117, 0
    %s120 = sadd.s32 %s119, 1
    %s121 = scalar_select %p118, %s119, %s120
    %p124 = pneg %p118
    %p125 = scmp.eq.s32.totalorder %s19, 1
    %p126 = por %p124, %p125
    %p127 = scmp.ne.s32.totalorder %s119, %s122
    %p128 = scmp.eq.s32.totalorder %s19, 0
    %p129 = por %p127, %p128
    %p130 = scmp.ne.s32.totalorder %s119, %s122
    %p131 = scmp.eq.s32.totalorder %s24, 1
    %p132 = por %p130, %p131
    %p133 = scmp.ne.s32.totalorder %s122, %s123
    %p134 = scmp.eq.s32.totalorder %s24, 0
    %p135 = por %p133, %p134
    %p136 = scmp.ne.s32.totalorder %s122, %s123
    %p137 = scmp.eq.s32.totalorder %s25, 1
    %p138 = por %p136, %p137
    %p140 = scmp.ne.s32.totalorder %s123, %s139
    %p141 = scmp.eq.s32.totalorder %s25, 0
    %p142 = por %p140, %p141
    %s143 = ssub.s32 %s26, %s38
    %p144 = scmp.eq.s32.totalorder %s143, 0
    %s146 = sadd.s32 %s145, 1
    %s147 = scalar_select %p144, %s145, %s146
    %p150 = pneg %p144
    %p151 = scmp.eq.s32.totalorder %s19, 1
    %p152 = por %p150, %p151
    %p153 = scmp.ne.s32.totalorder %s145, %s148
    %p154 = scmp.eq.s32.totalorder %s19, 0
    %p155 = por %p153, %p154
    %p156 = scmp.ne.s32.totalorder %s145, %s148
    %p157 = scmp.eq.s32.totalorder %s24, 1
    %p158 = por %p156, %p157
    %p159 = scmp.ne.s32.totalorder %s148, %s149
    %p160 = scmp.eq.s32.totalorder %s24, 0
    %p161 = por %p159, %p160
    %p162 = scmp.ne.s32.totalorder %s148, %s149
    %p163 = scmp.eq.s32.totalorder %s25, 1
    %p164 = por %p162, %p163
    %p166 = scmp.ne.s32.totalorder %s149, %s165
    %p167 = scmp.eq.s32.totalorder %s25, 0
    %p168 = por %p166, %p167
    %s169 = ssub.s32 %s26, %s38
    %p170 = scmp.eq.s32.totalorder %s169, 0
    %s172 = sadd.s32 %s171, 1
    %s173 = scalar_select %p170, %s171, %s172
    %p176 = pneg %p170
    %p177 = scmp.eq.s32.totalorder %s19, 1
    %p178 = por %p176, %p177
    %p179 = scmp.ne.s32.totalorder %s171, %s174
    %p180 = scmp.eq.s32.totalorder %s19, 0
    %p181 = por %p179, %p180
    %p182 = scmp.ne.s32.totalorder %s171, %s174
    %p183 = scmp.eq.s32.totalorder %s24, 1
    %p184 = por %p182, %p183
    %p185 = scmp.ne.s32.totalorder %s174, %s175
    %p186 = scmp.eq.s32.totalorder %s24, 0
    %p187 = por %p185, %p186
    %p188 = scmp.ne.s32.totalorder %s174, %s175
    %p189 = scmp.eq.s32.totalorder %s25, 1
    %p190 = por %p188, %p189
    %p192 = scmp.ne.s32.totalorder %s175, %s191
    %p193 = scmp.eq.s32.totalorder %s25, 0
    %p194 = por %p192, %p193
    %s195 = ssub.s32 %s26, %s38
    %p196 = scmp.eq.s32.totalorder %s195, 0
    %s198 = sadd.s32 %s197, 1
    %s199 = scalar_select %p196, %s197, %s198
    %p202 = pneg %p196
    %p203 = scmp.eq.s32.totalorder %s19, 1
    %p204 = por %p202, %p203
    %p205 = scmp.ne.s32.totalorder %s197, %s200
    %p206 = scmp.eq.s32.totalorder %s19, 0
    %p207 = por %p205, %p206
    %p208 = scmp.ne.s32.totalorder %s197, %s200
    %p209 = scmp.eq.s32.totalorder %s24, 1
    %p210 = por %p208, %p209
    %p211 = scmp.ne.s32.totalorder %s200, %s201
    %p212 = scmp.eq.s32.totalorder %s24, 0
    %p213 = por %p211, %p212
    %p214 = scmp.ne.s32.totalorder %s200, %s201
    %p215 = scmp.eq.s32.totalorder %s25, 1
    %p216 = por %p214, %p215
    %p218 = scmp.ne.s32.totalorder %s201, %s217
    %p219 = scmp.eq.s32.totalorder %s25, 0
    %p220 = por %p218, %p219
    %s221 = ssub.s32 %s26, %s38
    %p222 = scmp.eq.s32.totalorder %s221, 0
    %s224 = sadd.s32 %s223, 1
    %s225 = scalar_select %p222, %s223, %s224
    %p228 = pneg %p222
    %p229 = scmp.eq.s32.totalorder %s19, 1
    %p230 = por %p228, %p229
    %p231 = scmp.ne.s32.totalorder %s223, %s226
    %p232 = scmp.eq.s32.totalorder %s19, 0
    %p233 = por %p231, %p232
    %p234 = scmp.ne.s32.totalorder %s223, %s226
    %p235 = scmp.eq.s32.totalorder %s24, 1
    %p236 = por %p234, %p235
    %p237 = scmp.ne.s32.totalorder %s226, %s227
    %p238 = scmp.eq.s32.totalorder %s24, 0
    %p239 = por %p237, %p238
    %p240 = scmp.ne.s32.totalorder %s226, %s227
    %p241 = scmp.eq.s32.totalorder %s25, 1
    %p242 = por %p240, %p241
    %p244 = scmp.ne.s32.totalorder %s227, %s243
    %p245 = scmp.eq.s32.totalorder %s25, 0
    %p246 = por %p244, %p245
    %s247 = ssub.s32 %s26, %s38
    %p248 = scmp.eq.s32.totalorder %s247, 0
    %s250 = sadd.s32 %s249, 1
    %s251 = scalar_select %p248, %s249, %s250
    %p254 = pneg %p248
    %p255 = scmp.eq.s32.totalorder %s19, 1
    %p256 = por %p254, %p255
    %p257 = scmp.ne.s32.totalorder %s249, %s252
    %p258 = scmp.eq.s32.totalorder %s19, 0
    %p259 = por %p257, %p258
    %p260 = scmp.ne.s32.totalorder %s249, %s252
    %p261 = scmp.eq.s32.totalorder %s24, 1
    %p262 = por %p260, %p261
    %p263 = scmp.ne.s32.totalorder %s252, %s253
    %p264 = scmp.eq.s32.totalorder %s24, 0
    %p265 = por %p263, %p264
    %p266 = scmp.ne.s32.totalorder %s252, %s253
    %p267 = scmp.eq.s32.totalorder %s25, 1
    %p268 = por %p266, %p267
    %p270 = scmp.ne.s32.totalorder %s253, %s269
    %p271 = scmp.eq.s32.totalorder %s25, 0
    %p272 = por %p270, %p271
    %s273 = ssub.s32 %s26, %s38
    %p274 = scmp.eq.s32.totalorder %s273, 0
    %s276 = sadd.s32 %s275, 1
    %s277 = scalar_select %p274, %s275, %s276
    %p280 = pneg %p274
    %p281 = scmp.eq.s32.totalorder %s19, 1
    %p282 = por %p280, %p281
    %p283 = scmp.ne.s32.totalorder %s275, %s278
    %p284 = scmp.eq.s32.totalorder %s19, 0
    %p285 = por %p283, %p284
    %p286 = scmp.ne.s32.totalorder %s275, %s278
    %p287 = scmp.eq.s32.totalorder %s24, 1
    %p288 = por %p286, %p287
    %p289 = scmp.ne.s32.totalorder %s278, %s279
    %p290 = scmp.eq.s32.totalorder %s24, 0
    %p291 = por %p289, %p290
    %p292 = scmp.ne.s32.totalorder %s278, %s279
    %p293 = scmp.eq.s32.totalorder %s25, 1
    %p294 = por %p292, %p293
    %p296 = scmp.ne.s32.totalorder %s279, %s295
    %p297 = scmp.eq.s32.totalorder %s25, 0
    %p298 = por %p296, %p297
    %s299 = ssub.s32 %s26, %s38
    %p300 = scmp.eq.s32.totalorder %s299, 0
    %s302 = sadd.s32 %s301, 1
    %s303 = scalar_select %p300, %s301, %s302
    %p306 = pneg %p300
    %p307 = scmp.eq.s32.totalorder %s19, 1
    %p308 = por %p306, %p307
    %p309 = scmp.ne.s32.totalorder %s301, %s304
    %p310 = scmp.eq.s32.totalorder %s19, 0
    %p311 = por %p309, %p310
    %p312 = scmp.ne.s32.totalorder %s301, %s304
    %p313 = scmp.eq.s32.totalorder %s24, 1
    %p314 = por %p312, %p313
    %p315 = scmp.ne.s32.totalorder %s304, %s305
    %p316 = scmp.eq.s32.totalorder %s24, 0
    %p317 = por %p315, %p316
    %p318 = scmp.ne.s32.totalorder %s304, %s305
    %p319 = scmp.eq.s32.totalorder %s25, 1
    %p320 = por %p318, %p319
    %p322 = scmp.ne.s32.totalorder %s305, %s321
    %p323 = scmp.eq.s32.totalorder %s25, 0
    %p324 = por %p322, %p323
    %s325 = ssub.s32 %s26, %s38
    %p326 = scmp.eq.s32.totalorder %s325, 0
    %s328 = sadd.s32 %s327, 1
    %s329 = scalar_select %p326, %s327, %s328
    %p332 = pneg %p326
    %p333 = scmp.eq.s32.totalorder %s19, 1
    %p334 = por %p332, %p333
    %p335 = scmp.ne.s32.totalorder %s327, %s330
    %p336 = scmp.eq.s32.totalorder %s19, 0
    %p337 = por %p335, %p336
    %p338 = scmp.ne.s32.totalorder %s327, %s330
    %p339 = scmp.eq.s32.totalorder %s24, 1
    %p340 = por %p338, %p339
    %p341 = scmp.ne.s32.totalorder %s330, %s331
    %p342 = scmp.eq.s32.totalorder %s24, 0
    %p343 = por %p341, %p342
    %p344 = scmp.ne.s32.totalorder %s330, %s331
    %p345 = scmp.eq.s32.totalorder %s25, 1
    %p346 = por %p344, %p345
    %p348 = scmp.ne.s32.totalorder %s331, %s347
    %p349 = scmp.eq.s32.totalorder %s25, 0
    %p350 = por %p348, %p349
    %s351 = ssub.s32 %s26, %s38
    %p352 = scmp.eq.s32.totalorder %s351, 0
    %s354 = sadd.s32 %s353, 1
    %s355 = scalar_select %p352, %s353, %s354
    %p358 = pneg %p352
    %p359 = scmp.eq.s32.totalorder %s19, 1
    %p360 = por %p358, %p359
    %p361 = scmp.ne.s32.totalorder %s353, %s356
    %p362 = scmp.eq.s32.totalorder %s19, 0
    %p363 = por %p361, %p362
    %p364 = scmp.ne.s32.totalorder %s353, %s356
    %p365 = scmp.eq.s32.totalorder %s24, 1
    %p366 = por %p364, %p365
    %p367 = scmp.ne.s32.totalorder %s356, %s357
    %p368 = scmp.eq.s32.totalorder %s24, 0
    %p369 = por %p367, %p368
    %p370 = scmp.ne.s32.totalorder %s356, %s357
    %p371 = scmp.eq.s32.totalorder %s25, 1
    %p372 = por %p370, %p371
    %p374 = scmp.ne.s32.totalorder %s357, %s373
    %p375 = scmp.eq.s32.totalorder %s25, 0
    %p376 = por %p374, %p375
    %s377 = ssub.s32 %s26, %s38
    %s378 = ssub.s32 %s27, %s34
    %s379 = sor.u32 %s377, %s378
    %p380 = scmp.eq.s32.totalorder %s379, 0
    %s382 = sadd.s32 %s381, 1
    %s383 = scalar_select %p380, %s381, %s382
    %p386 = pneg %p380
    %p387 = scmp.eq.s32.totalorder %s19, 1
    %p388 = por %p386, %p387
    %p389 = scmp.ne.s32.totalorder %s381, %s384
    %p390 = scmp.eq.s32.totalorder %s19, 0
    %p391 = por %p389, %p390
    %p392 = scmp.ne.s32.totalorder %s381, %s384
    %p393 = scmp.eq.s32.totalorder %s24, 1
    %p394 = por %p392, %p393
    %p395 = scmp.ne.s32.totalorder %s384, %s385
    %p396 = scmp.eq.s32.totalorder %s24, 0
    %p397 = por %p395, %p396
    %p398 = scmp.ne.s32.totalorder %s384, %s385
    %p399 = scmp.eq.s32.totalorder %s25, 1
    %p400 = por %p398, %p399
    %p402 = scmp.ne.s32.totalorder %s385, %s401
    %p403 = scmp.eq.s32.totalorder %s25, 0
    %p404 = por %p402, %p403
    %p405 = scmp.le.s32.totalorder 1, %s19
    %p406 = scmp.lt.s32.totalorder %s19, 3
    %p407 = pnand %p405, %p406
    %p408 = pneg %p407
    // Predicated region
    $region9: #{_lambda_.3} parent=5 // pred_check
      _
    $region10: #{_lambda_.3} parent=5 // pred_check_branch
      %410 = sbr.rel (%p407) target = $region12
    $region11: #{_lambda_.3} parent=5 // pred_region
      %s411 = ssub.s32 %s19, 1
      // Predicated region
      $region13: #{_lambda_.3} parent=11 // pred_check
        %p412 = pneg %p57
      $region14: #{_lambda_.3} parent=11 // pred_check_branch
        %414 = sbr.rel (%p412) target = $region16
      $region15: #{_lambda_.3} parent=11 // pred_region
        %s415 = smul.u32 2, %s29
        %p416 = scmp.lt.s32.totalorder %s415, 1
        %s417 = scalar_select %p416, %s415, 1
        %s418 = smul.addr %s417, 4
        %s419 = scalar_lea.vmem %s0, %s418
        %s420 = smul.u32 2, %s29
      $region16: #{_lambda_.3} parent=11 // pred_fallthru
        _
    $region12: #{_lambda_.3} parent=5 // pred_fallthru
      _
    %p421 = scmp.lt.s32.totalorder %s19, 2
    // Predicated region
    $region17: #{_lambda_.3} parent=5 // pred_check
      %p422 = pneg %p421
    $region18: #{_lambda_.3} parent=5 // pred_check_branch
      %424 = sbr.rel (%p422) target = $region20
    $region19: #{_lambda_.3} parent=5 // pred_region
      // Predicated region
      $region21: #{_lambda_.3} parent=19 // pred_check
        %p425 = pneg %p77
      $region22: #{_lambda_.3} parent=19 // pred_check_branch
        %427 = sbr.rel (%p425) target = $region24
      $region23: #{_lambda_.3} parent=19 // pred_region
        %p428 = scmp.lt.s32.totalorder %s26, 1
        %s429 = scalar_select %p428, %s26, 1
        %s430 = smul.addr %s429, 4
        %s431 = smul.addr %s430, 4
        %s432 = scalar_lea.vmem %s1, %s431
      $region24: #{_lambda_.3} parent=19 // pred_fallthru
        _
      // Predicated region
      $region25: #{_lambda_.3} parent=19 // pred_check
        %p433 = pneg %p103
      $region26: #{_lambda_.3} parent=19 // pred_check_branch
        %435 = sbr.rel (%p433) target = $region28
      $region27: #{_lambda_.3} parent=19 // pred_region
        %p436 = scmp.lt.s32.totalorder %s26, 1
        %s437 = scalar_select %p436, %s26, 1
        %s438 = scalar_lea.vmem %s2, %s437
      $region28: #{_lambda_.3} parent=19 // pred_fallthru
        _
      // Predicated region
      $region29: #{_lambda_.3} parent=19 // pred_check
        %p439 = pneg %p129
      $region30: #{_lambda_.3} parent=19 // pred_check_branch
        %441 = sbr.rel (%p439) target = $region32
      $region31: #{_lambda_.3} parent=19 // pred_region
        %p442 = scmp.lt.s32.totalorder %s26, 1
        %s443 = scalar_select %p442, %s26, 1
        %s444 = smul.addr %s443, 2
        %s445 = smul.addr %s444, 4
        %s446 = scalar_lea.vmem %s3, %s445
      $region32: #{_lambda_.3} parent=19 // pred_fallthru
        _
      // Predicated region
      $region33: #{_lambda_.3} parent=19 // pred_check
        %p447 = pneg %p155
      $region34: #{_lambda_.3} parent=19 // pred_check_branch
        %449 = sbr.rel (%p447) target = $region36
      $region35: #{_lambda_.3} parent=19 // pred_region
        %p450 = scmp.lt.s32.totalorder %s26, 1
        %s451 = scalar_select %p450, %s26, 1
        %s452 = scalar_lea.vmem %s4, %s451
      $region36: #{_lambda_.3} parent=19 // pred_fallthru
        _
      // Predicated region
      $region37: #{_lambda_.3} parent=19 // pred_check
        %p453 = pneg %p181
      $region38: #{_lambda_.3} parent=19 // pred_check_branch
        %455 = sbr.rel (%p453) target = $region40
      $region39: #{_lambda_.3} parent=19 // pred_region
        %p456 = scmp.lt.s32.totalorder %s26, 1
        %s457 = scalar_select %p456, %s26, 1
        %s458 = scalar_lea.vmem %s5, %s457
      $region40: #{_lambda_.3} parent=19 // pred_fallthru
        _
      // Predicated region
      $region41: #{_lambda_.3} parent=19 // pred_check
        %p459 = pneg %p207
      $region42: #{_lambda_.3} parent=19 // pred_check_branch
        %461 = sbr.rel (%p459) target = $region44
      $region43: #{_lambda_.3} parent=19 // pred_region
        %p462 = scmp.lt.s32.totalorder %s26, 1
        %s463 = scalar_select %p462, %s26, 1
        %s464 = scalar_lea.vmem %s6, %s463
      $region44: #{_lambda_.3} parent=19 // pred_fallthru
        _
      // Predicated region
      $region45: #{_lambda_.3} parent=19 // pred_check
        %p465 = pneg %p233
      $region46: #{_lambda_.3} parent=19 // pred_check_branch
        %467 = sbr.rel (%p465) target = $region48
      $region47: #{_lambda_.3} parent=19 // pred_region
        %p468 = scmp.lt.s32.totalorder %s26, 1
        %s469 = scalar_select %p468, %s26, 1
        %s470 = smul.addr %s469, 4
        %s471 = smul.addr %s470, 4
        %s472 = scalar_lea.vmem %s7, %s471
      $region48: #{_lambda_.3} parent=19 // pred_fallthru
        _
      // Predicated region
      $region49: #{_lambda_.3} parent=19 // pred_check
        %p473 = pneg %p259
      $region50: #{_lambda_.3} parent=19 // pred_check_branch
        %475 = sbr.rel (%p473) target = $region52
      $region51: #{_lambda_.3} parent=19 // pred_region
        %p476 = scmp.lt.s32.totalorder %s26, 1
        %s477 = scalar_select %p476, %s26, 1
        %s478 = scalar_lea.vmem %s8, %s477
      $region52: #{_lambda_.3} parent=19 // pred_fallthru
        _
      // Predicated region
      $region53: #{_lambda_.3} parent=19 // pred_check
        %p479 = pneg %p285
      $region54: #{_lambda_.3} parent=19 // pred_check_branch
        %481 = sbr.rel (%p479) target = $region56
      $region55: #{_lambda_.3} parent=19 // pred_region
        %p482 = scmp.lt.s32.totalorder %s26, 1
        %s483 = scalar_select %p482, %s26, 1
        %s484 = scalar_lea.vmem %s9, %s483
      $region56: #{_lambda_.3} parent=19 // pred_fallthru
        _
      // Predicated region
      $region57: #{_lambda_.3} parent=19 // pred_check
        %p485 = pneg %p311
      $region58: #{_lambda_.3} parent=19 // pred_check_branch
        %487 = sbr.rel (%p485) target = $region60
      $region59: #{_lambda_.3} parent=19 // pred_region
        %p488 = scmp.lt.s32.totalorder %s26, 1
        %s489 = scalar_select %p488, %s26, 1
        %s490 = scalar_lea.vmem %s10, %s489
      $region60: #{_lambda_.3} parent=19 // pred_fallthru
        _
      // Predicated region
      $region61: #{_lambda_.3} parent=19 // pred_check
        %p491 = pneg %p337
      $region62: #{_lambda_.3} parent=19 // pred_check_branch
        %493 = sbr.rel (%p491) target = $region64
      $region63: #{_lambda_.3} parent=19 // pred_region
        %p494 = scmp.lt.s32.totalorder %s26, 1
        %s495 = scalar_select %p494, %s26, 1
        %s496 = smul.addr %s495, 8
        %s497 = smul.addr %s496, 4
        %s498 = scalar_lea.vmem %s11, %s497
      $region64: #{_lambda_.3} parent=19 // pred_fallthru
        _
      // Predicated region
      $region65: #{_lambda_.3} parent=19 // pred_check
        %p499 = pneg %p363
      $region66: #{_lambda_.3} parent=19 // pred_check_branch
        %501 = sbr.rel (%p499) target = $region68
      $region67: #{_lambda_.3} parent=19 // pred_region
        %p502 = scmp.lt.s32.totalorder %s26, 1
        %s503 = scalar_select %p502, %s26, 1
        %s504 = scalar_lea.vmem %s12, %s503
      $region68: #{_lambda_.3} parent=19 // pred_fallthru
        _
    $region20: #{_lambda_.3} parent=5 // pred_fallthru
      _
    %p505 = scmp.le.s32.totalorder 1, %s19
    %p506 = scmp.lt.s32.totalorder %s19, 3
    %p507 = pnand %p505, %p506
    %p508 = pneg %p507
    // Predicated region
    $region69: #{_lambda_.3} parent=5 // pred_check
      _
    $region70: #{_lambda_.3} parent=5 // pred_check_branch
      %510 = sbr.rel (%p507) target = $region72
    $region71: #{_lambda_.3} parent=5 // pred_region
      %s511 = ssub.s32 %s19, 1
      %s512 = smul.u32 2, %s29
      %p513 = scmp.lt.s32.totalorder %s512, 1
      %s514 = scalar_select %p513, %s512, 1
      %s515 = smul.addr %s514, 4
      %s516 = scalar_lea.vmem %s0, %s515
      %p517 = pneg %p57
      %p518 = pneg %p54
      %p519 = scmp.lt.s32.totalorder %s28, 1
      %s520 = scalar_select %p519, %s28, 1
      %s521 = smul.addr %s520, 4
      %s522 = smul.addr %s521, 4
      %s523 = scalar_lea.vmem %s1, %s522
      %p524 = pneg %p83
      %p525 = pneg %p80
      %p526 = scmp.lt.s32.totalorder %s28, 1
      %s527 = scalar_select %p526, %s28, 1
      %s528 = scalar_lea.vmem %s2, %s527
      %p529 = pneg %p109
      %p530 = pneg %p106
      %p531 = scmp.lt.s32.totalorder %s28, 1
      %s532 = scalar_select %p531, %s28, 1
      %s533 = smul.addr %s532, 2
      %s534 = smul.addr %s533, 4
      %s535 = scalar_lea.vmem %s3, %s534
      %p536 = pneg %p135
      %p537 = pneg %p132
      %p538 = scmp.lt.s32.totalorder %s28, 1
      %s539 = scalar_select %p538, %s28, 1
      %s540 = scalar_lea.vmem %s4, %s539
      %p541 = pneg %p161
      %p542 = pneg %p158
      %p543 = scmp.lt.s32.totalorder %s28, 1
      %s544 = scalar_select %p543, %s28, 1
      %s545 = scalar_lea.vmem %s5, %s544
      %p546 = pneg %p187
      %p547 = pneg %p184
      %p548 = scmp.lt.s32.totalorder %s28, 1
      %s549 = scalar_select %p548, %s28, 1
      %s550 = scalar_lea.vmem %s6, %s549
      %p551 = pneg %p213
      %p552 = pneg %p210
      %p553 = scmp.lt.s32.totalorder %s28, 1
      %s554 = scalar_select %p553, %s28, 1
      %s555 = smul.addr %s554, 4
      %s556 = smul.addr %s555, 4
      %s557 = scalar_lea.vmem %s7, %s556
      %p558 = pneg %p239
      %p559 = pneg %p236
      %p560 = scmp.lt.s32.totalorder %s28, 1
      %s561 = scalar_select %p560, %s28, 1
      %s562 = scalar_lea.vmem %s8, %s561
      %p563 = pneg %p265
      %p564 = pneg %p262
      %p565 = scmp.lt.s32.totalorder %s28, 1
      %s566 = scalar_select %p565, %s28, 1
      %s567 = scalar_lea.vmem %s9, %s566
      %p568 = pneg %p291
      %p569 = pneg %p288
      %p570 = scmp.lt.s32.totalorder %s28, 1
      %s571 = scalar_select %p570, %s28, 1
      %s572 = scalar_lea.vmem %s10, %s571
      %p573 = pneg %p317
      %p574 = pneg %p314
      %p575 = scmp.lt.s32.totalorder %s28, 1
      %s576 = scalar_select %p575, %s28, 1
      %s577 = smul.addr %s576, 8
      %s578 = smul.addr %s577, 4
      %s579 = scalar_lea.vmem %s11, %s578
      %p580 = pneg %p343
      %p581 = pneg %p340
      %p582 = scmp.lt.s32.totalorder %s28, 1
      %s583 = scalar_select %p582, %s28, 1
      %s584 = scalar_lea.vmem %s12, %s583
      %p585 = pneg %p369
      %p586 = pneg %p366
      %p587 = pneg %p397
      %p588 = pneg %p394
      %s589 = smul.u32 2, %s29
      %p590 = scmp.lt.s32.totalorder %s28, 1
      %s591 = scalar_select %p590, %s28, 1
      %p592 = scmp.lt.s32.totalorder %s589, 1
      %s593 = scalar_select %p592, %s589, 1
      %s594 = smul.addr %s591, 2
      %s595 = sadd.s32 %s593, %s594
      %s596 = smul.addr %s595, 8
      %s597 = scalar_lea.vmem %s13, %s596
      %s598 = smul.u32 2, %s29
      %p599 = scmp.lt.s32.totalorder %s598, 1
      %s600 = scalar_select %p599, %s598, 1
      %s601 = smul.addr %s600, 4
      %s602 = scalar_lea.vmem %s0, %s601
      %s603 = smul.u32 2, %s29
      %p604 = scmp.lt.s32.totalorder %s28, 1
      %s605 = scalar_select %p604, %s28, 1
      %s606 = smul.addr %s605, 4
      %s607 = smul.addr %s606, 4
      %s608 = scalar_lea.vmem %s1, %s607
      %p609 = scmp.lt.s32.totalorder %s28, 1
      %s610 = scalar_select %p609, %s28, 1
      %s611 = scalar_lea.vmem %s2, %s610
      %p612 = scmp.lt.s32.totalorder %s28, 1
      %s613 = scalar_select %p612, %s28, 1
      %s614 = smul.addr %s613, 2
      %s615 = smul.addr %s614, 4
      %s616 = scalar_lea.vmem %s3, %s615
      %p617 = scmp.lt.s32.totalorder %s28, 1
      %s618 = scalar_select %p617, %s28, 1
      %s619 = scalar_lea.vmem %s4, %s618
      %p620 = scmp.lt.s32.totalorder %s28, 1
      %s621 = scalar_select %p620, %s28, 1
      %s622 = scalar_lea.vmem %s5, %s621
      %p623 = scmp.lt.s32.totalorder %s28, 1
      %s624 = scalar_select %p623, %s28, 1
      %s625 = scalar_lea.vmem %s6, %s624
      %p626 = scmp.lt.s32.totalorder %s28, 1
      %s627 = scalar_select %p626, %s28, 1
      %s628 = smul.addr %s627, 4
      %s629 = smul.addr %s628, 4
      %s630 = scalar_lea.vmem %s7, %s629
      %p631 = scmp.lt.s32.totalorder %s28, 1
      %s632 = scalar_select %p631, %s28, 1
      %s633 = scalar_lea.vmem %s8, %s632
      %p634 = scmp.lt.s32.totalorder %s28, 1
      %s635 = scalar_select %p634, %s28, 1
      %s636 = scalar_lea.vmem %s9, %s635
      %p637 = scmp.lt.s32.totalorder %s28, 1
      %s638 = scalar_select %p637, %s28, 1
      %s639 = scalar_lea.vmem %s10, %s638
      %p640 = scmp.lt.s32.totalorder %s28, 1
      %s641 = scalar_select %p640, %s28, 1
      %s642 = smul.addr %s641, 8
      %s643 = smul.addr %s642, 4
      %s644 = scalar_lea.vmem %s11, %s643
      %p645 = scmp.lt.s32.totalorder %s28, 1
      %s646 = scalar_select %p645, %s28, 1
      %s647 = scalar_lea.vmem %s12, %s646
      %s648 = smul.u32 2, %s29
      %p649 = scmp.lt.s32.totalorder %s28, 1
      %s650 = scalar_select %p649, %s28, 1
      %p651 = scmp.lt.s32.totalorder %s648, 1
      %s652 = scalar_select %p651, %s648, 1
      %s653 = smul.addr %s650, 2
      %s654 = sadd.s32 %s652, %s653
      %s655 = smul.addr %s654, 8
      %s656 = scalar_lea.vmem %s13, %s655
      %s657 = smul.u32 2, %s29
      %v659 = vld [vmem:[%s602] sm:$0xf]
      %v660 = vld [vmem:[%s602 + $0x4] sm:$0xf]
      %v661 = vld [vmem:[%s608] sm:$0xf]
      %v662 = vld [vmem:[%s608 + $0x4] sm:$0xf]
      %v663 = vld [vmem:[%s608 + $0x8] sm:$0xf]
      %v664 = vld [vmem:[%s608 + $0xc] sm:$0xf]
      %v665 = vld [vmem:[%s611] sm:$0x1]
      %v667 = vlaneseq
      %v668 = vshrl.u32 %v667, 7
      %v669 = vsub.s32 0, %v668
      %v670 = vrot.slane %v665, %v669
      %v674 = vunpack.c.l.b16 %v659
      %v675 = vunpack.c.l.b16 %v660
      %v676 = vpack.c.b16 %v675, %v674
      %v681 = vunpack.c.l.b16 %v661
      %v682 = vunpack.c.l.b16 %v662
      %v683 = vunpack.c.l.b16 %v663
      %v684 = vunpack.c.l.b16 %v664
      %v685 = vpack.c.b16 %v682, %v681
      %v686 = vpack.c.b16 %v684, %v683
      %vm689 = vcmask 261120
      %v691 = vsel %vm689, %v676, 0
      %693 = vmatprep.subr.bf16.mxu0 0
      %694 = vmatpush1.bf16.msra.mxu0 %v685
      %695 = vmatprep.subr.bf16.mxu0 0
      %696 = vmatpush1.bf16.msra.mxu0 %v686
      %697 = vmatprep.subr.bf16.mxu0 0
      %698 = vmatpush1.bf16.msra.mxu0 0
      %699 = vmatprep.subr.bf16.mxu0 0
      %700 = vmatpush1.bf16.msra.mxu0 0
      %701 = vmatprep.subr.bf16.mxu0 0
      %702 = vmatpush1.bf16.msra.mxu0 0
      %703 = vmatprep.subr.bf16.mxu0 0
      %704 = vmatpush1.bf16.msra.mxu0 0
      %705 = vmatprep.subr.bf16.mxu0 0
      %706 = vmatpush1.bf16.msra.mxu0 0
      %707 = vmatprep.subr.bf16.mxu0 0
      %708 = vmatpush1.bf16.msra.mxu0 0
      %709 = vmatprep.subr.bf16.mxu0 0
      %710 = vmatpush1.bf16.msra.mxu0 0
      %711 = vmatprep.subr.bf16.mxu0 0
      %712 = vmatpush1.bf16.msra.mxu0 0
      %713 = vmatprep.subr.bf16.mxu0 0
      %714 = vmatpush1.bf16.msra.mxu0 0
      %715 = vmatprep.subr.bf16.mxu0 0
      %716 = vmatpush1.bf16.msra.mxu0 0
      %717 = vmatprep.subr.bf16.mxu0 0
      %718 = vmatpush1.bf16.msra.mxu0 0
      %719 = vmatprep.subr.bf16.mxu0 0
      %720 = vmatpush1.bf16.msra.mxu0 0
      %721 = vmatprep.subr.bf16.mxu0 0
      %722 = vmatpush1.bf16.msra.mxu0 0
      %723 = vmatprep.subr.bf16.mxu0 0
      %724 = vmatpush1.bf16.msra.mxu0 0
      %725 = vmatprep.mubr.bf16.mxu0 0
      %726 = vmatmul.mubr.bf16.gmra.mrb[0].mxu0 %v691
      %v727 = vpop.f32.mrb[0].mxu0
      %v728 = vadd.f32 %v670, %v727
      %v729 = vpop.f32.mrb[0].mxu0
      %v730 = vpop.f32.mrb[0].mxu0
      %v731 = vadd.f32 %v670, %v730
      %v732 = vpop.f32.mrb[0].mxu0
      %733 = vdwg.mxu0
      %v734 = vmax.f32 %v728, 0.0
      %v735 = vmax.f32 %v731, 0.0
      %v736 = vpack.c.bf16 %v735, %v734
      %v737 = vld [vmem:[%s616] sm:$0xf]
      %v738 = vld [vmem:[%s616 + $0x4] sm:$0xf]
      %v739 = vld [vmem:[%s619] sm:$0x1]
      %v741 = vlaneseq
      %v742 = vshrl.u32 %v741, 7
      %v743 = vsub.s32 0, %v742
      %v744 = vrot.slane %v739, %v743
      %v748 = vunpack.c.l.b16 %v737
      %v749 = vunpack.c.l.b16 %v738
      %v750 = vpack.c.b16 %v749, %v748
      %vm752 = vcmask 130048
      %v754 = vsel %vm752, %v736, 0
      %756 = vmatprep.subr.bf16.mxu0 0
      %757 = vmatpush1.bf16.msra.mxu0 %v750
      %758 = vmatprep.subr.bf16.mxu0 0
      %759 = vmatpush1.bf16.msra.mxu0 0
      %760 = vmatprep.subr.bf16.mxu0 0
      %761 = vmatpush1.bf16.msra.mxu0 0
      %762 = vmatprep.subr.bf16.mxu0 0
      %763 = vmatpush1.bf16.msra.mxu0 0
      %764 = vmatprep.subr.bf16.mxu0 0
      %765 = vmatpush1.bf16.msra.mxu0 0
      %766 = vmatprep.subr.bf16.mxu0 0
      %767 = vmatpush1.bf16.msra.mxu0 0
      %768 = vmatprep.subr.bf16.mxu0 0
      %769 = vmatpush1.bf16.msra.mxu0 0
      %770 = vmatprep.subr.bf16.mxu0 0
      %771 = vmatpush1.bf16.msra.mxu0 0
      %772 = vmatprep.subr.bf16.mxu0 0
      %773 = vmatpush1.bf16.msra.mxu0 0
      %774 = vmatprep.subr.bf16.mxu0 0
      %775 = vmatpush1.bf16.msra.mxu0 0
      %776 = vmatprep.subr.bf16.mxu0 0
      %777 = vmatpush1.bf16.msra.mxu0 0
      %778 = vmatprep.subr.bf16.mxu0 0
      %779 = vmatpush1.bf16.msra.mxu0 0
      %780 = vmatprep.subr.bf16.mxu0 0
      %781 = vmatpush1.bf16.msra.mxu0 0
      %782 = vmatprep.subr.bf16.mxu0 0
      %783 = vmatpush1.bf16.msra.mxu0 0
      %784 = vmatprep.subr.bf16.mxu0 0
      %785 = vmatpush1.bf16.msra.mxu0 0
      %786 = vmatprep.subr.bf16.mxu0 0
      %787 = vmatpush1.bf16.msra.mxu0 0
      %788 = vmatprep.mubr.bf16.mxu0 0
      %789 = vmatmul.mubr.bf16.gmra.mrb[0].mxu0 %v754
      %v790 = vpop.f32.mrb[0].mxu0
      %v791 = vadd.f32 %v744, %v790
      %v792 = vpop.f32.mrb[0].mxu0
      %v793 = vpop.f32.mrb[0].mxu0
      %v794 = vadd.f32 %v744, %v793
      %v795 = vpop.f32.mrb[0].mxu0
      %796 = vdwg.mxu0
      %v797 = vmax.f32 %v791, 0.0
      %v798 = vmax.f32 %v794, 0.0
      %v799 = vsel %vm689, %v797, 0.0
      %800 = vadd.xlane.f32.xlu0 %v799
      %v801 = vpop.xlane.xlu0 %800
      %v802 = vsel %vm689, %v798, 0.0
      %803 = vadd.xlane.f32.xlu0 %v802
      %v804 = vpop.xlane.xlu0 %803
      %v805 = vrcp.pop 32.0
      %v806 = vmul.f32 %v801, %v805
      %v807 = vmul.f32 %v804, %v805
      %v808 = vsub.f32 %v797, %v806
      %v809 = vsub.f32 %v798, %v807
      %v810 = vmul.f32 %v808, %v808
      %v811 = vmul.f32 %v809, %v809
      %v812 = vsel %vm689, %v810, 0.0
      %813 = vadd.xlane.f32.xlu0 %v812
      %v814 = vpop.xlane.xlu0 %813
      %v815 = vsel %vm689, %v811, 0.0
      %816 = vadd.xlane.f32.xlu0 %v815
      %v817 = vpop.xlane.xlu0 %816
      %v818 = vmul.f32 %v814, %v805
      %v819 = vmul.f32 %v817, %v805
      %v820 = vadd.f32 %v818, 1e-05
      %v821 = vadd.f32 %v819, 1e-05
      %v822 = vrsqrt.pop %v820
      %v823 = vrsqrt.pop %v821
      %v824 = vmul.f32 %v808, %v822
      %v825 = vmul.f32 %v809, %v823
      %v826 = vld [vmem:[%s622] sm:$0x1]
      %v828 = vlaneseq
      %v829 = vshrl.u32 %v828, 7
      %v830 = vsub.s32 0, %v829
      %v831 = vrot.slane %v826, %v830
      %v833 = vmul.f32 %v824, %v831
      %v834 = vmul.f32 %v825, %v831
      %v835 = vld [vmem:[%s625] sm:$0x1]
      %v837 = vlaneseq
      %v838 = vshrl.u32 %v837, 7
      %v839 = vsub.s32 0, %v838
      %v840 = vrot.slane %v835, %v839
      %v842 = vadd.f32 %v833, %v840
      %v843 = vadd.f32 %v834, %v840
      %v844 = vpack.c.bf16 %v843, %v842
      %v845 = vld [vmem:[%s630] sm:$0xf]
      %v846 = vld [vmem:[%s630 + $0x4] sm:$0xf]
      %v847 = vld [vmem:[%s630 + $0x8] sm:$0xf]
      %v848 = vld [vmem:[%s630 + $0xc] sm:$0xf]
      %v849 = vld [vmem:[%s633] sm:$0x1]
      %v851 = vlaneseq
      %v852 = vshrl.u32 %v851, 7
      %v853 = vsub.s32 0, %v852
      %v854 = vrot.slane %v849, %v853
      %v860 = vunpack.c.l.b16 %v845
      %v861 = vunpack.c.l.b16 %v846
      %v862 = vunpack.c.l.b16 %v847
      %v863 = vunpack.c.l.b16 %v848
      %v864 = vpack.c.b16 %v861, %v860
      %v865 = vpack.c.b16 %v863, %v862
      %v869 = vsel %vm689, %v844, 0
      %871 = vmatprep.subr.bf16.mxu0 0
      %872 = vmatpush1.bf16.msra.mxu0 %v864
      %873 = vmatprep.subr.bf16.mxu0 0
      %874 = vmatpush1.bf16.msra.mxu0 %v865
      %875 = vmatprep.subr.bf16.mxu0 0
      %876 = vmatpush1.bf16.msra.mxu0 0
      %877 = vmatprep.subr.bf16.mxu0 0
      %878 = vmatpush1.bf16.msra.mxu0 0
      %879 = vmatprep.subr.bf16.mxu0 0
      %880 = vmatpush1.bf16.msra.mxu0 0
      %881 = vmatprep.subr.bf16.mxu0 0
      %882 = vmatpush1.bf16.msra.mxu0 0
      %883 = vmatprep.subr.bf16.mxu0 0
      %884 = vmatpush1.bf16.msra.mxu0 0
      %885 = vmatprep.subr.bf16.mxu0 0
      %886 = vmatpush1.bf16.msra.mxu0 0
      %887 = vmatprep.subr.bf16.mxu0 0
      %888 = vmatpush1.bf16.msra.mxu0 0
      %889 = vmatprep.subr.bf16.mxu0 0
      %890 = vmatpush1.bf16.msra.mxu0 0
      %891 = vmatprep.subr.bf16.mxu0 0
      %892 = vmatpush1.bf16.msra.mxu0 0
      %893 = vmatprep.subr.bf16.mxu0 0
      %894 = vmatpush1.bf16.msra.mxu0 0
      %895 = vmatprep.subr.bf16.mxu0 0
      %896 = vmatpush1.bf16.msra.mxu0 0
      %897 = vmatprep.subr.bf16.mxu0 0
      %898 = vmatpush1.bf16.msra.mxu0 0
      %899 = vmatprep.subr.bf16.mxu0 0
      %900 = vmatpush1.bf16.msra.mxu0 0
      %901 = vmatprep.subr.bf16.mxu0 0
      %902 = vmatpush1.bf16.msra.mxu0 0
      %903 = vmatprep.mubr.bf16.mxu0 0
      %904 = vmatmul.mubr.bf16.gmra.mrb[0].mxu0 %v869
      %v905 = vpop.f32.mrb[0].mxu0
      %v906 = vadd.f32 %v854, %v905
      %v907 = vpop.f32.mrb[0].mxu0
      %v908 = vpop.f32.mrb[0].mxu0
      %v909 = vadd.f32 %v854, %v908
      %v910 = vpop.f32.mrb[0].mxu0
      %911 = vdwg.mxu0
      %v912 = vmax.f32 %v906, 0.0
      %v913 = vmax.f32 %v909, 0.0
      %vm914 = vcmask 523264
      %v915 = vsel %vm914, %v912, 0.0
      %916 = vadd.xlane.f32.xlu0 %v915
      %v917 = vpop.xlane.xlu0 %916
      %v918 = vsel %vm914, %v913, 0.0
      %919 = vadd.xlane.f32.xlu0 %v918
      %v920 = vpop.xlane.xlu0 %919
      %v921 = vrcp.pop 64.0
      %v922 = vmul.f32 %v917, %v921
      %v923 = vmul.f32 %v920, %v921
      %v924 = vsub.f32 %v912, %v922
      %v925 = vsub.f32 %v913, %v923
      %v926 = vmul.f32 %v924, %v924
      %v927 = vmul.f32 %v925, %v925
      %v928 = vsel %vm914, %v926, 0.0
      %929 = vadd.xlane.f32.xlu0 %v928
      %v930 = vpop.xlane.xlu0 %929
      %v931 = vsel %vm914, %v927, 0.0
      %932 = vadd.xlane.f32.xlu0 %v931
      %v933 = vpop.xlane.xlu0 %932
      %v934 = vmul.f32 %v930, %v921
      %v935 = vmul.f32 %v933, %v921
      %v936 = vadd.f32 %v934, 1e-05
      %v937 = vadd.f32 %v935, 1e-05
      %v938 = vrsqrt.pop %v936
      %v939 = vrsqrt.pop %v937
      %v940 = vmul.f32 %v924, %v938
      %v941 = vmul.f32 %v925, %v939
      %v942 = vld [vmem:[%s636] sm:$0x1]
      %v944 = vlaneseq
      %v945 = vshrl.u32 %v944, 7
      %v946 = vsub.s32 0, %v945
      %v947 = vrot.slane %v942, %v946
      %v949 = vmul.f32 %v940, %v947
      %v950 = vmul.f32 %v941, %v947
      %v951 = vld [vmem:[%s639] sm:$0x1]
      %v953 = vlaneseq
      %v954 = vshrl.u32 %v953, 7
      %v955 = vsub.s32 0, %v954
      %v956 = vrot.slane %v951, %v955
      %v958 = vadd.f32 %v949, %v956
      %v959 = vadd.f32 %v950, %v956
      %v960 = vpack.c.bf16 %v959, %v958
      %v961 = vld [vmem:[%s644] sm:$0xf]
      %v962 = vld [vmem:[%s644 + $0x4] sm:$0xf]
      %v963 = vld [vmem:[%s644 + $0x8] sm:$0xf]
      %v964 = vld [vmem:[%s644 + $0xc] sm:$0xf]
      %v965 = vld [vmem:[%s644 + $0x10] sm:$0xf]
      %v966 = vld [vmem:[%s644 + $0x14] sm:$0xf]
      %v967 = vld [vmem:[%s644 + $0x18] sm:$0xf]
      %v968 = vld [vmem:[%s644 + $0x1c] sm:$0xf]
      %v969 = vld [vmem:[%s647] sm:$0x1]
      %v971 = vlaneseq
      %v972 = vshrl.u32 %v971, 7
      %v973 = vsub.s32 0, %v972
      %v974 = vrot.slane %v969, %v973
      %v984 = vunpack.c.l.b16 %v961
      %v985 = vunpack.c.l.b16 %v962
      %v986 = vunpack.c.l.b16 %v963
      %v987 = vunpack.c.l.b16 %v964
      %v988 = vunpack.c.l.b16 %v965
      %v989 = vunpack.c.l.b16 %v966
      %v990 = vunpack.c.l.b16 %v967
      %v991 = vunpack.c.l.b16 %v968
      %v992 = vpack.c.b16 %v985, %v984
      %v993 = vpack.c.b16 %v987, %v986
      %v994 = vpack.c.b16 %v989, %v988
      %v995 = vpack.c.b16 %v991, %v990
      %v1001 = vsel %vm914, %v960, 0
      %1003 = vmatprep.subr.bf16.mxu0 0
      %1004 = vmatpush1.bf16.msra.mxu0 %v992
      %1005 = vmatprep.subr.bf16.mxu0 0
      %1006 = vmatpush1.bf16.msra.mxu0 %v993
      %1007 = vmatprep.subr.bf16.mxu0 0
      %1008 = vmatpush1.bf16.msra.mxu0 %v994
      %1009 = vmatprep.subr.bf16.mxu0 0
      %1010 = vmatpush1.bf16.msra.mxu0 %v995
      %1011 = vmatprep.subr.bf16.mxu0 0
      %1012 = vmatpush1.bf16.msra.mxu0 0
      %1013 = vmatprep.subr.bf16.mxu0 0
      %1014 = vmatpush1.bf16.msra.mxu0 0
      %1015 = vmatprep.subr.bf16.mxu0 0
      %1016 = vmatpush1.bf16.msra.mxu0 0
      %1017 = vmatprep.subr.bf16.mxu0 0
      %1018 = vmatpush1.bf16.msra.mxu0 0
      %1019 = vmatprep.subr.bf16.mxu0 0
      %1020 = vmatpush1.bf16.msra.mxu0 0
      %1021 = vmatprep.subr.bf16.mxu0 0
      %1022 = vmatpush1.bf16.msra.mxu0 0
      %1023 = vmatprep.subr.bf16.mxu0 0
      %1024 = vmatpush1.bf16.msra.mxu0 0
      %1025 = vmatprep.subr.bf16.mxu0 0
      %1026 = vmatpush1.bf16.msra.mxu0 0
      %1027 = vmatprep.subr.bf16.mxu0 0
      %1028 = vmatpush1.bf16.msra.mxu0 0
      %1029 = vmatprep.subr.bf16.mxu0 0
      %1030 = vmatpush1.bf16.msra.mxu0 0
      %1031 = vmatprep.subr.bf16.mxu0 0
      %1032 = vmatpush1.bf16.msra.mxu0 0
      %1033 = vmatprep.subr.bf16.mxu0 0
      %1034 = vmatpush1.bf16.msra.mxu0 0
      %1035 = vmatprep.mubr.bf16.mxu0 0
      %1036 = vmatmul.mubr.bf16.gmra.mrb[0].mxu0 %v1001
      %v1037 = vpop.f32.mrb[0].mxu0
      %v1038 = vadd.f32 %v974, %v1037
      %v1039 = vpop.f32.mrb[0].mxu0
      %v1040 = vpop.f32.mrb[0].mxu0
      %v1041 = vadd.f32 %v974, %v1040
      %v1042 = vpop.f32.mrb[0].mxu0
      %1043 = vdwg.mxu0
      %1044 = vst [vmem:[%s656] sm:$0xff] %v1038
      %1045 = vst [vmem:[%s656 + $0x8] sm:$0xff] %v1041
      %s1046 = smul.u32 2, %s29
      %p1047 = scmp.lt.s32.totalorder %s28, 1
      %s1048 = scalar_select %p1047, %s28, 1
      %p1049 = scmp.lt.s32.totalorder %s1046, 1
      %s1050 = scalar_select %p1049, %s1046, 1
      %s1051 = smul.addr %s1048, 2
      %s1052 = sadd.s32 %s1050, %s1051
      %s1053 = smul.addr %s1052, 8
      %s1054 = scalar_lea.vmem %s13, %s1053
      // Predicated region
      $region73: #{_lambda_.3} parent=71 // pred_check
        %p1055 = pneg %p394
      $region74: #{_lambda_.3} parent=71 // pred_check_branch
        %1057 = sbr.rel (%p1055) target = $region76
      $region75: #{_lambda_.3} parent=71 // pred_region
        %s1058 = smul.u32 2, %s29
      $region76: #{_lambda_.3} parent=71 // pred_fallthru
        _
    $region72: #{_lambda_.3} parent=5 // pred_fallthru
      _
    %p1059 = scmp.le.s32.totalorder 2, %s19
    // Predicated region
    $region77: #{_lambda_.3} parent=5 // pred_check
      %p1060 = pneg %p1059
    $region78: #{_lambda_.3} parent=5 // pred_check_branch
      %1062 = sbr.rel (%p1060) target = $region80
    $region79: #{_lambda_.3} parent=5 // pred_region
      %s1063 = ssub.s32 %s19, 2
      // Predicated region
      $region81: #{_lambda_.3} parent=79 // pred_check
        %p1064 = pneg %p400
      $region82: #{_lambda_.3} parent=79 // pred_check_branch
        %1066 = sbr.rel (%p1064) target = $region84
      $region83: #{_lambda_.3} parent=79 // pred_region
        %s1067 = smul.u32 2, %s31
        %p1068 = scmp.lt.s32.totalorder %s30, 1
        %s1069 = scalar_select %p1068, %s30, 1
        %p1070 = scmp.lt.s32.totalorder %s1067, 1
        %s1071 = scalar_select %p1070, %s1067, 1
        %s1072 = smul.addr %s1069, 2
        %s1073 = sadd.s32 %s1071, %s1072
        %s1074 = smul.addr %s1073, 8
        %s1075 = scalar_lea.vmem %s13, %s1074
      $region84: #{_lambda_.3} parent=79 // pred_fallthru
        _
    $region80: #{_lambda_.3} parent=5 // pred_fallthru
      _
  $region6: #{_lambda_.3} parent=0 // loop_footer
    %s23 = sadd.s32 1, %s19
  $region7: #{_lambda_.3} parent=0 // loop_footer_branch
    %18 = sbr.rel target = $region3
  $region8: #{_lambda_.3} parent=0 // loop_exit
    _

// kernel: _lambda_.2
$region0: #{_lambda_.2}
  #allocation0 [shape = 'u32[]', space=smem, size = 0x4, offset = 0x4, fixed_abs, tag = 'smem constant byte address 0x4 - core index']
  #allocation1 [shape = 'u32[144,128]{1,0:T(1,128)}', space=vmem, size = 0x12000, scoped, tag = 'internal scratch']
  #allocation2 [shape = 'f32[8,64]{1,0:T(8,128)}', space=vmem, size = 0x1000, scoped, tag = 'scratch operand']
  #allocation3 [shape = 'f32[8,64]{1,0:T(8,128)}', space=vmem, size = 0x1000, scoped, tag = 'scratch operand']
  #allocation4 [shape = 'f32[8,8,1]{2,1,0:T(8,128)}', space=vmem, size = 0x8000, scoped, tag = 'scratch operand']
  #allocation5 [shape = 'f32[8,8,1]{2,1,0:T(8,128)}', space=vmem, size = 0x8000, scoped, tag = 'scratch operand']
  #allocation6 [shape = 'f32[8,64]{1,0:T(8,128)}', space=vmem, size = 0x1000, scoped, tag = 'scratch operand']
  #allocation7 [shape = 'f32[8,64]{1,0:T(8,128)}', space=vmem, size = 0x1000, scoped, tag = 'scratch operand']
  %s0 = inlined_call_operand.vmem [shape: bf16[2,8,32], index: 0, kind: input, shape index: {}]
  %s1 = inlined_call_operand.vmem [shape: bf16[32,128], index: 1, kind: input, shape index: {}]
  %s2 = inlined_call_operand.vmem [shape: f32[1,128], index: 2, kind: input, shape index: {}]
  %s3 = inlined_call_operand.vmem [shape: f32[4,64], index: 3, kind: input, shape index: {}]
  %s4 = inlined_call_operand.vmem [shape: f32[1,64], index: 4, kind: input, shape index: {}]
  %s5 = inlined_call_operand.vmem [shape: bf16[64,128], index: 5, kind: input, shape index: {}]
  %s6 = inlined_call_operand.vmem [shape: f32[1,128], index: 6, kind: input, shape index: {}]
  %s7 = inlined_call_operand.vmem [shape: bf16[128,64], index: 7, kind: input, shape index: {}]
  %s8 = inlined_call_operand.vmem [shape: f32[1,64], index: 8, kind: input, shape index: {}]
  %s9 = inlined_call_operand.vmem [shape: f32[8,64], index: 9, kind: input, shape index: {}]
  %s10 = inlined_call_operand.vmem [shape: f32[1,64], index: 10, kind: input, shape index: {}]
  %s11 = inlined_call_operand.vmem [shape: bf16[64,32], index: 11, kind: input, shape index: {}]
  %s12 = inlined_call_operand.vmem [shape: f32[1,32], index: 12, kind: input, shape index: {}]
  %s13 = inlined_call_operand.vmem [shape: bf16[2,8,32], index: 13, kind: output, shape index: {}]
  %s14 = sld [smem:[#allocation0]]
  $region85: #{_lambda_.2} parent=0
    _
  %s16 = ssub.s32 1, %s14
  %s17 = scalar_select 0, %s16, %s14
  loop: start=0, step=1, limit=4
  $region2: #{_lambda_.2} parent=0 // loop_pre_header
    _
  $region3: #{_lambda_.2} parent=0 // loop_header
    %s19 = sphi 0, %s23
    %p20 = scmp.ge.s32.totalorder %s19, 4
    %s29 = sphi 0, %s31
    %s32 = sphi 0, %s29
    %s33 = sphi 0, %s32
    %s49 = sphi 0, %s33
    %s53 = sphi 0, %s53
    %s55 = sphi 0, %s53
    %s56 = sphi 0, %s55
    %s70 = sphi 0, %s56
    %s74 = sphi 0, %s74
    %s76 = sphi 0, %s74
    %s77 = sphi 0, %s76
    %s91 = sphi 0, %s77
    %s95 = sphi 0, %s95
    %s97 = sphi 0, %s95
    %s98 = sphi 0, %s97
    %s112 = sphi 0, %s98
    %s116 = sphi 0, %s116
    %s118 = sphi 0, %s116
    %s119 = sphi 0, %s118
    %s133 = sphi 0, %s119
    %s137 = sphi 0, %s137
    %s139 = sphi 0, %s137
    %s140 = sphi 0, %s139
    %s154 = sphi 0, %s140
    %s158 = sphi 0, %s158
    %s160 = sphi 0, %s158
    %s161 = sphi 0, %s160
    %s175 = sphi 0, %s161
    %s179 = sphi 0, %s179
    %s181 = sphi 0, %s179
    %s182 = sphi 0, %s181
    %s196 = sphi 0, %s182
    %s200 = sphi 0, %s200
    %s202 = sphi 0, %s200
    %s203 = sphi 0, %s202
    %s217 = sphi 0, %s203
    %s221 = sphi 0, %s221
    %s223 = sphi 0, %s221
    %s224 = sphi 0, %s223
    %s238 = sphi 0, %s224
    %s242 = sphi 0, %s242
    %s244 = sphi 0, %s242
    %s245 = sphi 0, %s244
    %s259 = sphi 0, %s245
    %s263 = sphi 0, %s263
    %s265 = sphi 0, %s263
    %s266 = sphi 0, %s265
    %s280 = sphi 0, %s266
    %s284 = sphi 0, %s284
    %s286 = sphi 0, %s284
    %s287 = sphi 0, %s286
    %s301 = sphi 0, %s287
    %s307 = sphi 0, %s309
    %s310 = sphi 0, %s307
    %s311 = sphi 0, %s310
    %s327 = sphi 0, %s311
  $region4: #{_lambda_.2} parent=0 // loop_header_branch
    %22 = sbr.rel (%p20) target = $region8
  $region5: #{_lambda_.2} parent=0 // loop_body
    %s24 = ssub.s32 %s19, 1
    %s25 = ssub.s32 %s19, 2
    %s26 = sadd.s32 %s19, 1
    %s27 = ssub.s32 %s19, %s26
    %p28 = scmp.eq.s32.totalorder %s27, 0
    %s30 = sadd.s32 %s29, 1
    %s31 = scalar_select %p28, %s29, %s30
    %p34 = pneg %p28
    %p35 = scmp.eq.s32.totalorder %s19, 1
    %p36 = por %p34, %p35
    %p37 = scmp.ne.s32.totalorder %s29, %s32
    %p38 = scmp.eq.s32.totalorder %s19, 0
    %p39 = por %p37, %p38
    %p40 = scmp.ne.s32.totalorder %s29, %s32
    %p41 = scmp.eq.s32.totalorder %s24, 1
    %p42 = por %p40, %p41
    %p43 = scmp.ne.s32.totalorder %s32, %s33
    %p44 = scmp.eq.s32.totalorder %s24, 0
    %p45 = por %p43, %p44
    %p46 = scmp.ne.s32.totalorder %s32, %s33
    %p47 = scmp.eq.s32.totalorder %s25, 1
    %p48 = por %p46, %p47
    %p50 = scmp.ne.s32.totalorder %s33, %s49
    %p51 = scmp.eq.s32.totalorder %s25, 0
    %p52 = por %p50, %p51
    %s54 = sadd.s32 %s53, 1
    %p57 = scmp.eq.s32.totalorder %s19, 1
    %p58 = scmp.ne.s32.totalorder %s53, %s55
    %p59 = scmp.eq.s32.totalorder %s19, 0
    %p60 = por %p58, %p59
    %p61 = scmp.ne.s32.totalorder %s53, %s55
    %p62 = scmp.eq.s32.totalorder %s24, 1
    %p63 = por %p61, %p62
    %p64 = scmp.ne.s32.totalorder %s55, %s56
    %p65 = scmp.eq.s32.totalorder %s24, 0
    %p66 = por %p64, %p65
    %p67 = scmp.ne.s32.totalorder %s55, %s56
    %p68 = scmp.eq.s32.totalorder %s25, 1
    %p69 = por %p67, %p68
    %p71 = scmp.ne.s32.totalorder %s56, %s70
    %p72 = scmp.eq.s32.totalorder %s25, 0
    %p73 = por %p71, %p72
    %s75 = sadd.s32 %s74, 1
    %p78 = scmp.eq.s32.totalorder %s19, 1
    %p79 = scmp.ne.s32.totalorder %s74, %s76
    %p80 = scmp.eq.s32.totalorder %s19, 0
    %p81 = por %p79, %p80
    %p82 = scmp.ne.s32.totalorder %s74, %s76
    %p83 = scmp.eq.s32.totalorder %s24, 1
    %p84 = por %p82, %p83
    %p85 = scmp.ne.s32.totalorder %s76, %s77
    %p86 = scmp.eq.s32.totalorder %s24, 0
    %p87 = por %p85, %p86
    %p88 = scmp.ne.s32.totalorder %s76, %s77
    %p89 = scmp.eq.s32.totalorder %s25, 1
    %p90 = por %p88, %p89
    %p92 = scmp.ne.s32.totalorder %s77, %s91
    %p93 = scmp.eq.s32.totalorder %s25, 0
    %p94 = por %p92, %p93
    %s96 = sadd.s32 %s95, 1
    %p99 = scmp.eq.s32.totalorder %s19, 1
    %p100 = scmp.ne.s32.totalorder %s95, %s97
    %p101 = scmp.eq.s32.totalorder %s19, 0
    %p102 = por %p100, %p101
    %p103 = scmp.ne.s32.totalorder %s95, %s97
    %p104 = scmp.eq.s32.totalorder %s24, 1
    %p105 = por %p103, %p104
    %p106 = scmp.ne.s32.totalorder %s97, %s98
    %p107 = scmp.eq.s32.totalorder %s24, 0
    %p108 = por %p106, %p107
    %p109 = scmp.ne.s32.totalorder %s97, %s98
    %p110 = scmp.eq.s32.totalorder %s25, 1
    %p111 = por %p109, %p110
    %p113 = scmp.ne.s32.totalorder %s98, %s112
    %p114 = scmp.eq.s32.totalorder %s25, 0
    %p115 = por %p113, %p114
    %s117 = sadd.s32 %s116, 1
    %p120 = scmp.eq.s32.totalorder %s19, 1
    %p121 = scmp.ne.s32.totalorder %s116, %s118
    %p122 = scmp.eq.s32.totalorder %s19, 0
    %p123 = por %p121, %p122
    %p124 = scmp.ne.s32.totalorder %s116, %s118
    %p125 = scmp.eq.s32.totalorder %s24, 1
    %p126 = por %p124, %p125
    %p127 = scmp.ne.s32.totalorder %s118, %s119
    %p128 = scmp.eq.s32.totalorder %s24, 0
    %p129 = por %p127, %p128
    %p130 = scmp.ne.s32.totalorder %s118, %s119
    %p131 = scmp.eq.s32.totalorder %s25, 1
    %p132 = por %p130, %p131
    %p134 = scmp.ne.s32.totalorder %s119, %s133
    %p135 = scmp.eq.s32.totalorder %s25, 0
    %p136 = por %p134, %p135
    %s138 = sadd.s32 %s137, 1
    %p141 = scmp.eq.s32.totalorder %s19, 1
    %p142 = scmp.ne.s32.totalorder %s137, %s139
    %p143 = scmp.eq.s32.totalorder %s19, 0
    %p144 = por %p142, %p143
    %p145 = scmp.ne.s32.totalorder %s137, %s139
    %p146 = scmp.eq.s32.totalorder %s24, 1
    %p147 = por %p145, %p146
    %p148 = scmp.ne.s32.totalorder %s139, %s140
    %p149 = scmp.eq.s32.totalorder %s24, 0
    %p150 = por %p148, %p149
    %p151 = scmp.ne.s32.totalorder %s139, %s140
    %p152 = scmp.eq.s32.totalorder %s25, 1
    %p153 = por %p151, %p152
    %p155 = scmp.ne.s32.totalorder %s140, %s154
    %p156 = scmp.eq.s32.totalorder %s25, 0
    %p157 = por %p155, %p156
    %s159 = sadd.s32 %s158, 1
    %p162 = scmp.eq.s32.totalorder %s19, 1
    %p163 = scmp.ne.s32.totalorder %s158, %s160
    %p164 = scmp.eq.s32.totalorder %s19, 0
    %p165 = por %p163, %p164
    %p166 = scmp.ne.s32.totalorder %s158, %s160
    %p167 = scmp.eq.s32.totalorder %s24, 1
    %p168 = por %p166, %p167
    %p169 = scmp.ne.s32.totalorder %s160, %s161
    %p170 = scmp.eq.s32.totalorder %s24, 0
    %p171 = por %p169, %p170
    %p172 = scmp.ne.s32.totalorder %s160, %s161
    %p173 = scmp.eq.s32.totalorder %s25, 1
    %p174 = por %p172, %p173
    %p176 = scmp.ne.s32.totalorder %s161, %s175
    %p177 = scmp.eq.s32.totalorder %s25, 0
    %p178 = por %p176, %p177
    %s180 = sadd.s32 %s179, 1
    %p183 = scmp.eq.s32.totalorder %s19, 1
    %p184 = scmp.ne.s32.totalorder %s179, %s181
    %p185 = scmp.eq.s32.totalorder %s19, 0
    %p186 = por %p184, %p185
    %p187 = scmp.ne.s32.totalorder %s179, %s181
    %p188 = scmp.eq.s32.totalorder %s24, 1
    %p189 = por %p187, %p188
    %p190 = scmp.ne.s32.totalorder %s181, %s182
    %p191 = scmp.eq.s32.totalorder %s24, 0
    %p192 = por %p190, %p191
    %p193 = scmp.ne.s32.totalorder %s181, %s182
    %p194 = scmp.eq.s32.totalorder %s25, 1
    %p195 = por %p193, %p194
    %p197 = scmp.ne.s32.totalorder %s182, %s196
    %p198 = scmp.eq.s32.totalorder %s25, 0
    %p199 = por %p197, %p198
    %s201 = sadd.s32 %s200, 1
    %p204 = scmp.eq.s32.totalorder %s19, 1
    %p205 = scmp.ne.s32.totalorder %s200, %s202
    %p206 = scmp.eq.s32.totalorder %s19, 0
    %p207 = por %p205, %p206
    %p208 = scmp.ne.s32.totalorder %s200, %s202
    %p209 = scmp.eq.s32.totalorder %s24, 1
    %p210 = por %p208, %p209
    %p211 = scmp.ne.s32.totalorder %s202, %s203
    %p212 = scmp.eq.s32.totalorder %s24, 0
    %p213 = por %p211, %p212
    %p214 = scmp.ne.s32.totalorder %s202, %s203
    %p215 = scmp.eq.s32.totalorder %s25, 1
    %p216 = por %p214, %p215
    %p218 = scmp.ne.s32.totalorder %s203, %s217
    %p219 = scmp.eq.s32.totalorder %s25, 0
    %p220 = por %p218, %p219
    %s222 = sadd.s32 %s221, 1
    %p225 = scmp.eq.s32.totalorder %s19, 1
    %p226 = scmp.ne.s32.totalorder %s221, %s223
    %p227 = scmp.eq.s32.totalorder %s19, 0
    %p228 = por %p226, %p227
    %p229 = scmp.ne.s32.totalorder %s221, %s223
    %p230 = scmp.eq.s32.totalorder %s24, 1
    %p231 = por %p229, %p230
    %p232 = scmp.ne.s32.totalorder %s223, %s224
    %p233 = scmp.eq.s32.totalorder %s24, 0
    %p234 = por %p232, %p233
    %p235 = scmp.ne.s32.totalorder %s223, %s224
    %p236 = scmp.eq.s32.totalorder %s25, 1
    %p237 = por %p235, %p236
    %p239 = scmp.ne.s32.totalorder %s224, %s238
    %p240 = scmp.eq.s32.totalorder %s25, 0
    %p241 = por %p239, %p240
    %s243 = sadd.s32 %s242, 1
    %p246 = scmp.eq.s32.totalorder %s19, 1
    %p247 = scmp.ne.s32.totalorder %s242, %s244
    %p248 = scmp.eq.s32.totalorder %s19, 0
    %p249 = por %p247, %p248
    %p250 = scmp.ne.s32.totalorder %s242, %s244
    %p251 = scmp.eq.s32.totalorder %s24, 1
    %p252 = por %p250, %p251
    %p253 = scmp.ne.s32.totalorder %s244, %s245
    %p254 = scmp.eq.s32.totalorder %s24, 0
    %p255 = por %p253, %p254
    %p256 = scmp.ne.s32.totalorder %s244, %s245
    %p257 = scmp.eq.s32.totalorder %s25, 1
    %p258 = por %p256, %p257
    %p260 = scmp.ne.s32.totalorder %s245, %s259
    %p261 = scmp.eq.s32.totalorder %s25, 0
    %p262 = por %p260, %p261
    %s264 = sadd.s32 %s263, 1
    %p267 = scmp.eq.s32.totalorder %s19, 1
    %p268 = scmp.ne.s32.totalorder %s263, %s265
    %p269 = scmp.eq.s32.totalorder %s19, 0
    %p270 = por %p268, %p269
    %p271 = scmp.ne.s32.totalorder %s263, %s265
    %p272 = scmp.eq.s32.totalorder %s24, 1
    %p273 = por %p271, %p272
    %p274 = scmp.ne.s32.totalorder %s265, %s266
    %p275 = scmp.eq.s32.totalorder %s24, 0
    %p276 = por %p274, %p275
    %p277 = scmp.ne.s32.totalorder %s265, %s266
    %p278 = scmp.eq.s32.totalorder %s25, 1
    %p279 = por %p277, %p278
    %p281 = scmp.ne.s32.totalorder %s266, %s280
    %p282 = scmp.eq.s32.totalorder %s25, 0
    %p283 = por %p281, %p282
    %s285 = sadd.s32 %s284, 1
    %p288 = scmp.eq.s32.totalorder %s19, 1
    %p289 = scmp.ne.s32.totalorder %s284, %s286
    %p290 = scmp.eq.s32.totalorder %s19, 0
    %p291 = por %p289, %p290
    %p292 = scmp.ne.s32.totalorder %s284, %s286
    %p293 = scmp.eq.s32.totalorder %s24, 1
    %p294 = por %p292, %p293
    %p295 = scmp.ne.s32.totalorder %s286, %s287
    %p296 = scmp.eq.s32.totalorder %s24, 0
    %p297 = por %p295, %p296
    %p298 = scmp.ne.s32.totalorder %s286, %s287
    %p299 = scmp.eq.s32.totalorder %s25, 1
    %p300 = por %p298, %p299
    %p302 = scmp.ne.s32.totalorder %s287, %s301
    %p303 = scmp.eq.s32.totalorder %s25, 0
    %p304 = por %p302, %p303
    %s305 = ssub.s32 %s19, %s26
    %p306 = scmp.eq.s32.totalorder %s305, 0
    %s308 = sadd.s32 %s307, 1
    %s309 = scalar_select %p306, %s307, %s308
    %p312 = pneg %p306
    %p313 = scmp.eq.s32.totalorder %s19, 1
    %p314 = por %p312, %p313
    %p315 = scmp.ne.s32.totalorder %s307, %s310
    %p316 = scmp.eq.s32.totalorder %s19, 0
    %p317 = por %p315, %p316
    %p318 = scmp.ne.s32.totalorder %s307, %s310
    %p319 = scmp.eq.s32.totalorder %s24, 1
    %p320 = por %p318, %p319
    %p321 = scmp.ne.s32.totalorder %s310, %s311
    %p322 = scmp.eq.s32.totalorder %s24, 0
    %p323 = por %p321, %p322
    %p324 = scmp.ne.s32.totalorder %s310, %s311
    %p325 = scmp.eq.s32.totalorder %s25, 1
    %p326 = por %p324, %p325
    %p328 = scmp.ne.s32.totalorder %s311, %s327
    %p329 = scmp.eq.s32.totalorder %s25, 0
    %p330 = por %p328, %p329
    %p331 = scmp.le.s32.totalorder 1, %s19
    %p332 = scmp.lt.s32.totalorder %s19, 3
    %p333 = pnand %p331, %p332
    %p334 = pneg %p333
    // Predicated region
    $region9: #{_lambda_.2} parent=5 // pred_check
      _
    $region10: #{_lambda_.2} parent=5 // pred_check_branch
      %336 = sbr.rel (%p333) target = $region12
    $region11: #{_lambda_.2} parent=5 // pred_region
      %s337 = ssub.s32 %s19, 1
      // Predicated region
      $region13: #{_lambda_.2} parent=11 // pred_check
        %p338 = pneg %p66
      $region14: #{_lambda_.2} parent=11 // pred_check_branch
        %340 = sbr.rel (%p338) target = $region16
      $region15: #{_lambda_.2} parent=11 // pred_region
        _
      $region16: #{_lambda_.2} parent=11 // pred_fallthru
        _
      // Predicated region
      $region17: #{_lambda_.2} parent=11 // pred_check
        %p341 = pneg %p87
      $region18: #{_lambda_.2} parent=11 // pred_check_branch
        %343 = sbr.rel (%p341) target = $region20
      $region19: #{_lambda_.2} parent=11 // pred_region
        _
      $region20: #{_lambda_.2} parent=11 // pred_fallthru
        _
      // Predicated region
      $region21: #{_lambda_.2} parent=11 // pred_check
        %p344 = pneg %p108
      $region22: #{_lambda_.2} parent=11 // pred_check_branch
        %346 = sbr.rel (%p344) target = $region24
      $region23: #{_lambda_.2} parent=11 // pred_region
        _
      $region24: #{_lambda_.2} parent=11 // pred_fallthru
        _
      // Predicated region
      $region25: #{_lambda_.2} parent=11 // pred_check
        %p347 = pneg %p129
      $region26: #{_lambda_.2} parent=11 // pred_check_branch
        %349 = sbr.rel (%p347) target = $region28
      $region27: #{_lambda_.2} parent=11 // pred_region
        _
      $region28: #{_lambda_.2} parent=11 // pred_fallthru
        _
      // Predicated region
      $region29: #{_lambda_.2} parent=11 // pred_check
        %p350 = pneg %p150
      $region30: #{_lambda_.2} parent=11 // pred_check_branch
        %352 = sbr.rel (%p350) target = $region32
      $region31: #{_lambda_.2} parent=11 // pred_region
        _
      $region32: #{_lambda_.2} parent=11 // pred_fallthru
        _
      // Predicated region
      $region33: #{_lambda_.2} parent=11 // pred_check
        %p353 = pneg %p171
      $region34: #{_lambda_.2} parent=11 // pred_check_branch
        %355 = sbr.rel (%p353) target = $region36
      $region35: #{_lambda_.2} parent=11 // pred_region
        _
      $region36: #{_lambda_.2} parent=11 // pred_fallthru
        _
      // Predicated region
      $region37: #{_lambda_.2} parent=11 // pred_check
        %p356 = pneg %p192
      $region38: #{_lambda_.2} parent=11 // pred_check_branch
        %358 = sbr.rel (%p356) target = $region40
      $region39: #{_lambda_.2} parent=11 // pred_region
        _
      $region40: #{_lambda_.2} parent=11 // pred_fallthru
        _
      // Predicated region
      $region41: #{_lambda_.2} parent=11 // pred_check
        %p359 = pneg %p213
      $region42: #{_lambda_.2} parent=11 // pred_check_branch
        %361 = sbr.rel (%p359) target = $region44
      $region43: #{_lambda_.2} parent=11 // pred_region
        _
      $region44: #{_lambda_.2} parent=11 // pred_fallthru
        _
      // Predicated region
      $region45: #{_lambda_.2} parent=11 // pred_check
        %p362 = pneg %p234
      $region46: #{_lambda_.2} parent=11 // pred_check_branch
        %364 = sbr.rel (%p362) target = $region48
      $region47: #{_lambda_.2} parent=11 // pred_region
        _
      $region48: #{_lambda_.2} parent=11 // pred_fallthru
        _
      // Predicated region
      $region49: #{_lambda_.2} parent=11 // pred_check
        %p365 = pneg %p255
      $region50: #{_lambda_.2} parent=11 // pred_check_branch
        %367 = sbr.rel (%p365) target = $region52
      $region51: #{_lambda_.2} parent=11 // pred_region
        _
      $region52: #{_lambda_.2} parent=11 // pred_fallthru
        _
      // Predicated region
      $region53: #{_lambda_.2} parent=11 // pred_check
        %p368 = pneg %p276
      $region54: #{_lambda_.2} parent=11 // pred_check_branch
        %370 = sbr.rel (%p368) target = $region56
      $region55: #{_lambda_.2} parent=11 // pred_region
        _
      $region56: #{_lambda_.2} parent=11 // pred_fallthru
        _
      // Predicated region
      $region57: #{_lambda_.2} parent=11 // pred_check
        %p371 = pneg %p297
      $region58: #{_lambda_.2} parent=11 // pred_check_branch
        %373 = sbr.rel (%p371) target = $region60
      $region59: #{_lambda_.2} parent=11 // pred_region
        _
      $region60: #{_lambda_.2} parent=11 // pred_fallthru
        _
    $region12: #{_lambda_.2} parent=5 // pred_fallthru
      _
    %p374 = scmp.lt.s32.totalorder %s19, 2
    // Predicated region
    $region61: #{_lambda_.2} parent=5 // pred_check
      %p375 = pneg %p374
    $region62: #{_lambda_.2} parent=5 // pred_check_branch
      %377 = sbr.rel (%p375) target = $region64
    $region63: #{_lambda_.2} parent=5 // pred_region
      // Predicated region
      $region65: #{_lambda_.2} parent=63 // pred_check
        %p378 = pneg %p39
      $region66: #{_lambda_.2} parent=63 // pred_check_branch
        %380 = sbr.rel (%p378) target = $region68
      $region67: #{_lambda_.2} parent=63 // pred_region
        %p381 = scmp.lt.s32.totalorder %s19, 1
        %s382 = scalar_select %p381, %s19, 1
        %s383 = smul.addr %s382, 4
        %s384 = scalar_lea.vmem %s0, %s383
      $region68: #{_lambda_.2} parent=63 // pred_fallthru
        _
    $region64: #{_lambda_.2} parent=5 // pred_fallthru
      _
    %p385 = scmp.le.s32.totalorder 1, %s19
    %p386 = scmp.lt.s32.totalorder %s19, 3
    %p387 = pnand %p385, %p386
    %p388 = pneg %p387
    // Predicated region
    $region69: #{_lambda_.2} parent=5 // pred_check
      _
    $region70: #{_lambda_.2} parent=5 // pred_check_branch
      %390 = sbr.rel (%p387) target = $region72
    $region71: #{_lambda_.2} parent=5 // pred_region
      %s391 = ssub.s32 %s19, 1
      %p392 = scmp.lt.s32.totalorder %s24, 1
      %s393 = scalar_select %p392, %s24, 1
      %s394 = smul.addr %s393, 4
      %s395 = scalar_lea.vmem %s0, %s394
      %p396 = pneg %p45
      %p397 = pneg %p42
      %p398 = pneg %p66
      %p399 = pneg %p63
      %p400 = pneg %p87
      %p401 = pneg %p84
      %p402 = pneg %p108
      %p403 = pneg %p105
      %p404 = pneg %p129
      %p405 = pneg %p126
      %p406 = pneg %p150
      %p407 = pneg %p147
      %p408 = pneg %p171
      %p409 = pneg %p168
      %p410 = pneg %p192
      %p411 = pneg %p189
      %p412 = pneg %p213
      %p413 = pneg %p210
      %p414 = pneg %p234
      %p415 = pneg %p231
      %p416 = pneg %p255
      %p417 = pneg %p252
      %p418 = pneg %p276
      %p419 = pneg %p273
      %p420 = pneg %p297
      %p421 = pneg %p294
      %p422 = pneg %p323
      %p423 = pneg %p320
      %p424 = scmp.lt.s32.totalorder %s24, 1
      %s425 = scalar_select %p424, %s24, 1
      %s426 = smul.addr %s425, 4
      %s427 = scalar_lea.vmem %s13, %s426
      %p428 = scmp.lt.s32.totalorder %s24, 1
      %s429 = scalar_select %p428, %s24, 1
      %s430 = smul.addr %s429, 4
      %s431 = scalar_lea.vmem %s0, %s430
      %p432 = scmp.lt.s32.totalorder %s24, 1
      %s433 = scalar_select %p432, %s24, 1
      %s434 = smul.addr %s433, 4
      %s435 = scalar_lea.vmem %s13, %s434
      %v437 = vld [vmem:[%s431] sm:$0xf]
      %v438 = vld [vmem:[%s1] sm:$0xf]
      %v439 = vld [vmem:[%s1 + $0x4] sm:$0xf]
      %v440 = vld [vmem:[%s1 + $0x8] sm:$0xf]
      %v441 = vld [vmem:[%s1 + $0xc] sm:$0xf]
      %v442 = vld [vmem:[%s2] sm:$0x1]
      %v444 = vlaneseq
      %v445 = vshrl.u32 %v444, 7
      %v446 = vsub.s32 0, %v445
      %v447 = vrot.slane %v442, %v446
      %v453 = vunpack.c.l.b16 %v438
      %v454 = vunpack.c.l.b16 %v439
      %v455 = vunpack.c.l.b16 %v440
      %v456 = vunpack.c.l.b16 %v441
      %v457 = vpack.c.b16 %v454, %v453
      %v458 = vpack.c.b16 %v456, %v455
      %vm461 = vcmask 261120
      %v463 = vsel %vm461, %v437, 0
      %465 = vmatprep.subr.bf16.mxu0 0
      %466 = vmatpush1.bf16.msra.mxu0 %v457
      %467 = vmatprep.subr.bf16.mxu0 0
      %468 = vmatpush1.bf16.msra.mxu0 %v458
      %469 = vmatprep.subr.bf16.mxu0 0
      %470 = vmatpush1.bf16.msra.mxu0 0
      %471 = vmatprep.subr.bf16.mxu0 0
      %472 = vmatpush1.bf16.msra.mxu0 0
      %473 = vmatprep.subr.bf16.mxu0 0
      %474 = vmatpush1.bf16.msra.mxu0 0
      %475 = vmatprep.subr.bf16.mxu0 0
      %476 = vmatpush1.bf16.msra.mxu0 0
      %477 = vmatprep.subr.bf16.mxu0 0
      %478 = vmatpush1.bf16.msra.mxu0 0
      %479 = vmatprep.subr.bf16.mxu0 0
      %480 = vmatpush1.bf16.msra.mxu0 0
      %481 = vmatprep.subr.bf16.mxu0 0
      %482 = vmatpush1.bf16.msra.mxu0 0
      %483 = vmatprep.subr.bf16.mxu0 0
      %484 = vmatpush1.bf16.msra.mxu0 0
      %485 = vmatprep.subr.bf16.mxu0 0
      %486 = vmatpush1.bf16.msra.mxu0 0
      %487 = vmatprep.subr.bf16.mxu0 0
      %488 = vmatpush1.bf16.msra.mxu0 0
      %489 = vmatprep.subr.bf16.mxu0 0
      %490 = vmatpush1.bf16.msra.mxu0 0
      %491 = vmatprep.subr.bf16.mxu0 0
      %492 = vmatpush1.bf16.msra.mxu0 0
      %493 = vmatprep.subr.bf16.mxu0 0
      %494 = vmatpush1.bf16.msra.mxu0 0
      %495 = vmatprep.subr.bf16.mxu0 0
      %496 = vmatpush1.bf16.msra.mxu0 0
      %497 = vmatprep.mubr.bf16.mxu0 0
      %498 = vmatmul.mubr.bf16.gmra.mrb[0].mxu0 %v463
      %v499 = vpop.f32.mrb[0].mxu0
      %v500 = vadd.f32 %v447, %v499
      %v501 = vpop.f32.mrb[0].mxu0
      %v502 = vpop.f32.mrb[0].mxu0
      %v503 = vpop.f32.mrb[0].mxu0
      %504 = vdwg.mxu0
      %v506 = vrot.slane %v500, 5
      %vm508 = vcmask 1042432
      %v509 = vsel %vm508, 0.0, %v506
      %v510 = vld [vmem:[%s4] sm:$0x1]
      %v511 = vld [vmem:[%s3 + $0x3] sm:$0x1]
      %v512 = vlaneseq
      %v513 = vshrl.u32 %v512, 7
      %v514 = vsub.s32 0, %v513
      %v515 = vrot.slane %v511, %v514
      %v516 = vmul.f32 %v500, %v515
      %v518 = vlaneseq
      %v519 = vshrl.u32 %v518, 7
      %v520 = vsub.s32 0, %v519
      %v521 = vrot.slane %v510, %v520
      %v523 = vadd.f32 %v521, %v516
      %v524 = vld [vmem:[%s3] sm:$0x1]
      %v525 = vlaneseq
      %v526 = vshrl.u32 %v525, 7
      %v527 = vsub.s32 0, %v526
      %v528 = vrot.slane %v524, %v527
      %v529 = vmul.f32 %v509, %v528
      %v530 = vadd.f32 %v523, %v529
      %v531 = vld [vmem:[%s3 + $0x1] sm:$0x1]
      %v532 = vlaneseq
      %v533 = vshrl.u32 %v532, 7
      %v534 = vsub.s32 0, %v533
      %v535 = vrot.slane %v531, %v534
      %v536 = vmul.f32 %v509, %v535
      %v537 = vmul.f32 %v506, %v535
      %vm540 = vcmask 1046528
      %v541 = vrot.slane %v536, 1
      %v542 = vrot.slane %v537, 1
      %v543 = vsel %vm540, %v541, %v542
      %v545 = vadd.f32 %v530, %v543
      %v546 = vld [vmem:[%s3 + $0x2] sm:$0x1]
      %v547 = vlaneseq
      %v548 = vshrl.u32 %v547, 7
      %v549 = vsub.s32 0, %v548
      %v550 = vrot.slane %v546, %v549
      %v551 = vmul.f32 %v509, %v550
      %v552 = vmul.f32 %v506, %v550
      %vm555 = vcmask 1045504
      %v556 = vrot.slane %v551, 2
      %v557 = vrot.slane %v552, 2
      %v558 = vsel %vm555, %v556, %v557
      %v560 = vadd.f32 %v545, %v558
      %v561 = vxor.u32 %v560, 2147483648
      %v562 = vmul.f32 %v561, 1.442695
      %v563 = vpow.pop %v562
      %v564 = vadd.f32 %v563, 1.0
      %v565 = vrcp.pop %v564
      %v566 = vmul.f32 1.0, %v565
      %v567 = vmul.f32 %v560, %v566
      %v568 = vpack.c.bf16 %v567, %v567
      %v569 = vld [vmem:[%s5] sm:$0xf]
      %v570 = vld [vmem:[%s5 + $0x4] sm:$0xf]
      %v571 = vld [vmem:[%s5 + $0x8] sm:$0xf]
      %v572 = vld [vmem:[%s5 + $0xc] sm:$0xf]
      %v573 = vld [vmem:[%s5 + $0x10] sm:$0xf]
      %v574 = vld [vmem:[%s5 + $0x14] sm:$0xf]
      %v575 = vld [vmem:[%s5 + $0x18] sm:$0xf]
      %v576 = vld [vmem:[%s5 + $0x1c] sm:$0xf]
      %v577 = vld [vmem:[%s6] sm:$0x1]
      %v579 = vlaneseq
      %v580 = vshrl.u32 %v579, 7
      %v581 = vsub.s32 0, %v580
      %v582 = vrot.slane %v577, %v581
      %v592 = vunpack.c.l.b16 %v569
      %v593 = vunpack.c.l.b16 %v570
      %v594 = vunpack.c.l.b16 %v571
      %v595 = vunpack.c.l.b16 %v572
      %v596 = vunpack.c.l.b16 %v573
      %v597 = vunpack.c.l.b16 %v574
      %v598 = vunpack.c.l.b16 %v575
      %v599 = vunpack.c.l.b16 %v576
      %v600 = vpack.c.b16 %v593, %v592
      %v601 = vpack.c.b16 %v595, %v594
      %v602 = vpack.c.b16 %v597, %v596
      %v603 = vpack.c.b16 %v599, %v598
      %vm608 = vcmask 523264
      %v610 = vsel %vm608, %v568, 0
      %612 = vmatprep.subr.bf16.mxu0 0
      %613 = vmatpush1.bf16.msra.mxu0 %v600
      %614 = vmatprep.subr.bf16.mxu0 0
      %615 = vmatpush1.bf16.msra.mxu0 %v601
      %616 = vmatprep.subr.bf16.mxu0 0
      %617 = vmatpush1.bf16.msra.mxu0 %v602
      %618 = vmatprep.subr.bf16.mxu0 0
      %619 = vmatpush1.bf16.msra.mxu0 %v603
      %620 = vmatprep.subr.bf16.mxu0 0
      %621 = vmatpush1.bf16.msra.mxu0 0
      %622 = vmatprep.subr.bf16.mxu0 0
      %623 = vmatpush1.bf16.msra.mxu0 0
      %624 = vmatprep.subr.bf16.mxu0 0
      %625 = vmatpush1.bf16.msra.mxu0 0
      %626 = vmatprep.subr.bf16.mxu0 0
      %627 = vmatpush1.bf16.msra.mxu0 0
      %628 = vmatprep.subr.bf16.mxu0 0
      %629 = vmatpush1.bf16.msra.mxu0 0
      %630 = vmatprep.subr.bf16.mxu0 0
      %631 = vmatpush1.bf16.msra.mxu0 0
      %632 = vmatprep.subr.bf16.mxu0 0
      %633 = vmatpush1.bf16.msra.mxu0 0
      %634 = vmatprep.subr.bf16.mxu0 0
      %635 = vmatpush1.bf16.msra.mxu0 0
      %636 = vmatprep.subr.bf16.mxu0 0
      %637 = vmatpush1.bf16.msra.mxu0 0
      %638 = vmatprep.subr.bf16.mxu0 0
      %639 = vmatpush1.bf16.msra.mxu0 0
      %640 = vmatprep.subr.bf16.mxu0 0
      %641 = vmatpush1.bf16.msra.mxu0 0
      %642 = vmatprep.subr.bf16.mxu0 0
      %643 = vmatpush1.bf16.msra.mxu0 0
      %644 = vmatprep.mubr.bf16.mxu0 0
      %645 = vmatmul.mubr.bf16.gmra.mrb[0].mxu0 %v610
      %v646 = vpop.f32.mrb[0].mxu0
      %v647 = vadd.f32 %v582, %v646
      %v648 = vpop.f32.mrb[0].mxu0
      %v649 = vpop.f32.mrb[0].mxu0
      %v650 = vpop.f32.mrb[0].mxu0
      %651 = vdwg.mxu0
      %v652 = vpack.c.bf16 %v647, %v647
      %v653 = vld [vmem:[%s7] sm:$0xf]
      %v654 = vld [vmem:[%s7 + $0x4] sm:$0xf]
      %v655 = vld [vmem:[%s7 + $0x8] sm:$0xf]
      %v656 = vld [vmem:[%s7 + $0xc] sm:$0xf]
      %v657 = vld [vmem:[%s7 + $0x10] sm:$0xf]
      %v658 = vld [vmem:[%s7 + $0x14] sm:$0xf]
      %v659 = vld [vmem:[%s7 + $0x18] sm:$0xf]
      %v660 = vld [vmem:[%s7 + $0x1c] sm:$0xf]
      %v661 = vld [vmem:[%s7 + $0x20] sm:$0xf]
      %v662 = vld [vmem:[%s7 + $0x24] sm:$0xf]
      %v663 = vld [vmem:[%s7 + $0x28] sm:$0xf]
      %v664 = vld [vmem:[%s7 + $0x2c] sm:$0xf]
      %v665 = vld [vmem:[%s7 + $0x30] sm:$0xf]
      %v666 = vld [vmem:[%s7 + $0x34] sm:$0xf]
      %v667 = vld [vmem:[%s7 + $0x38] sm:$0xf]
      %v668 = vld [vmem:[%s7 + $0x3c] sm:$0xf]
      %v669 = vld [vmem:[%s8] sm:$0x1]
      %v671 = vlaneseq
      %v672 = vshrl.u32 %v671, 7
      %v673 = vsub.s32 0, %v672
      %v674 = vrot.slane %v669, %v673
      %v692 = vunpack.c.l.b16 %v653
      %v693 = vunpack.c.l.b16 %v654
      %v694 = vunpack.c.l.b16 %v655
      %v695 = vunpack.c.l.b16 %v656
      %v696 = vunpack.c.l.b16 %v657
      %v697 = vunpack.c.l.b16 %v658
      %v698 = vunpack.c.l.b16 %v659
      %v699 = vunpack.c.l.b16 %v660
      %v700 = vunpack.c.l.b16 %v661
      %v701 = vunpack.c.l.b16 %v662
      %v702 = vunpack.c.l.b16 %v663
      %v703 = vunpack.c.l.b16 %v664
      %v704 = vunpack.c.l.b16 %v665
      %v705 = vunpack.c.l.b16 %v666
      %v706 = vunpack.c.l.b16 %v667
      %v707 = vunpack.c.l.b16 %v668
      %v708 = vpack.c.b16 %v693, %v692
      %v709 = vpack.c.b16 %v695, %v694
      %v710 = vpack.c.b16 %v697, %v696
      %v711 = vpack.c.b16 %v699, %v698
      %v712 = vpack.c.b16 %v701, %v700
      %v713 = vpack.c.b16 %v703, %v702
      %v714 = vpack.c.b16 %v705, %v704
      %v715 = vpack.c.b16 %v707, %v706
      %724 = vmatprep.subr.bf16.mxu0 0
      %725 = vmatpush1.bf16.msra.mxu0 %v708
      %726 = vmatprep.subr.bf16.mxu0 0
      %727 = vmatpush1.bf16.msra.mxu0 %v709
      %728 = vmatprep.subr.bf16.mxu0 0
      %729 = vmatpush1.bf16.msra.mxu0 %v710
      %730 = vmatprep.subr.bf16.mxu0 0
      %731 = vmatpush1.bf16.msra.mxu0 %v711
      %732 = vmatprep.subr.bf16.mxu0 0
      %733 = vmatpush1.bf16.msra.mxu0 %v712
      %734 = vmatprep.subr.bf16.mxu0 0
      %735 = vmatpush1.bf16.msra.mxu0 %v713
      %736 = vmatprep.subr.bf16.mxu0 0
      %737 = vmatpush1.bf16.msra.mxu0 %v714
      %738 = vmatprep.subr.bf16.mxu0 0
      %739 = vmatpush1.bf16.msra.mxu0 %v715
      %740 = vmatprep.subr.bf16.mxu0 0
      %741 = vmatpush1.bf16.msra.mxu0 0
      %742 = vmatprep.subr.bf16.mxu0 0
      %743 = vmatpush1.bf16.msra.mxu0 0
      %744 = vmatprep.subr.bf16.mxu0 0
      %745 = vmatpush1.bf16.msra.mxu0 0
      %746 = vmatprep.subr.bf16.mxu0 0
      %747 = vmatpush1.bf16.msra.mxu0 0
      %748 = vmatprep.subr.bf16.mxu0 0
      %749 = vmatpush1.bf16.msra.mxu0 0
      %750 = vmatprep.subr.bf16.mxu0 0
      %751 = vmatpush1.bf16.msra.mxu0 0
      %752 = vmatprep.subr.bf16.mxu0 0
      %753 = vmatpush1.bf16.msra.mxu0 0
      %754 = vmatprep.subr.bf16.mxu0 0
      %755 = vmatpush1.bf16.msra.mxu0 0
      %756 = vmatprep.mubr.bf16.mxu0 0
      %757 = vmatmul.mubr.bf16.gmra.mrb[0].mxu0 %v652
      %v758 = vpop.f32.mrb[0].mxu0
      %v759 = vadd.f32 %v674, %v758
      %v760 = vpop.f32.mrb[0].mxu0
      %v761 = vpop.f32.mrb[0].mxu0
      %v762 = vpop.f32.mrb[0].mxu0
      %763 = vdwg.mxu0
      %v764 = vmax.f32 %v759, 0.0
      %v765 = vand.u32 2147483647, %v759
      %v766 = vsub.f32 0.0, %v765
      %v767 = vmul.f32 %v766, 1.442695
      %v768 = vpow.pop %v767
      %v769 = vadd.f32 %v768, 1.0
      %v770 = vlog2.pop %v769
      %v771 = vmul.f32 %v770, 0.6931472
      %v772 = vmul.f32 -0.5, %v768
      %v773 = vadd.f32 %v772, 1.0
      %v774 = vmul.f32 %v773, %v768
      %v775 = vand.u32 2147483647, %v768
      %vm776 = vcmp.lt.f32.partialorder %v775, 0.0004427343
      %v777 = vsel %vm776, %v774, %v771
      %v778 = vadd.f32 %v764, %v777
      %779 = vst.msk [vmem:[#allocation2] sm:$0xff] %vm608, %v567
      %780 = vst.msk [vmem:[#allocation3] sm:$0xff] %vm608, %v778
      %v781 = vlaneseq
      %v782 = vshrl.u32 %v781, 7
      %v783 = vsub.s32 0, %v782
      %v784 = vrot.slane %v647, %v783
      %s786 = sor.u32 256, 2
      %787 = vbcast.lane.b32.xlu0 %v784, %s786
      %v788 = vpop.permute.xlu0 %787
      %v789 = vlaneseq
      %v790 = vshrl.u32 %v789, 7
      %v791 = vsub.s32 1, %v790
      %v792 = vrot.slane %v647, %v791
      %s794 = sor.u32 256, 2
      %795 = vbcast.lane.b32.xlu0 %v792, %s794
      %v796 = vpop.permute.xlu0 %795
      %v797 = vlaneseq
      %v798 = vshrl.u32 %v797, 7
      %v799 = vsub.s32 2, %v798
      %v800 = vrot.slane %v647, %v799
      %s802 = sor.u32 256, 2
      %803 = vbcast.lane.b32.xlu0 %v800, %s802
      %v804 = vpop.permute.xlu0 %803
      %v805 = vlaneseq
      %v806 = vshrl.u32 %v805, 7
      %v807 = vsub.s32 3, %v806
      %v808 = vrot.slane %v647, %v807
      %s810 = sor.u32 256, 2
      %811 = vbcast.lane.b32.xlu0 %v808, %s810
      %v812 = vpop.permute.xlu0 %811
      %v813 = vlaneseq
      %v814 = vshrl.u32 %v813, 7
      %v815 = vsub.s32 4, %v814
      %v816 = vrot.slane %v647, %v815
      %s818 = sor.u32 256, 2
      %819 = vbcast.lane.b32.xlu0 %v816, %s818
      %v820 = vpop.permute.xlu0 %819
      %v821 = vlaneseq
      %v822 = vshrl.u32 %v821, 7
      %v823 = vsub.s32 5, %v822
      %v824 = vrot.slane %v647, %v823
      %s826 = sor.u32 256, 2
      %827 = vbcast.lane.b32.xlu0 %v824, %s826
      %v828 = vpop.permute.xlu0 %827
      %v829 = vlaneseq
      %v830 = vshrl.u32 %v829, 7
      %v831 = vsub.s32 6, %v830
      %v832 = vrot.slane %v647, %v831
      %s834 = sor.u32 256, 2
      %835 = vbcast.lane.b32.xlu0 %v832, %s834
      %v836 = vpop.permute.xlu0 %835
      %v837 = vlaneseq
      %v838 = vshrl.u32 %v837, 7
      %v839 = vsub.s32 7, %v838
      %v840 = vrot.slane %v647, %v839
      %s842 = sor.u32 256, 2
      %843 = vbcast.lane.b32.xlu0 %v840, %s842
      %v844 = vpop.permute.xlu0 %843
      %vm845 = vcmask 7168
      %846 = vst.msk [vmem:[#allocation4] sm:$0xff] %vm845, %v788
      %847 = vst.msk [vmem:[#allocation4 + $0x8] sm:$0xff] %vm845, %v796
      %848 = vst.msk [vmem:[#allocation4 + $0x10] sm:$0xff] %vm845, %v804
      %849 = vst.msk [vmem:[#allocation4 + $0x18] sm:$0xff] %vm845, %v812
      %850 = vst.msk [vmem:[#allocation4 + $0x20] sm:$0xff] %vm845, %v820
      %851 = vst.msk [vmem:[#allocation4 + $0x28] sm:$0xff] %vm845, %v828
      %852 = vst.msk [vmem:[#allocation4 + $0x30] sm:$0xff] %vm845, %v836
      %853 = vst.msk [vmem:[#allocation4 + $0x38] sm:$0xff] %vm845, %v844
      %s855 = sor.u32 256, 10
      %856 = vbcast.lane.b32.xlu0 %v784, %s855
      %v857 = vpop.permute.xlu0 %856
      %s859 = sor.u32 256, 10
      %860 = vbcast.lane.b32.xlu0 %v792, %s859
      %v861 = vpop.permute.xlu0 %860
      %s863 = sor.u32 256, 10
      %864 = vbcast.lane.b32.xlu0 %v800, %s863
      %v865 = vpop.permute.xlu0 %864
      %s867 = sor.u32 256, 10
      %868 = vbcast.lane.b32.xlu0 %v808, %s867
      %v869 = vpop.permute.xlu0 %868
      %s871 = sor.u32 256, 10
      %872 = vbcast.lane.b32.xlu0 %v816, %s871
      %v873 = vpop.permute.xlu0 %872
      %s875 = sor.u32 256, 10
      %876 = vbcast.lane.b32.xlu0 %v824, %s875
      %v877 = vpop.permute.xlu0 %876
      %s879 = sor.u32 256, 10
      %880 = vbcast.lane.b32.xlu0 %v832, %s879
      %v881 = vpop.permute.xlu0 %880
      %s883 = sor.u32 256, 10
      %884 = vbcast.lane.b32.xlu0 %v840, %s883
      %v885 = vpop.permute.xlu0 %884
      %886 = vst.msk [vmem:[#allocation5] sm:$0xff] %vm845, %v857
      %887 = vst.msk [vmem:[#allocation5 + $0x8] sm:$0xff] %vm845, %v861
      %888 = vst.msk [vmem:[#allocation5 + $0x10] sm:$0xff] %vm845, %v865
      %889 = vst.msk [vmem:[#allocation5 + $0x18] sm:$0xff] %vm845, %v869
      %890 = vst.msk [vmem:[#allocation5 + $0x20] sm:$0xff] %vm845, %v873
      %891 = vst.msk [vmem:[#allocation5 + $0x28] sm:$0xff] %vm845, %v877
      %892 = vst.msk [vmem:[#allocation5 + $0x30] sm:$0xff] %vm845, %v881
      %893 = vst.msk [vmem:[#allocation5 + $0x38] sm:$0xff] %vm845, %v885
      %894 = vst.msk [vmem:[#allocation7] sm:$0xff] %vm608, 0.0
      %v895 = vld [vmem:[%s9] sm:$0xff]
      %v896 = vld [vmem:[#allocation3] sm:$0x1]
      %v897 = vld [vmem:[#allocation2] sm:$0x1]
      %v898 = vlaneseq
      %v899 = vshrl.u32 %v898, 7
      %v900 = vsub.s32 0, %v899
      %v901 = vrot.slane %v896, %v900
      %v902 = vmul.f32 %v901, %v895
      %v903 = vmul.f32 %v902, 1.442695
      %v904 = vpow.pop %v903
      %v905 = vmul.f32 %v896, %v897
      %v906 = vld [vmem:[#allocation4] sm:$0xff]
      %v907 = vlaneseq
      %v908 = vshrl.u32 %v907, 7
      %v909 = vsub.s32 0, %v908
      %v910 = vrot.slane %v905, %v909
      %912 = vset.pattern.permute.xlu0 0
      %913 = vperm.xlu0 %912, %v906
      %v914 = vpop.permute.xlu0 %913
      %v916 = vmul.f32 %v910, %v914
      %v917 = vld [vmem:[#allocation7] sm:$0xff]
      %v918 = vmul.f32 %v904, %v917
      %v919 = vadd.f32 %v918, %v916
      %920 = vst.msk [vmem:[#allocation7] sm:$0xff] %vm608, %v919
      %v921 = vld [vmem:[#allocation5] sm:$0xff]
      %923 = vset.pattern.permute.xlu0 0
      %924 = vperm.xlu0 %923, %v921
      %v925 = vpop.permute.xlu0 %924
      %v927 = vmul.f32 %v919, %v925
      %v928 = vsel %vm608, %v927, 0.0
      %v929 = vrot.slane %v928, 4
      %v930 = vadd.f32 %v928, %v929
      %v931 = vrot.slane %v930, 2
      %v932 = vadd.f32 %v930, %v931
      %v933 = vrot.slane %v932, 1
      %v934 = vadd.f32 %v932, %v933
      %vm935 = vcmask 516096
      %936 = vst.msk [vmem:[#allocation6] sm:$0x1] %vm935, %v934
      %v937 = vld [vmem:[#allocation3 + $0x1] sm:$0x1]
      %v938 = vld [vmem:[#allocation2 + $0x1] sm:$0x1]
      %v939 = vlaneseq
      %v940 = vshrl.u32 %v939, 7
      %v941 = vsub.s32 0, %v940
      %v942 = vrot.slane %v937, %v941
      %v943 = vmul.f32 %v942, %v895
      %v944 = vmul.f32 %v943, 1.442695
      %v945 = vpow.pop %v944
      %v946 = vmul.f32 %v937, %v938
      %s947 = scalar_lea.vmem [#allocation4], 8
      %v948 = vld [vmem:[%s947] sm:$0xff]
      %v949 = vlaneseq
      %v950 = vshrl.u32 %v949, 7
      %v951 = vsub.s32 0, %v950
      %v952 = vrot.slane %v946, %v951
      %954 = vset.pattern.permute.xlu0 0
      %955 = vperm.xlu0 %954, %v948
      %v956 = vpop.permute.xlu0 %955
      %v958 = vmul.f32 %v952, %v956
      %v959 = vld [vmem:[#allocation7] sm:$0xff]
      %v960 = vmul.f32 %v945, %v959
      %v961 = vadd.f32 %v960, %v958
      %962 = vst.msk [vmem:[#allocation7] sm:$0xff] %vm608, %v961
      %s963 = scalar_lea.vmem [#allocation5], 8
      %v964 = vld [vmem:[%s963] sm:$0xff]
      %966 = vset.pattern.permute.xlu0 0
      %967 = vperm.xlu0 %966, %v964
      %v968 = vpop.permute.xlu0 %967
      %v970 = vmul.f32 %v961, %v968
      %v971 = vsel %vm608, %v970, 0.0
      %v972 = vrot.slane %v971, 4
      %v973 = vadd.f32 %v971, %v972
      %v974 = vrot.slane %v973, 2
      %v975 = vadd.f32 %v973, %v974
      %v976 = vrot.slane %v975, 1
      %v977 = vadd.f32 %v975, %v976
      %978 = vst.msk [vmem:[#allocation6 + $0x1] sm:$0x1] %vm935, %v977
      %v979 = vld [vmem:[#allocation3 + $0x2] sm:$0x1]
      %v980 = vld [vmem:[#allocation2 + $0x2] sm:$0x1]
      %v981 = vlaneseq
      %v982 = vshrl.u32 %v981, 7
      %v983 = vsub.s32 0, %v982
      %v984 = vrot.slane %v979, %v983
      %v985 = vmul.f32 %v984, %v895
      %v986 = vmul.f32 %v985, 1.442695
      %v987 = vpow.pop %v986
      %v988 = vmul.f32 %v979, %v980
      %s989 = scalar_lea.vmem [#allocation4], 16
      %v990 = vld [vmem:[%s989] sm:$0xff]
      %v991 = vlaneseq
      %v992 = vshrl.u32 %v991, 7
      %v993 = vsub.s32 0, %v992
      %v994 = vrot.slane %v988, %v993
      %996 = vset.pattern.permute.xlu0 0
      %997 = vperm.xlu0 %996, %v990
      %v998 = vpop.permute.xlu0 %997
      %v1000 = vmul.f32 %v994, %v998
      %v1001 = vld [vmem:[#allocation7] sm:$0xff]
      %v1002 = vmul.f32 %v987, %v1001
      %v1003 = vadd.f32 %v1002, %v1000
      %1004 = vst.msk [vmem:[#allocation7] sm:$0xff] %vm608, %v1003
      %s1005 = scalar_lea.vmem [#allocation5], 16
      %v1006 = vld [vmem:[%s1005] sm:$0xff]
      %1008 = vset.pattern.permute.xlu0 0
      %1009 = vperm.xlu0 %1008, %v1006
      %v1010 = vpop.permute.xlu0 %1009
      %v1012 = vmul.f32 %v1003, %v1010
      %v1013 = vsel %vm608, %v1012, 0.0
      %v1014 = vrot.slane %v1013, 4
      %v1015 = vadd.f32 %v1013, %v1014
      %v1016 = vrot.slane %v1015, 2
      %v1017 = vadd.f32 %v1015, %v1016
      %v1018 = vrot.slane %v1017, 1
      %v1019 = vadd.f32 %v1017, %v1018
      %1020 = vst.msk [vmem:[#allocation6 + $0x2] sm:$0x1] %vm935, %v1019
      %v1021 = vld [vmem:[#allocation3 + $0x3] sm:$0x1]
      %v1022 = vld [vmem:[#allocation2 + $0x3] sm:$0x1]
      %v1023 = vlaneseq
      %v1024 = vshrl.u32 %v1023, 7
      %v1025 = vsub.s32 0, %v1024
      %v1026 = vrot.slane %v1021, %v1025
      %v1027 = vmul.f32 %v1026, %v895
      %v1028 = vmul.f32 %v1027, 1.442695
      %v1029 = vpow.pop %v1028
      %v1030 = vmul.f32 %v1021, %v1022
      %s1031 = scalar_lea.vmem [#allocation4], 24
      %v1032 = vld [vmem:[%s1031] sm:$0xff]
      %v1033 = vlaneseq
      %v1034 = vshrl.u32 %v1033, 7
      %v1035 = vsub.s32 0, %v1034
      %v1036 = vrot.slane %v1030, %v1035
      %1038 = vset.pattern.permute.xlu0 0
      %1039 = vperm.xlu0 %1038, %v1032
      %v1040 = vpop.permute.xlu0 %1039
      %v1042 = vmul.f32 %v1036, %v1040
      %v1043 = vld [vmem:[#allocation7] sm:$0xff]
      %v1044 = vmul.f32 %v1029, %v1043
      %v1045 = vadd.f32 %v1044, %v1042
      %1046 = vst.msk [vmem:[#allocation7] sm:$0xff] %vm608, %v1045
      %s1047 = scalar_lea.vmem [#allocation5], 24
      %v1048 = vld [vmem:[%s1047] sm:$0xff]
      %1050 = vset.pattern.permute.xlu0 0
      %1051 = vperm.xlu0 %1050, %v1048
      %v1052 = vpop.permute.xlu0 %1051
      %v1054 = vmul.f32 %v1045, %v1052
      %v1055 = vsel %vm608, %v1054, 0.0
      %v1056 = vrot.slane %v1055, 4
      %v1057 = vadd.f32 %v1055, %v1056
      %v1058 = vrot.slane %v1057, 2
      %v1059 = vadd.f32 %v1057, %v1058
      %v1060 = vrot.slane %v1059, 1
      %v1061 = vadd.f32 %v1059, %v1060
      %1062 = vst.msk [vmem:[#allocation6 + $0x3] sm:$0x1] %vm935, %v1061
      %v1063 = vld [vmem:[#allocation3 + $0x4] sm:$0x1]
      %v1064 = vld [vmem:[#allocation2 + $0x4] sm:$0x1]
      %v1065 = vlaneseq
      %v1066 = vshrl.u32 %v1065, 7
      %v1067 = vsub.s32 0, %v1066
      %v1068 = vrot.slane %v1063, %v1067
      %v1069 = vmul.f32 %v1068, %v895
      %v1070 = vmul.f32 %v1069, 1.442695
      %v1071 = vpow.pop %v1070
      %v1072 = vmul.f32 %v1063, %v1064
      %s1073 = scalar_lea.vmem [#allocation4], 32
      %v1074 = vld [vmem:[%s1073] sm:$0xff]
      %v1075 = vlaneseq
      %v1076 = vshrl.u32 %v1075, 7
      %v1077 = vsub.s32 0, %v1076
      %v1078 = vrot.slane %v1072, %v1077
      %1080 = vset.pattern.permute.xlu0 0
      %1081 = vperm.xlu0 %1080, %v1074
      %v1082 = vpop.permute.xlu0 %1081
      %v1084 = vmul.f32 %v1078, %v1082
      %v1085 = vld [vmem:[#allocation7] sm:$0xff]
      %v1086 = vmul.f32 %v1071, %v1085
      %v1087 = vadd.f32 %v1086, %v1084
      %1088 = vst.msk [vmem:[#allocation7] sm:$0xff] %vm608, %v1087
      %s1089 = scalar_lea.vmem [#allocation5], 32
      %v1090 = vld [vmem:[%s1089] sm:$0xff]
      %1092 = vset.pattern.permute.xlu0 0
      %1093 = vperm.xlu0 %1092, %v1090
      %v1094 = vpop.permute.xlu0 %1093
      %v1096 = vmul.f32 %v1087, %v1094
      %v1097 = vsel %vm608, %v1096, 0.0
      %v1098 = vrot.slane %v1097, 4
      %v1099 = vadd.f32 %v1097, %v1098
      %v1100 = vrot.slane %v1099, 2
      %v1101 = vadd.f32 %v1099, %v1100
      %v1102 = vrot.slane %v1101, 1
      %v1103 = vadd.f32 %v1101, %v1102
      %1104 = vst.msk [vmem:[#allocation6 + $0x4] sm:$0x1] %vm935, %v1103
      %v1105 = vld [vmem:[#allocation3 + $0x5] sm:$0x1]
      %v1106 = vld [vmem:[#allocation2 + $0x5] sm:$0x1]
      %v1107 = vlaneseq
      %v1108 = vshrl.u32 %v1107, 7
      %v1109 = vsub.s32 0, %v1108
      %v1110 = vrot.slane %v1105, %v1109
      %v1111 = vmul.f32 %v1110, %v895
      %v1112 = vmul.f32 %v1111, 1.442695
      %v1113 = vpow.pop %v1112
      %v1114 = vmul.f32 %v1105, %v1106
      %s1115 = scalar_lea.vmem [#allocation4], 40
      %v1116 = vld [vmem:[%s1115] sm:$0xff]
      %v1117 = vlaneseq
      %v1118 = vshrl.u32 %v1117, 7
      %v1119 = vsub.s32 0, %v1118
      %v1120 = vrot.slane %v1114, %v1119
      %1122 = vset.pattern.permute.xlu0 0
      %1123 = vperm.xlu0 %1122, %v1116
      %v1124 = vpop.permute.xlu0 %1123
      %v1126 = vmul.f32 %v1120, %v1124
      %v1127 = vld [vmem:[#allocation7] sm:$0xff]
      %v1128 = vmul.f32 %v1113, %v1127
      %v1129 = vadd.f32 %v1128, %v1126
      %1130 = vst.msk [vmem:[#allocation7] sm:$0xff] %vm608, %v1129
      %s1131 = scalar_lea.vmem [#allocation5], 40
      %v1132 = vld [vmem:[%s1131] sm:$0xff]
      %1134 = vset.pattern.permute.xlu0 0
      %1135 = vperm.xlu0 %1134, %v1132
      %v1136 = vpop.permute.xlu0 %1135
      %v1138 = vmul.f32 %v1129, %v1136
      %v1139 = vsel %vm608, %v1138, 0.0
      %v1140 = vrot.slane %v1139, 4
      %v1141 = vadd.f32 %v1139, %v1140
      %v1142 = vrot.slane %v1141, 2
      %v1143 = vadd.f32 %v1141, %v1142
      %v1144 = vrot.slane %v1143, 1
      %v1145 = vadd.f32 %v1143, %v1144
      %1146 = vst.msk [vmem:[#allocation6 + $0x5] sm:$0x1] %vm935, %v1145
      %v1147 = vld [vmem:[#allocation3 + $0x6] sm:$0x1]
      %v1148 = vld [vmem:[#allocation2 + $0x6] sm:$0x1]
      %v1149 = vlaneseq
      %v1150 = vshrl.u32 %v1149, 7
      %v1151 = vsub.s32 0, %v1150
      %v1152 = vrot.slane %v1147, %v1151
      %v1153 = vmul.f32 %v1152, %v895
      %v1154 = vmul.f32 %v1153, 1.442695
      %v1155 = vpow.pop %v1154
      %v1156 = vmul.f32 %v1147, %v1148
      %s1157 = scalar_lea.vmem [#allocation4], 48
      %v1158 = vld [vmem:[%s1157] sm:$0xff]
      %v1159 = vlaneseq
      %v1160 = vshrl.u32 %v1159, 7
      %v1161 = vsub.s32 0, %v1160
      %v1162 = vrot.slane %v1156, %v1161
      %1164 = vset.pattern.permute.xlu0 0
      %1165 = vperm.xlu0 %1164, %v1158
      %v1166 = vpop.permute.xlu0 %1165
      %v1168 = vmul.f32 %v1162, %v1166
      %v1169 = vld [vmem:[#allocation7] sm:$0xff]
      %v1170 = vmul.f32 %v1155, %v1169
      %v1171 = vadd.f32 %v1170, %v1168
      %1172 = vst.msk [vmem:[#allocation7] sm:$0xff] %vm608, %v1171
      %s1173 = scalar_lea.vmem [#allocation5], 48
      %v1174 = vld [vmem:[%s1173] sm:$0xff]
      %1176 = vset.pattern.permute.xlu0 0
      %1177 = vperm.xlu0 %1176, %v1174
      %v1178 = vpop.permute.xlu0 %1177
      %v1180 = vmul.f32 %v1171, %v1178
      %v1181 = vsel %vm608, %v1180, 0.0
      %v1182 = vrot.slane %v1181, 4
      %v1183 = vadd.f32 %v1181, %v1182
      %v1184 = vrot.slane %v1183, 2
      %v1185 = vadd.f32 %v1183, %v1184
      %v1186 = vrot.slane %v1185, 1
      %v1187 = vadd.f32 %v1185, %v1186
      %1188 = vst.msk [vmem:[#allocation6 + $0x6] sm:$0x1] %vm935, %v1187
      %v1189 = vld [vmem:[#allocation3 + $0x7] sm:$0x1]
      %v1190 = vld [vmem:[#allocation2 + $0x7] sm:$0x1]
      %v1191 = vlaneseq
      %v1192 = vshrl.u32 %v1191, 7
      %v1193 = vsub.s32 0, %v1192
      %v1194 = vrot.slane %v1189, %v1193
      %v1195 = vmul.f32 %v1194, %v895
      %v1196 = vmul.f32 %v1195, 1.442695
      %v1197 = vpow.pop %v1196
      %v1198 = vmul.f32 %v1189, %v1190
      %s1199 = scalar_lea.vmem [#allocation4], 56
      %v1200 = vld [vmem:[%s1199] sm:$0xff]
      %v1201 = vlaneseq
      %v1202 = vshrl.u32 %v1201, 7
      %v1203 = vsub.s32 0, %v1202
      %v1204 = vrot.slane %v1198, %v1203
      %1206 = vset.pattern.permute.xlu0 0
      %1207 = vperm.xlu0 %1206, %v1200
      %v1208 = vpop.permute.xlu0 %1207
      %v1210 = vmul.f32 %v1204, %v1208
      %v1211 = vld [vmem:[#allocation7] sm:$0xff]
      %v1212 = vmul.f32 %v1197, %v1211
      %v1213 = vadd.f32 %v1212, %v1210
      %1214 = vst.msk [vmem:[#allocation7] sm:$0xff] %vm608, %v1213
      %s1215 = scalar_lea.vmem [#allocation5], 56
      %v1216 = vld [vmem:[%s1215] sm:$0xff]
      %1218 = vset.pattern.permute.xlu0 0
      %1219 = vperm.xlu0 %1218, %v1216
      %v1220 = vpop.permute.xlu0 %1219
      %v1222 = vmul.f32 %v1213, %v1220
      %v1223 = vsel %vm608, %v1222, 0.0
      %v1224 = vrot.slane %v1223, 4
      %v1225 = vadd.f32 %v1223, %v1224
      %v1226 = vrot.slane %v1225, 2
      %v1227 = vadd.f32 %v1225, %v1226
      %v1228 = vrot.slane %v1227, 1
      %v1229 = vadd.f32 %v1227, %v1228
      %1230 = vst.msk [vmem:[#allocation6 + $0x7] sm:$0x1] %vm935, %v1229
      %v1231 = vld [vmem:[#allocation6] sm:$0xff]
      %v1232 = vld [vmem:[%s10] sm:$0x1]
      %v1234 = vlaneseq
      %v1235 = vshrl.u32 %v1234, 7
      %v1236 = vsub.s32 0, %v1235
      %v1237 = vrot.slane %v1232, %v1236
      %v1239 = vmul.f32 %v567, %v1237
      %v1240 = vadd.f32 %v1231, %v1239
      %v1241 = vxor.u32 %v500, 2147483648
      %v1242 = vmul.f32 %v1241, 1.442695
      %v1243 = vpow.pop %v1242
      %v1244 = vadd.f32 %v1243, 1.0
      %v1245 = vrcp.pop %v1244
      %v1246 = vmul.f32 1.0, %v1245
      %v1247 = vmul.f32 %v500, %v1246
      %1249 = vrot.lane.b32.xlu0 %v1247, 64
      %v1250 = vpop.permute.xlu0 %1249
      %v1252 = vmul.f32 %v1240, %v1250
      %v1253 = vpack.c.bf16 %v1252, %v1252
      %v1254 = vld [vmem:[%s11] sm:$0xf]
      %v1255 = vld [vmem:[%s11 + $0x4] sm:$0xf]
      %v1256 = vld [vmem:[%s11 + $0x8] sm:$0xf]
      %v1257 = vld [vmem:[%s11 + $0xc] sm:$0xf]
      %v1258 = vld [vmem:[%s11 + $0x10] sm:$0xf]
      %v1259 = vld [vmem:[%s11 + $0x14] sm:$0xf]
      %v1260 = vld [vmem:[%s11 + $0x18] sm:$0xf]
      %v1261 = vld [vmem:[%s11 + $0x1c] sm:$0xf]
      %v1262 = vld [vmem:[%s12] sm:$0x1]
      %v1264 = vlaneseq
      %v1265 = vshrl.u32 %v1264, 7
      %v1266 = vsub.s32 0, %v1265
      %v1267 = vrot.slane %v1262, %v1266
      %v1277 = vunpack.c.l.b16 %v1254
      %v1278 = vunpack.c.l.b16 %v1255
      %v1279 = vunpack.c.l.b16 %v1256
      %v1280 = vunpack.c.l.b16 %v1257
      %v1281 = vunpack.c.l.b16 %v1258
      %v1282 = vunpack.c.l.b16 %v1259
      %v1283 = vunpack.c.l.b16 %v1260
      %v1284 = vunpack.c.l.b16 %v1261
      %v1285 = vpack.c.b16 %v1278, %v1277
      %v1286 = vpack.c.b16 %v1280, %v1279
      %v1287 = vpack.c.b16 %v1282, %v1281
      %v1288 = vpack.c.b16 %v1284, %v1283
      %v1294 = vsel %vm608, %v1253, 0
      %1296 = vmatprep.subr.bf16.mxu0 0
      %1297 = vmatpush1.bf16.msra.mxu0 %v1285
      %1298 = vmatprep.subr.bf16.mxu0 0
      %1299 = vmatpush1.bf16.msra.mxu0 %v1286
      %1300 = vmatprep.subr.bf16.mxu0 0
      %1301 = vmatpush1.bf16.msra.mxu0 %v1287
      %1302 = vmatprep.subr.bf16.mxu0 0
      %1303 = vmatpush1.bf16.msra.mxu0 %v1288
      %1304 = vmatprep.subr.bf16.mxu0 0
      %1305 = vmatpush1.bf16.msra.mxu0 0
      %1306 = vmatprep.subr.bf16.mxu0 0
      %1307 = vmatpush1.bf16.msra.mxu0 0
      %1308 = vmatprep.subr.bf16.mxu0 0
      %1309 = vmatpush1.bf16.msra.mxu0 0
      %1310 = vmatprep.subr.bf16.mxu0 0
      %1311 = vmatpush1.bf16.msra.mxu0 0
      %1312 = vmatprep.subr.bf16.mxu0 0
      %1313 = vmatpush1.bf16.msra.mxu0 0
      %1314 = vmatprep.subr.bf16.mxu0 0
      %1315 = vmatpush1.bf16.msra.mxu0 0
      %1316 = vmatprep.subr.bf16.mxu0 0
      %1317 = vmatpush1.bf16.msra.mxu0 0
      %1318 = vmatprep.subr.bf16.mxu0 0
      %1319 = vmatpush1.bf16.msra.mxu0 0
      %1320 = vmatprep.subr.bf16.mxu0 0
      %1321 = vmatpush1.bf16.msra.mxu0 0
      %1322 = vmatprep.subr.bf16.mxu0 0
      %1323 = vmatpush1.bf16.msra.mxu0 0
      %1324 = vmatprep.subr.bf16.mxu0 0
      %1325 = vmatpush1.bf16.msra.mxu0 0
      %1326 = vmatprep.subr.bf16.mxu0 0
      %1327 = vmatpush1.bf16.msra.mxu0 0
      %1328 = vmatprep.mubr.bf16.mxu0 0
      %1329 = vmatmul.mubr.bf16.gmra.mrb[0].mxu0 %v1294
      %v1330 = vpop.f32.mrb[0].mxu0
      %v1331 = vadd.f32 %v1267, %v1330
      %v1332 = vpop.f32.mrb[0].mxu0
      %v1333 = vpop.f32.mrb[0].mxu0
      %v1334 = vpop.f32.mrb[0].mxu0
      %1335 = vdwg.mxu0
      %v1336 = vpack.c.bf16 %v1331, %v1331
      %vm1337 = vcmask 257024
      %1338 = vst.msk [vmem:[%s435] sm:$0xf] %vm1337, %v1336
      %p1339 = scmp.lt.s32.totalorder %s24, 1
      %s1340 = scalar_select %p1339, %s24, 1
      %s1341 = smul.addr %s1340, 4
      %s1342 = scalar_lea.vmem %s13, %s1341
      // Predicated region
      $region73: #{_lambda_.2} parent=71 // pred_check
        %p1343 = pneg %p320
      $region74: #{_lambda_.2} parent=71 // pred_check_branch
        %1345 = sbr.rel (%p1343) target = $region76
      $region75: #{_lambda_.2} parent=71 // pred_region
        _
      $region76: #{_lambda_.2} parent=71 // pred_fallthru
        _
    $region72: #{_lambda_.2} parent=5 // pred_fallthru
      _
    %p1346 = scmp.le.s32.totalorder 2, %s19
    // Predicated region
    $region77: #{_lambda_.2} parent=5 // pred_check
      %p1347 = pneg %p1346
    $region78: #{_lambda_.2} parent=5 // pred_check_branch
      %1349 = sbr.rel (%p1347) target = $region80
    $region79: #{_lambda_.2} parent=5 // pred_region
      %s1350 = ssub.s32 %s19, 2
      // Predicated region
      $region81: #{_lambda_.2} parent=79 // pred_check
        %p1351 = pneg %p326
      $region82: #{_lambda_.2} parent=79 // pred_check_branch
        %1353 = sbr.rel (%p1351) target = $region84
      $region83: #{_lambda_.2} parent=79 // pred_region
        %p1354 = scmp.lt.s32.totalorder %s25, 1
        %s1355 = scalar_select %p1354, %s25, 1
        %s1356 = smul.addr %s1355, 4
        %s1357 = scalar_lea.vmem %s13, %s1356
      $region84: #{_lambda_.2} parent=79 // pred_fallthru
        _
    $region80: #{_lambda_.2} parent=5 // pred_fallthru
      _
  $region6: #{_lambda_.2} parent=0 // loop_footer
    %s23 = sadd.s32 1, %s19
  $region7: #{_lambda_.2} parent=0 // loop_footer_branch
    %18 = sbr.rel target = $region3
  $region8: #{_lambda_.2} parent=0 // loop_exit
    _

</llo_original>
